<compile_context>
chip_gen: v6e
topology: v6e:2x2x1
jax: 0.10.0
libtpu: 0.0.40
codegen_flags: <defaults>
</compile_context>

<pallas_src>
import functools
import math

import jax
import jax.numpy as jnp
from jax.experimental import pallas as pl
from jax.experimental.pallas import tpu as pltpu


# ----------------------------------------------------------------------------
# Fused kernel: patch-embed + sequence assembly + ln_pre + all residual attention
# blocks + ln_post/proj + CLIP logits.  grid = (batch_tiles, layers).
# ----------------------------------------------------------------------------

def _fused_clip_kernel(num_heads,
                       patches_ref,   # (bm, Np, Cpp) bf16  im2col patches for this batch tile
                       wconv_ref,     # (Cpp, D)      bf16  conv1 weight as matmul
                       addend_ref,    # (L, D)        f32   rows: cls+pos[0] | prompts | pos[1:]
                       wqkv_ref,      # (D, 3D)       bf16  [q|k|v] cols, q pre-scaled 1/sqrt(hd)
                       bqkv_ref,      # (1, 3D)       f32   q part pre-scaled 1/sqrt(hd)
                       wo_ref,        # (D, D)        bf16  rows in concat-of-heads order
                       w1_ref,        # (D, 4D)       bf16
                       b1_ref,        # (1, 4D)       f32
                       w2_ref,        # (4D, D)       bf16
                       vecs_ref,      # (8, D) f32: ln1_w ln1_b ln2_w ln2_b bo b2 pad pad
                       prepost_ref,   # (8, D) f32: ln_pre_w ln_pre_b ln_post_w ln_post_b pads
                       proj_ref,      # (D, O)        bf16
                       text_ref,      # (O, Ncls)     bf16  frozen, L2-normalized, transposed
                       lscale_ref,    # (1, 1)        f32   exp(logit_scale)
                       o_ref,         # (bm, Ncls)    f32   output logits for this batch tile
                       x_vmem):       # scratch (bm, L, D) f32, resident across layers
    l = pl.program_id(1)
    bm, L, D = x_vmem.shape
    Np = patches_ref.shape[1]
    Cpp = patches_ref.shape[2]
    H = num_heads
    hd = D // H
    N = bm * L
    f32, bf16 = jnp.float32, jnp.bfloat16

    def layer_norm(v, w, b):
        mu = jnp.mean(v, axis=-1, keepdims=True)
        var = jnp.mean(jnp.square(v - mu), axis=-1, keepdims=True)
        return (v - mu) * jax.lax.rsqrt(var + 1e-5) * w + b

    # ---- layer 0 only: conv1-as-matmul, CLS/prompt/pos assembly, ln_pre ----
    @pl.when(l == 0)
    def _init():
        ptok = jnp.dot(patches_ref[...].reshape(bm * Np, Cpp), wconv_ref[...],
                       preferred_element_type=f32).reshape(bm, Np, D)
        addend = addend_ref[...]                      # (L, D)
        npre = L - Np                                 # 1 (CLS) + num_tokens prompts
        x_vmem[:, :npre, :] = jnp.broadcast_to(addend[:npre][None], (bm, npre, D))
        x_vmem[:, npre:, :] = ptok + addend[npre:][None]
        x_vmem[...] = layer_norm(x_vmem[...], prepost_ref[0], prepost_ref[1])

    # ---------------- residual attention block for layer l ----------------
    x = x_vmem[...]                                                    # (bm, L, D) f32
    h = layer_norm(x, vecs_ref[0], vecs_ref[1]).reshape(N, D).astype(bf16)

    # single lane-dense qkv projection: (N, D) @ (D, 3D)
    qkv = jnp.dot(h, wqkv_ref[...], preferred_element_type=f32) + bqkv_ref[...]   # (N, 3D)

    def split_heads(off):
        # static 64-lane slices per head, stacked to a leading (head*batch) axis
        parts = [qkv[:, off + hh * hd: off + (hh + 1) * hd] for hh in range(H)]
        return jnp.stack(parts, axis=0).reshape(H * bm, L, hd).astype(bf16)

    q = split_heads(0)           # 1/sqrt(hd) already folded into wqkv/bqkv at pack time
    k = split_heads(D)
    v = split_heads(2 * D)

    s = jnp.einsum('zqd,zkd->zqk', q, k, preferred_element_type=f32)   # (H*bm, L, L)
    s = s - jnp.max(s, axis=-1, keepdims=True)
    p = jnp.exp(s)
    p = p * pl.reciprocal(jnp.sum(p, axis=-1, keepdims=True), approx=True)

    o = jnp.einsum('zqk,zkd->zqd', p.astype(bf16), v,
                   preferred_element_type=f32)                         # (H*bm, L, hd)
    o = o.reshape(H, N, hd)
    # concat heads along lanes -> one K=128 out-projection matmul
    o_cat = jnp.concatenate([o[hh] for hh in range(H)], axis=-1).astype(bf16)    # (N, D)
    attn = jnp.dot(o_cat, wo_ref[...], preferred_element_type=f32) + vecs_ref[4]
    x = x + attn.reshape(bm, L, D)

    # MLP: Linear -> QuickGELU -> Linear
    h2 = layer_norm(x, vecs_ref[2], vecs_ref[3]).reshape(N, D).astype(bf16)
    m = jnp.dot(h2, w1_ref[...], preferred_element_type=f32) + b1_ref[...]
    m = m * jax.nn.sigmoid(1.702 * m)                                  # QuickGELU (OpenAI CLIP)
    m = jnp.dot(m.astype(bf16), w2_ref[...], preferred_element_type=f32) + vecs_ref[5]
    x_vmem[...] = x + m.reshape(bm, L, D)

    # ---------- ln_post on CLS + visual projection + CustomCLIP logits ----------
    @pl.when(l == pl.num_programs(1) - 1)
    def _final():
        xf = x_vmem[...]
        cls = xf[:, 0, :]                                              # (bm, D)
        feat = layer_norm(cls, prepost_ref[2], prepost_ref[3])
        vis = jnp.dot(feat.astype(bf16), proj_ref[...],
                      preferred_element_type=f32)                      # (bm, O)
        img = vis * jax.lax.rsqrt(jnp.sum(vis * vis, axis=-1, keepdims=True))
        # text already normalized + transposed + bf16; logit_scale already exp'd
        o_ref[...] = lscale_ref[...] * jnp.dot(img.astype(bf16), text_ref[...],
                                               preferred_element_type=f32)


def fused_clip_logits(patches, pk, cfg, *, block_b=None):
    B, Np, Cpp = patches.shape
    layers, D, threeD = pk["wqkv"].shape
    F = pk["w1"].shape[2]
    O = pk["proj"].shape[1]
    ncls = pk["text_t"].shape[1]
    L = pk["addend"].shape[0]
    H = cfg["heads"]

    bm = B if block_b is None else min(block_b, B)
    assert B % bm == 0
    grid = (B // bm, layers)

    return pl.pallas_call(
        functools.partial(_fused_clip_kernel, H),
        out_shape=jax.ShapeDtypeStruct((B, ncls), jnp.float32),
        grid=grid,
        in_specs=[
            pl.BlockSpec((bm, Np, Cpp), lambda b, l: (b, 0, 0)),        # patches (per batch tile)
            pl.BlockSpec((Cpp, D), lambda b, l: (0, 0)),                # conv1 weight
            pl.BlockSpec((L, D), lambda b, l: (0, 0)),                  # cls/prompt/pos addend
            pl.BlockSpec((None, D, 3 * D), lambda b, l: (l, 0, 0)),     # wqkv (streamed per layer)
            pl.BlockSpec((None, 1, 3 * D), lambda b, l: (l, 0, 0)),     # bqkv
            pl.BlockSpec((None, D, D), lambda b, l: (l, 0, 0)),         # wo
            pl.BlockSpec((None, D, F), lambda b, l: (l, 0, 0)),         # w1
            pl.BlockSpec((None, 1, F), lambda b, l: (l, 0, 0)),         # b1
            pl.BlockSpec((None, F, D), lambda b, l: (l, 0, 0)),         # w2
            pl.BlockSpec((None, 8, D), lambda b, l: (l, 0, 0)),         # per-layer LN/bias vecs
            pl.BlockSpec((8, D), lambda b, l: (0, 0)),                  # ln_pre / ln_post vecs
            pl.BlockSpec((D, O), lambda b, l: (0, 0)),                  # visual projection
            pl.BlockSpec((O, ncls), lambda b, l: (0, 0)),               # normalized text^T (bf16)
            pl.BlockSpec((1, 1), lambda b, l: (0, 0)),                  # exp(logit_scale)
        ],
        out_specs=pl.BlockSpec((bm, ncls), lambda b, l: (b, 0)),
        scratch_shapes=[pltpu.VMEM((bm, L, D), jnp.float32)],
        compiler_params=pltpu.CompilerParams(
            dimension_semantics=("parallel", "arbitrary")),
    )(patches, pk["wconv"], pk["addend"], pk["wqkv"], pk["bqkv"], pk["wo"],
      pk["w1"], pk["b1"], pk["w2"], pk["vecs"], pk["prepost"], pk["proj"],
      pk["text_t"], pk["logit_scale"])


# ----------------------------------------------------------------------------
# Parameter construction + packing (deterministic, in-script)
# ----------------------------------------------------------------------------

def pack_for_kernel(params, cfg):
    D, H, C, p = cfg["width"], cfg["heads"], cfg["in_ch"], cfg["patch"]
    hd = D // H
    bf16, f32 = jnp.bfloat16, jnp.float32
    zD = jnp.zeros((D,), f32)
    scale = 1.0 / math.sqrt(hd)

    wqkv, bqkv, wo, w1s, b1s, w2s, vecs = [], [], [], [], [], [], []
    for blk in params["blocks"]:
        # (D, 3D) in x @ W orientation, column blocks [q | k | v]; fold 1/sqrt(hd) into q
        w = jnp.concatenate([blk["wqkv"][:, :D] * scale, blk["wqkv"][:, D:]], axis=1)
        b = jnp.concatenate([blk["bqkv"][:D] * scale, blk["bqkv"][D:]], axis=0)
        wqkv.append(w)
        bqkv.append(b.reshape(1, 3 * D))
        wo.append(blk["wo"])                          # (D, D), rows = concat-of-heads order
        w1s.append(blk["w1"])
        b1s.append(blk["b1"].reshape(1, 4 * D))
        w2s.append(blk["w2"])
        vecs.append(jnp.stack([blk["ln1_w"], blk["ln1_b"], blk["ln2_w"], blk["ln2_b"],
                               blk["bo"], blk["b2"], zD, zD], axis=0))

    prepost = jnp.stack([params["ln_pre_w"], params["ln_pre_b"],
                         params["ln_post_w"], params["ln_post_b"], zD, zD, zD, zD], axis=0)

    # sequence addend: row 0 = CLS + pos[0]; rows 1..T = prompts (VPT-shallow, no pos,
    # prompt_proj = Identity); remaining rows = pos[1:] (added to patch tokens in-kernel)
    pos = params["positional_embedding"]
    addend = jnp.concatenate([(params["class_embedding"] + pos[0])[None, :],
                              params["prompt_embeddings"][0],
                              pos[1:]], axis=0)

    # frozen text branch: pre-normalize, transpose, bf16; logit_scale pre-exp'd
    txt = params["text_features"]
    txt = txt * jax.lax.rsqrt(jnp.sum(txt * txt, axis=-1, keepdims=True))

    return {
        "wqkv": jnp.stack(wqkv).astype(bf16),         # (layers, D, 3D)
        "bqkv": jnp.stack(bqkv).astype(f32),          # (layers, 1, 3D)
        "wo": jnp.stack(wo).astype(bf16),             # (layers, D, D)
        "w1": jnp.stack(w1s).astype(bf16),            # (layers, D, 4D)
        "b1": jnp.stack(b1s).astype(f32),             # (layers, 1, 4D)
        "w2": jnp.stack(w2s).astype(bf16),            # (layers, 4D, D)
        "vecs": jnp.stack(vecs).astype(f32),          # (layers, 8, D)
        "prepost": prepost.astype(f32),               # (8, D)
        "addend": addend.astype(f32),                 # (L, D)
        "proj": params["proj"].astype(bf16),          # (D, O)
        "text_t": txt.T.astype(bf16),                 # (O, n_cls)
        "logit_scale": jnp.exp(params["logit_scale"]).astype(f32),   # (1, 1)
        "wconv": params["conv1_w"].reshape(D, C * p * p).T.astype(bf16),  # (C*p*p, D)
    }


def init_params(key, cfg):
    D, H, p, C = cfg["width"], cfg["heads"], cfg["patch"], cfg["in_ch"]
    layers, O, res = cfg["layers"], cfg["out_dim"], cfg["resolution"]
    T, ncls = cfg["num_tokens"], cfg["n_cls"]
    Np = (res // p) ** 2

    keys = iter(jax.random.split(key, 64))
    nrm = lambda s, sc=0.02: (sc * jax.random.normal(next(keys), s)).astype(jnp.float32)
    ones = lambda s: jnp.ones(s, jnp.float32)
    zeros = lambda s: jnp.zeros(s, jnp.float32)

    params = dict(
        conv1_w=nrm((D, C, p, p)),                       # Conv2d, bias=False
        class_embedding=nrm((D,)),
        positional_embedding=nrm((Np + 1, D)),
        ln_pre_w=ones((D,)), ln_pre_b=zeros((D,)),
        ln_post_w=ones((D,)), ln_post_b=zeros((D,)),
        proj=nrm((D, O)),
        logit_scale=jnp.full((1, 1), math.log(1.0 / 0.07), jnp.float32),
        # TODO(synk): stand-in for the frozen CLIP text encoder outputs (encode_text).
        text_features=nrm((ncls, O), 1.0),
    )
    # prompt embeddings: uniform(-val, val), val = sqrt(6 / (3*prod(patch) + prompt_dim))
    val = math.sqrt(6.0 / float(3 * p * p + D))
    params["prompt_embeddings"] = jax.random.uniform(
        next(keys), (1, T, D), jnp.float32, minval=-val, maxval=val)

    blocks = []
    for _ in range(layers):
        blocks.append(dict(
            ln1_w=ones((D,)), ln1_b=zeros((D,)),
            ln2_w=ones((D,)), ln2_b=zeros((D,)),
            wqkv=nrm((D, 3 * D)), bqkv=nrm((3 * D,)),    # stored transposed: x @ wqkv
            wo=nrm((D, D)), bo=nrm((D,)),
            w1=nrm((D, 4 * D)), b1=nrm((4 * D,)),
            w2=nrm((4 * D, D)), b2=nrm((D,)),
        ))
    params["blocks"] = blocks
    params["packed"] = pack_for_kernel(params, cfg)
    return params


# ----------------------------------------------------------------------------
# Forward pass (mirrors CustomCLIP.forward with training_strategy='VP', vp_DEEP=False)
# ----------------------------------------------------------------------------

def custom_clip_forward(x_nchw, params, cfg):
    B, C, Himg, Wimg = x_nchw.shape
    p = cfg["patch"]
    Hg, Wg = Himg // p, Wimg // p
    Np = Hg * Wg
    pk = params["packed"]

    # im2col (pure reshape/transpose glue); conv1 matmul + sequence assembly + transformer +
    # ln_post/proj + logits all happen inside the single fused pallas_call.
    patches = (x_nchw.reshape(B, C, Hg, p, Wg, p)
               .transpose(0, 2, 4, 1, 3, 5)
               .reshape(B, Np, C * p * p)).astype(jnp.bfloat16)

    return fused_clip_logits(patches, pk, cfg)


# ----------------------------------------------------------------------------

if __name__ == "__main__":
    cfg = dict(in_ch=3, patch=4, resolution=16, width=128, heads=2, layers=2,
               out_dim=128, num_tokens=7, n_cls=16)   # L = 1 + 7 + 16 = 24 tokens

    key = jax.random.PRNGKey(0)
    k_param, k_x = jax.random.split(key)
    params = init_params(k_param, cfg)

    x = jax.random.normal(k_x, (2, cfg["in_ch"], cfg["resolution"], cfg["resolution"]),
                          dtype=jnp.float32)          # NCHW, like the PyTorch module

    logits = custom_clip_forward(x, params, cfg)
    logits = jax.block_until_ready(logits)
    assert logits.shape == (2, cfg["n_cls"])
    assert bool(jnp.all(jnp.isfinite(logits)))
    print("KERNEL_OK")
</pallas_src>

<mosaic_0001>
module attributes {stable_mosaic.version = 11 : i64} {
  func.func @_fused_clip_kernel(%arg0: i32, %arg1: i32, %arg2: memref<2x16x48xbf16, #tpu.memory_space<vmem>>, %arg3: memref<48x128xbf16, #tpu.memory_space<vmem>>, %arg4: memref<24x128xf32, #tpu.memory_space<vmem>>, %arg5: memref<1x128x384xbf16, #tpu.memory_space<vmem>>, %arg6: memref<1x1x384xf32, #tpu.memory_space<vmem>>, %arg7: memref<1x128x128xbf16, #tpu.memory_space<vmem>>, %arg8: memref<1x128x512xbf16, #tpu.memory_space<vmem>>, %arg9: memref<1x1x512xf32, #tpu.memory_space<vmem>>, %arg10: memref<1x512x128xbf16, #tpu.memory_space<vmem>>, %arg11: memref<1x8x128xf32, #tpu.memory_space<vmem>>, %arg12: memref<8x128xf32, #tpu.memory_space<vmem>>, %arg13: memref<128x128xbf16, #tpu.memory_space<vmem>>, %arg14: memref<128x16xbf16, #tpu.memory_space<vmem>>, %arg15: memref<1x1xf32, #tpu.memory_space<vmem>>, %arg16: memref<2x16xf32, #tpu.memory_space<vmem>>, %arg17: memref<2x24x128xf32, #tpu.memory_space<vmem>>) attributes {dimension_semantics = [#tpu.dimension_semantics<parallel>, #tpu.dimension_semantics<arbitrary>], iteration_bounds = array<i64: 1, 2>, scalar_prefetch = 0 : i64, scratch_operands = 1 : i64, tpu.core_type = #tpu.core_type<tc>, window_params = [{transform_indices = @transform_0, window_bounds = array<i64: 2, 16, 48>}, {pipeline_mode = #tpu.pipeline_mode<synchronous>, transform_indices = @transform_1, window_bounds = array<i64: 48, 128>}, {pipeline_mode = #tpu.pipeline_mode<synchronous>, transform_indices = @transform_2, window_bounds = array<i64: 24, 128>}, {transform_indices = @transform_3, window_bounds = array<i64: 1, 128, 384>}, {transform_indices = @transform_4, window_bounds = array<i64: 1, 1, 384>}, {transform_indices = @transform_5, window_bounds = array<i64: 1, 128, 128>}, {transform_indices = @transform_6, window_bounds = array<i64: 1, 128, 512>}, {transform_indices = @transform_7, window_bounds = array<i64: 1, 1, 512>}, {transform_indices = @transform_8, window_bounds = array<i64: 1, 512, 128>}, {transform_indices = @transform_9, window_bounds = array<i64: 1, 8, 128>}, {pipeline_mode = #tpu.pipeline_mode<synchronous>, transform_indices = @transform_10, window_bounds = array<i64: 8, 128>}, {pipeline_mode = #tpu.pipeline_mode<synchronous>, transform_indices = @transform_11, window_bounds = array<i64: 128, 128>}, {pipeline_mode = #tpu.pipeline_mode<synchronous>, transform_indices = @transform_12, window_bounds = array<i64: 128, 16>}, {pipeline_mode = #tpu.pipeline_mode<synchronous>, transform_indices = @transform_13, window_bounds = array<i64: 1, 1>}, {transform_indices = @transform_14, window_bounds = array<i64: 2, 16>}]} {
    %c0_i32 = arith.constant 0 : i32
    %0 = arith.cmpi eq, %arg1, %c0_i32 : i32
    %1 = arith.extui %0 : i1 to i32
    %c0_i32_0 = arith.constant 0 : i32
    %2 = arith.cmpi ne, %1, %c0_i32_0 : i32
    scf.if %2 {
      %c0_57 = arith.constant 0 : index
      %c0_58 = arith.constant 0 : index
      %c0_59 = arith.constant 0 : index
      %152 = vector.load %arg2[%c0_57, %c0_58, %c0_59] : memref<2x16x48xbf16, #tpu.memory_space<vmem>>, vector<2x16x48xbf16>
      %153 = vector.shape_cast %152 : vector<2x16x48xbf16> to vector<32x48xbf16>
      %c0_60 = arith.constant 0 : index
      %c0_61 = arith.constant 0 : index
      %154 = vector.load %arg3[%c0_60, %c0_61] : memref<48x128xbf16, #tpu.memory_space<vmem>>, vector<48x128xbf16>
      %cst_62 = arith.constant dense<0.000000e+00> : vector<32x128xf32>
      %155 = tpu.matmul %153, %154, %cst_62 {dimension_numbers = #tpu.dot_dimension_numbers<[1], [0], [0], [1], [0, 0, 1, 1], [], []>} : vector<32x48xbf16>, vector<48x128xbf16>, vector<32x128xf32> -> vector<32x128xf32>
      %156 = vector.shape_cast %155 : vector<32x128xf32> to vector<2x16x128xf32>
      %c0_63 = arith.constant 0 : index
      %c0_64 = arith.constant 0 : index
      %157 = vector.load %arg4[%c0_63, %c0_64] : memref<24x128xf32, #tpu.memory_space<vmem>>, vector<24x128xf32>
      %158 = vector.extract_strided_slice %157 {offsets = [0, 0], sizes = [8, 128], strides = [1, 1]} : vector<24x128xf32> to vector<8x128xf32>
      %159 = vector.shape_cast %158 : vector<8x128xf32> to vector<1x8x128xf32>
      %160 = vector.shape_cast %159 : vector<1x8x128xf32> to vector<1x8x128xf32>
      %161 = vector.broadcast %160 : vector<1x8x128xf32> to vector<2x8x128xf32>
      %c0_65 = arith.constant 0 : index
      %c0_66 = arith.constant 0 : index
      %c0_67 = arith.constant 0 : index
      %162 = vector.load %arg17[%c0_65, %c0_66, %c0_67] : memref<2x24x128xf32, #tpu.memory_space<vmem>>, vector<2x8x128xf32>
      tpu.vector_store %arg17[%c0_65, %c0_66, %c0_67], %161 {strides = array<i32>} : memref<2x24x128xf32, #tpu.memory_space<vmem>>, vector<2x8x128xf32>,
      %163 = vector.extract_strided_slice %157 {offsets = [8, 0], sizes = [16, 128], strides = [1, 1]} : vector<24x128xf32> to vector<16x128xf32>
      %164 = vector.shape_cast %163 : vector<16x128xf32> to vector<1x16x128xf32>
      %165 = vector.broadcast %164 : vector<1x16x128xf32> to vector<2x16x128xf32>
      %166 = arith.addf %156, %165 : vector<2x16x128xf32>
      %c0_68 = arith.constant 0 : index
      %c8 = arith.constant 8 : index
      %c0_69 = arith.constant 0 : index
      %167 = vector.load %arg17[%c0_68, %c8, %c0_69] : memref<2x24x128xf32, #tpu.memory_space<vmem>>, vector<2x16x128xf32>
      tpu.vector_store %arg17[%c0_68, %c8, %c0_69], %166 {strides = array<i32>} : memref<2x24x128xf32, #tpu.memory_space<vmem>>, vector<2x16x128xf32>,
      %c0_70 = arith.constant 0 : index
      %c0_71 = arith.constant 0 : index
      %c0_72 = arith.constant 0 : index
      %168 = vector.load %arg17[%c0_70, %c0_71, %c0_72] : memref<2x24x128xf32, #tpu.memory_space<vmem>>, vector<2x24x128xf32>
      %c0_73 = arith.constant 0 : index
      %c0_74 = arith.constant 0 : index
      %169 = vector.load %arg12[%c0_73, %c0_74] : memref<8x128xf32, #tpu.memory_space<vmem>>, vector<1x128xf32>
      %170 = vector.shape_cast %169 : vector<1x128xf32> to vector<128xf32>
      %c1_75 = arith.constant 1 : index
      %c0_76 = arith.constant 0 : index
      %171 = vector.load %arg12[%c1_75, %c0_76] : memref<8x128xf32, #tpu.memory_space<vmem>>, vector<1x128xf32>
      %172 = vector.shape_cast %171 : vector<1x128xf32> to vector<128xf32>
      %cst_77 = arith.constant dense<0.000000e+00> : vector<2x24xf32>
      %173 = vector.multi_reduction <add>, %168, %cst_77 [2] : vector<2x24x128xf32> to vector<2x24xf32>
      %174 = vector.shape_cast %173 : vector<2x24xf32> to vector<2x24x1xf32>
      %cst_78 = arith.constant 1.280000e+02 : f32
      %175 = vector.broadcast %cst_78 : f32 to vector<2x24x1xf32>
      %176 = arith.divf %174, %175 : vector<2x24x1xf32>
      %177 = vector.broadcast %176 : vector<2x24x1xf32> to vector<2x24x128xf32>
      %178 = arith.subf %168, %177 : vector<2x24x128xf32>
      %179 = arith.mulf %178, %178 : vector<2x24x128xf32>
      %cst_79 = arith.constant dense<0.000000e+00> : vector<2x24xf32>
      %180 = vector.multi_reduction <add>, %179, %cst_79 [2] : vector<2x24x128xf32> to vector<2x24xf32>
      %181 = vector.shape_cast %180 : vector<2x24xf32> to vector<2x24x1xf32>
      %cst_80 = arith.constant 1.280000e+02 : f32
      %182 = vector.broadcast %cst_80 : f32 to vector<2x24x1xf32>
      %183 = arith.divf %181, %182 : vector<2x24x1xf32>
      %184 = vector.broadcast %176 : vector<2x24x1xf32> to vector<2x24x128xf32>
      %185 = arith.subf %168, %184 : vector<2x24x128xf32>
      %cst_81 = arith.constant 9.99999974E-6 : f32
      %186 = vector.broadcast %cst_81 : f32 to vector<2x24x1xf32>
      %187 = arith.addf %183, %186 : vector<2x24x1xf32>
      %188 = math.rsqrt %187 : vector<2x24x1xf32>
      %189 = vector.broadcast %188 : vector<2x24x1xf32> to vector<2x24x128xf32>
      %190 = arith.mulf %185, %189 : vector<2x24x128xf32>
      %191 = vector.shape_cast %170 : vector<128xf32> to vector<1x1x128xf32>
      %192 = vector.broadcast %191 : vector<1x1x128xf32> to vector<2x24x128xf32>
      %193 = arith.mulf %190, %192 : vector<2x24x128xf32>
      %194 = vector.shape_cast %172 : vector<128xf32> to vector<1x1x128xf32>
      %195 = vector.broadcast %194 : vector<1x1x128xf32> to vector<2x24x128xf32>
      %196 = arith.addf %193, %195 : vector<2x24x128xf32>
      %c0_82 = arith.constant 0 : index
      %c0_83 = arith.constant 0 : index
      %c0_84 = arith.constant 0 : index
      %197 = vector.load %arg17[%c0_82, %c0_83, %c0_84] : memref<2x24x128xf32, #tpu.memory_space<vmem>>, vector<2x24x128xf32>
      tpu.vector_store %arg17[%c0_82, %c0_83, %c0_84], %196 {strides = array<i32>} : memref<2x24x128xf32, #tpu.memory_space<vmem>>, vector<2x24x128xf32>,
    } else {
    }
    %c0 = arith.constant 0 : index
    %c0_1 = arith.constant 0 : index
    %c0_2 = arith.constant 0 : index
    %3 = vector.load %arg17[%c0, %c0_1, %c0_2] : memref<2x24x128xf32, #tpu.memory_space<vmem>>, vector<2x24x128xf32>
    %c0_3 = arith.constant 0 : index
    %c0_4 = arith.constant 0 : index
    %c0_5 = arith.constant 0 : index
    %4 = vector.load %arg11[%c0_3, %c0_4, %c0_5] : memref<1x8x128xf32, #tpu.memory_space<vmem>>, vector<1x1x128xf32>
    %5 = vector.shape_cast %4 : vector<1x1x128xf32> to vector<128xf32>
    %c0_6 = arith.constant 0 : index
    %c1 = arith.constant 1 : index
    %c0_7 = arith.constant 0 : index
    %6 = vector.load %arg11[%c0_6, %c1, %c0_7] : memref<1x8x128xf32, #tpu.memory_space<vmem>>, vector<1x1x128xf32>
    %7 = vector.shape_cast %6 : vector<1x1x128xf32> to vector<128xf32>
    %cst = arith.constant dense<0.000000e+00> : vector<2x24xf32>
    %8 = vector.multi_reduction <add>, %3, %cst [2] : vector<2x24x128xf32> to vector<2x24xf32>
    %9 = vector.shape_cast %8 : vector<2x24xf32> to vector<2x24x1xf32>
    %cst_8 = arith.constant 1.280000e+02 : f32
    %10 = vector.broadcast %cst_8 : f32 to vector<2x24x1xf32>
    %11 = arith.divf %9, %10 : vector<2x24x1xf32>
    %12 = vector.broadcast %11 : vector<2x24x1xf32> to vector<2x24x128xf32>
    %13 = arith.subf %3, %12 : vector<2x24x128xf32>
    %14 = arith.mulf %13, %13 : vector<2x24x128xf32>
    %cst_9 = arith.constant dense<0.000000e+00> : vector<2x24xf32>
    %15 = vector.multi_reduction <add>, %14, %cst_9 [2] : vector<2x24x128xf32> to vector<2x24xf32>
    %16 = vector.shape_cast %15 : vector<2x24xf32> to vector<2x24x1xf32>
    %cst_10 = arith.constant 1.280000e+02 : f32
    %17 = vector.broadcast %cst_10 : f32 to vector<2x24x1xf32>
    %18 = arith.divf %16, %17 : vector<2x24x1xf32>
    %19 = vector.broadcast %11 : vector<2x24x1xf32> to vector<2x24x128xf32>
    %20 = arith.subf %3, %19 : vector<2x24x128xf32>
    %cst_11 = arith.constant 9.99999974E-6 : f32
    %21 = vector.broadcast %cst_11 : f32 to vector<2x24x1xf32>
    %22 = arith.addf %18, %21 : vector<2x24x1xf32>
    %23 = math.rsqrt %22 : vector<2x24x1xf32>
    %24 = vector.broadcast %23 : vector<2x24x1xf32> to vector<2x24x128xf32>
    %25 = arith.mulf %20, %24 : vector<2x24x128xf32>
    %26 = vector.shape_cast %5 : vector<128xf32> to vector<1x1x128xf32>
    %27 = vector.broadcast %26 : vector<1x1x128xf32> to vector<2x24x128xf32>
    %28 = arith.mulf %25, %27 : vector<2x24x128xf32>
    %29 = vector.shape_cast %7 : vector<128xf32> to vector<1x1x128xf32>
    %30 = vector.broadcast %29 : vector<1x1x128xf32> to vector<2x24x128xf32>
    %31 = arith.addf %28, %30 : vector<2x24x128xf32>
    %32 = vector.shape_cast %31 : vector<2x24x128xf32> to vector<48x128xf32>
    %33 = arith.truncf %32 : vector<48x128xf32> to vector<48x128xbf16>
    %c0_12 = arith.constant 0 : index
    %c0_13 = arith.constant 0 : index
    %c0_14 = arith.constant 0 : index
    %34 = vector.load %arg5[%c0_12, %c0_13, %c0_14] : memref<1x128x384xbf16, #tpu.memory_space<vmem>>, vector<1x128x384xbf16>
    %35 = vector.shape_cast %34 : vector<1x128x384xbf16> to vector<128x384xbf16>
    %cst_15 = arith.constant dense<0.000000e+00> : vector<48x384xf32>
    %36 = tpu.matmul %33, %35, %cst_15 {dimension_numbers = #tpu.dot_dimension_numbers<[1], [0], [0], [1], [0, 0, 1, 1], [], []>} : vector<48x128xbf16>, vector<128x384xbf16>, vector<48x384xf32> -> vector<48x384xf32>
    %c0_16 = arith.constant 0 : index
    %c0_17 = arith.constant 0 : index
    %c0_18 = arith.constant 0 : index
    %37 = vector.load %arg6[%c0_16, %c0_17, %c0_18] : memref<1x1x384xf32, #tpu.memory_space<vmem>>, vector<1x1x384xf32>
    %38 = vector.shape_cast %37 : vector<1x1x384xf32> to vector<1x384xf32>
    %39 = vector.broadcast %38 : vector<1x384xf32> to vector<48x384xf32>
    %40 = arith.addf %36, %39 : vector<48x384xf32>
    %41 = vector.extract_strided_slice %40 {offsets = [0, 0], sizes = [48, 64], strides = [1, 1]} : vector<48x384xf32> to vector<48x64xf32>
    %42 = vector.extract_strided_slice %40 {offsets = [0, 64], sizes = [48, 64], strides = [1, 1]} : vector<48x384xf32> to vector<48x64xf32>
    %43 = vector.shape_cast %41 : vector<48x64xf32> to vector<1x48x64xf32>
    %44 = vector.shape_cast %42 : vector<48x64xf32> to vector<1x48x64xf32>
    %45 = tpu.concatenate %43, %44 in 0 : vector<1x48x64xf32>, vector<1x48x64xf32> -> vector<2x48x64xf32>
    %46 = vector.shape_cast %45 : vector<2x48x64xf32> to vector<4x24x64xf32>
    %47 = arith.truncf %46 : vector<4x24x64xf32> to vector<4x24x64xbf16>
    %48 = vector.extract_strided_slice %40 {offsets = [0, 128], sizes = [48, 64], strides = [1, 1]} : vector<48x384xf32> to vector<48x64xf32>
    %49 = vector.extract_strided_slice %40 {offsets = [0, 192], sizes = [48, 64], strides = [1, 1]} : vector<48x384xf32> to vector<48x64xf32>
    %50 = vector.shape_cast %48 : vector<48x64xf32> to vector<1x48x64xf32>
    %51 = vector.shape_cast %49 : vector<48x64xf32> to vector<1x48x64xf32>
    %52 = tpu.concatenate %50, %51 in 0 : vector<1x48x64xf32>, vector<1x48x64xf32> -> vector<2x48x64xf32>
    %53 = vector.shape_cast %52 : vector<2x48x64xf32> to vector<4x24x64xf32>
    %54 = arith.truncf %53 : vector<4x24x64xf32> to vector<4x24x64xbf16>
    %55 = vector.extract_strided_slice %40 {offsets = [0, 256], sizes = [48, 64], strides = [1, 1]} : vector<48x384xf32> to vector<48x64xf32>
    %56 = vector.extract_strided_slice %40 {offsets = [0, 320], sizes = [48, 64], strides = [1, 1]} : vector<48x384xf32> to vector<48x64xf32>
    %57 = vector.shape_cast %55 : vector<48x64xf32> to vector<1x48x64xf32>
    %58 = vector.shape_cast %56 : vector<48x64xf32> to vector<1x48x64xf32>
    %59 = tpu.concatenate %57, %58 in 0 : vector<1x48x64xf32>, vector<1x48x64xf32> -> vector<2x48x64xf32>
    %60 = vector.shape_cast %59 : vector<2x48x64xf32> to vector<4x24x64xf32>
    %61 = arith.truncf %60 : vector<4x24x64xf32> to vector<4x24x64xbf16>
    "tpu.trace_start"() <{level = 10 : i32, message = "zqd,zkd->zqk"}> : () -> ()
    %cst_19 = arith.constant dense<0.000000e+00> : vector<4x24x24xf32>
    %62 = tpu.matmul %47, %54, %cst_19 {dimension_numbers = #tpu.dot_dimension_numbers<[2], [2], [1], [1], [0, 0, 0, 1, 1, 1], [0], [0]>} : vector<4x24x64xbf16>, vector<4x24x64xbf16>, vector<4x24x24xf32> -> vector<4x24x24xf32>
    "tpu.trace_stop"() : () -> ()
    %cst_20 = arith.constant dense<0xFF800000> : vector<4x24xf32>
    %63 = vector.multi_reduction <maximumf>, %62, %cst_20 [2] : vector<4x24x24xf32> to vector<4x24xf32>
    %64 = vector.shape_cast %63 : vector<4x24xf32> to vector<4x24x1xf32>
    %65 = vector.broadcast %64 : vector<4x24x1xf32> to vector<4x24x24xf32>
    %66 = arith.subf %62, %65 : vector<4x24x24xf32>
    %67 = math.exp %66 : vector<4x24x24xf32>
    %cst_21 = arith.constant dense<0.000000e+00> : vector<4x24xf32>
    %68 = vector.multi_reduction <add>, %67, %cst_21 [2] : vector<4x24x24xf32> to vector<4x24xf32>
    %69 = vector.shape_cast %68 : vector<4x24xf32> to vector<4x24x1xf32>
    %70 = tpu.reciprocal %69 {approx = true} : vector<4x24x1xf32> -> vector<4x24x1xf32>
    %71 = vector.broadcast %70 : vector<4x24x1xf32> to vector<4x24x24xf32>
    %72 = arith.mulf %67, %71 : vector<4x24x24xf32>
    %73 = arith.truncf %72 : vector<4x24x24xf32> to vector<4x24x24xbf16>
    "tpu.trace_start"() <{level = 10 : i32, message = "zqk,zkd->zqd"}> : () -> ()
    %cst_22 = arith.constant dense<0.000000e+00> : vector<4x24x64xf32>
    %74 = tpu.matmul %73, %61, %cst_22 {dimension_numbers = #tpu.dot_dimension_numbers<[2], [1], [1], [2], [0, 0, 0, 1, 1, 2], [0], [0]>} : vector<4x24x24xbf16>, vector<4x24x64xbf16>, vector<4x24x64xf32> -> vector<4x24x64xf32>
    "tpu.trace_stop"() : () -> ()
    %75 = vector.shape_cast %74 : vector<4x24x64xf32> to vector<2x48x64xf32>
    %76 = vector.extract_strided_slice %75 {offsets = [0, 0, 0], sizes = [1, 48, 64], strides = [1, 1, 1]} : vector<2x48x64xf32> to vector<1x48x64xf32>
    %77 = vector.shape_cast %76 : vector<1x48x64xf32> to vector<48x64xf32>
    %78 = vector.extract_strided_slice %75 {offsets = [1, 0, 0], sizes = [1, 48, 64], strides = [1, 1, 1]} : vector<2x48x64xf32> to vector<1x48x64xf32>
    %79 = vector.shape_cast %78 : vector<1x48x64xf32> to vector<48x64xf32>
    %80 = tpu.concatenate %77, %79 in 1 : vector<48x64xf32>, vector<48x64xf32> -> vector<48x128xf32>
    %81 = arith.truncf %80 : vector<48x128xf32> to vector<48x128xbf16>
    %c0_23 = arith.constant 0 : index
    %c0_24 = arith.constant 0 : index
    %c0_25 = arith.constant 0 : index
    %82 = vector.load %arg7[%c0_23, %c0_24, %c0_25] : memref<1x128x128xbf16, #tpu.memory_space<vmem>>, vector<1x128x128xbf16>
    %83 = vector.shape_cast %82 : vector<1x128x128xbf16> to vector<128x128xbf16>
    %cst_26 = arith.constant dense<0.000000e+00> : vector<48x128xf32>
    %84 = tpu.matmul %81, %83, %cst_26 {dimension_numbers = #tpu.dot_dimension_numbers<[1], [0], [0], [1], [0, 0, 1, 1], [], []>} : vector<48x128xbf16>, vector<128x128xbf16>, vector<48x128xf32> -> vector<48x128xf32>
    %c0_27 = arith.constant 0 : index
    %c4 = arith.constant 4 : index
    %c0_28 = arith.constant 0 : index
    %85 = vector.load %arg11[%c0_27, %c4, %c0_28] : memref<1x8x128xf32, #tpu.memory_space<vmem>>, vector<1x1x128xf32>
    %86 = vector.shape_cast %85 : vector<1x1x128xf32> to vector<128xf32>
    %87 = vector.shape_cast %86 : vector<128xf32> to vector<1x128xf32>
    %88 = vector.broadcast %87 : vector<1x128xf32> to vector<48x128xf32>
    %89 = arith.addf %84, %88 : vector<48x128xf32>
    %90 = vector.shape_cast %89 : vector<48x128xf32> to vector<2x24x128xf32>
    %91 = arith.addf %3, %90 : vector<2x24x128xf32>
    %c0_29 = arith.constant 0 : index
    %c2 = arith.constant 2 : index
    %c0_30 = arith.constant 0 : index
    %92 = vector.load %arg11[%c0_29, %c2, %c0_30] : memref<1x8x128xf32, #tpu.memory_space<vmem>>, vector<1x1x128xf32>
    %93 = vector.shape_cast %92 : vector<1x1x128xf32> to vector<128xf32>
    %c0_31 = arith.constant 0 : index
    %c3 = arith.constant 3 : index
    %c0_32 = arith.constant 0 : index
    %94 = vector.load %arg11[%c0_31, %c3, %c0_32] : memref<1x8x128xf32, #tpu.memory_space<vmem>>, vector<1x1x128xf32>
    %95 = vector.shape_cast %94 : vector<1x1x128xf32> to vector<128xf32>
    %cst_33 = arith.constant dense<0.000000e+00> : vector<2x24xf32>
    %96 = vector.multi_reduction <add>, %91, %cst_33 [2] : vector<2x24x128xf32> to vector<2x24xf32>
    %97 = vector.shape_cast %96 : vector<2x24xf32> to vector<2x24x1xf32>
    %cst_34 = arith.constant 1.280000e+02 : f32
    %98 = vector.broadcast %cst_34 : f32 to vector<2x24x1xf32>
    %99 = arith.divf %97, %98 : vector<2x24x1xf32>
    %100 = vector.broadcast %99 : vector<2x24x1xf32> to vector<2x24x128xf32>
    %101 = arith.subf %91, %100 : vector<2x24x128xf32>
    %102 = arith.mulf %101, %101 : vector<2x24x128xf32>
    %cst_35 = arith.constant dense<0.000000e+00> : vector<2x24xf32>
    %103 = vector.multi_reduction <add>, %102, %cst_35 [2] : vector<2x24x128xf32> to vector<2x24xf32>
    %104 = vector.shape_cast %103 : vector<2x24xf32> to vector<2x24x1xf32>
    %cst_36 = arith.constant 1.280000e+02 : f32
    %105 = vector.broadcast %cst_36 : f32 to vector<2x24x1xf32>
    %106 = arith.divf %104, %105 : vector<2x24x1xf32>
    %107 = vector.broadcast %99 : vector<2x24x1xf32> to vector<2x24x128xf32>
    %108 = arith.subf %91, %107 : vector<2x24x128xf32>
    %cst_37 = arith.constant 9.99999974E-6 : f32
    %109 = vector.broadcast %cst_37 : f32 to vector<2x24x1xf32>
    %110 = arith.addf %106, %109 : vector<2x24x1xf32>
    %111 = math.rsqrt %110 : vector<2x24x1xf32>
    %112 = vector.broadcast %111 : vector<2x24x1xf32> to vector<2x24x128xf32>
    %113 = arith.mulf %108, %112 : vector<2x24x128xf32>
    %114 = vector.shape_cast %93 : vector<128xf32> to vector<1x1x128xf32>
    %115 = vector.broadcast %114 : vector<1x1x128xf32> to vector<2x24x128xf32>
    %116 = arith.mulf %113, %115 : vector<2x24x128xf32>
    %117 = vector.shape_cast %95 : vector<128xf32> to vector<1x1x128xf32>
    %118 = vector.broadcast %117 : vector<1x1x128xf32> to vector<2x24x128xf32>
    %119 = arith.addf %116, %118 : vector<2x24x128xf32>
    %120 = vector.shape_cast %119 : vector<2x24x128xf32> to vector<48x128xf32>
    %121 = arith.truncf %120 : vector<48x128xf32> to vector<48x128xbf16>
    %c0_38 = arith.constant 0 : index
    %c0_39 = arith.constant 0 : index
    %c0_40 = arith.constant 0 : index
    %122 = vector.load %arg8[%c0_38, %c0_39, %c0_40] : memref<1x128x512xbf16, #tpu.memory_space<vmem>>, vector<1x128x512xbf16>
    %123 = vector.shape_cast %122 : vector<1x128x512xbf16> to vector<128x512xbf16>
    %cst_41 = arith.constant dense<0.000000e+00> : vector<48x512xf32>
    %124 = tpu.matmul %121, %123, %cst_41 {dimension_numbers = #tpu.dot_dimension_numbers<[1], [0], [0], [1], [0, 0, 1, 1], [], []>} : vector<48x128xbf16>, vector<128x512xbf16>, vector<48x512xf32> -> vector<48x512xf32>
    %c0_42 = arith.constant 0 : index
    %c0_43 = arith.constant 0 : index
    %c0_44 = arith.constant 0 : index
    %125 = vector.load %arg9[%c0_42, %c0_43, %c0_44] : memref<1x1x512xf32, #tpu.memory_space<vmem>>, vector<1x1x512xf32>
    %126 = vector.shape_cast %125 : vector<1x1x512xf32> to vector<1x512xf32>
    %127 = vector.broadcast %126 : vector<1x512xf32> to vector<48x512xf32>
    %128 = arith.addf %124, %127 : vector<48x512xf32>
    %cst_45 = arith.constant 1.702000e+00 : f32
    %129 = vector.broadcast %cst_45 : f32 to vector<48x512xf32>
    %130 = arith.mulf %129, %128 : vector<48x512xf32>
    %131 = arith.negf %130 : vector<48x512xf32>
    %132 = math.exp %131 : vector<48x512xf32>
    %cst_46 = arith.constant 1.000000e+00 : f32
    %133 = vector.broadcast %cst_46 : f32 to vector<48x512xf32>
    %134 = arith.addf %133, %132 : vector<48x512xf32>
    %135 = arith.divf %133, %134 : vector<48x512xf32>
    %136 = arith.mulf %128, %135 : vector<48x512xf32>
    %137 = arith.truncf %136 : vector<48x512xf32> to vector<48x512xbf16>
    %c0_47 = arith.constant 0 : index
    %c0_48 = arith.constant 0 : index
    %c0_49 = arith.constant 0 : index
    %138 = vector.load %arg10[%c0_47, %c0_48, %c0_49] : memref<1x512x128xbf16, #tpu.memory_space<vmem>>, vector<1x512x128xbf16>
    %139 = vector.shape_cast %138 : vector<1x512x128xbf16> to vector<512x128xbf16>
    %cst_50 = arith.constant dense<0.000000e+00> : vector<48x128xf32>
    %140 = tpu.matmul %137, %139, %cst_50 {dimension_numbers = #tpu.dot_dimension_numbers<[1], [0], [0], [1], [0, 0, 1, 1], [], []>} : vector<48x512xbf16>, vector<512x128xbf16>, vector<48x128xf32> -> vector<48x128xf32>
    %c0_51 = arith.constant 0 : index
    %c5 = arith.constant 5 : index
    %c0_52 = arith.constant 0 : index
    %141 = vector.load %arg11[%c0_51, %c5, %c0_52] : memref<1x8x128xf32, #tpu.memory_space<vmem>>, vector<1x1x128xf32>
    %142 = vector.shape_cast %141 : vector<1x1x128xf32> to vector<128xf32>
    %143 = vector.shape_cast %142 : vector<128xf32> to vector<1x128xf32>
    %144 = vector.broadcast %143 : vector<1x128xf32> to vector<48x128xf32>
    %145 = arith.addf %140, %144 : vector<48x128xf32>
    %146 = vector.shape_cast %145 : vector<48x128xf32> to vector<2x24x128xf32>
    %147 = arith.addf %91, %146 : vector<2x24x128xf32>
    %c0_53 = arith.constant 0 : index
    %c0_54 = arith.constant 0 : index
    %c0_55 = arith.constant 0 : index
    %148 = vector.load %arg17[%c0_53, %c0_54, %c0_55] : memref<2x24x128xf32, #tpu.memory_space<vmem>>, vector<2x24x128xf32>
    tpu.vector_store %arg17[%c0_53, %c0_54, %c0_55], %147 {strides = array<i32>} : memref<2x24x128xf32, #tpu.memory_space<vmem>>, vector<2x24x128xf32>,
    %c1_i32 = arith.constant 1 : i32
    %149 = arith.cmpi eq, %arg1, %c1_i32 : i32
    %150 = arith.extui %149 : i1 to i32
    %c0_i32_56 = arith.constant 0 : i32
    %151 = arith.cmpi ne, %150, %c0_i32_56 : i32
    scf.if %151 {
      %c0_57 = arith.constant 0 : index
      %c0_58 = arith.constant 0 : index
      %c0_59 = arith.constant 0 : index
      %152 = vector.load %arg17[%c0_57, %c0_58, %c0_59] : memref<2x24x128xf32, #tpu.memory_space<vmem>>, vector<2x24x128xf32>
      %153 = vector.extract_strided_slice %152 {offsets = [0, 0, 0], sizes = [2, 1, 128], strides = [1, 1, 1]} : vector<2x24x128xf32> to vector<2x1x128xf32>
      %154 = vector.shape_cast %153 : vector<2x1x128xf32> to vector<2x128xf32>
      %c2_60 = arith.constant 2 : index
      %c0_61 = arith.constant 0 : index
      %155 = vector.load %arg12[%c2_60, %c0_61] : memref<8x128xf32, #tpu.memory_space<vmem>>, vector<1x128xf32>
      %156 = vector.shape_cast %155 : vector<1x128xf32> to vector<128xf32>
      %c3_62 = arith.constant 3 : index
      %c0_63 = arith.constant 0 : index
      %157 = vector.load %arg12[%c3_62, %c0_63] : memref<8x128xf32, #tpu.memory_space<vmem>>, vector<1x128xf32>
      %158 = vector.shape_cast %157 : vector<1x128xf32> to vector<128xf32>
      %cst_64 = arith.constant dense<0.000000e+00> : vector<2xf32>
      %159 = vector.multi_reduction <add>, %154, %cst_64 [1] : vector<2x128xf32> to vector<2xf32>
      %160 = vector.shape_cast %159 : vector<2xf32> to vector<2x1xf32>
      %cst_65 = arith.constant 1.280000e+02 : f32
      %161 = vector.broadcast %cst_65 : f32 to vector<2x1xf32>
      %162 = arith.divf %160, %161 : vector<2x1xf32>
      %163 = vector.broadcast %162 : vector<2x1xf32> to vector<2x128xf32>
      %164 = arith.subf %154, %163 : vector<2x128xf32>
      %165 = arith.mulf %164, %164 : vector<2x128xf32>
      %cst_66 = arith.constant dense<0.000000e+00> : vector<2xf32>
      %166 = vector.multi_reduction <add>, %165, %cst_66 [1] : vector<2x128xf32> to vector<2xf32>
      %167 = vector.shape_cast %166 : vector<2xf32> to vector<2x1xf32>
      %cst_67 = arith.constant 1.280000e+02 : f32
      %168 = vector.broadcast %cst_67 : f32 to vector<2x1xf32>
      %169 = arith.divf %167, %168 : vector<2x1xf32>
      %170 = vector.broadcast %162 : vector<2x1xf32> to vector<2x128xf32>
      %171 = arith.subf %154, %170 : vector<2x128xf32>
      %cst_68 = arith.constant 9.99999974E-6 : f32
      %172 = vector.broadcast %cst_68 : f32 to vector<2x1xf32>
      %173 = arith.addf %169, %172 : vector<2x1xf32>
      %174 = math.rsqrt %173 : vector<2x1xf32>
      %175 = vector.broadcast %174 : vector<2x1xf32> to vector<2x128xf32>
      %176 = arith.mulf %171, %175 : vector<2x128xf32>
      %177 = vector.shape_cast %156 : vector<128xf32> to vector<1x128xf32>
      %178 = vector.broadcast %177 : vector<1x128xf32> to vector<2x128xf32>
      %179 = arith.mulf %176, %178 : vector<2x128xf32>
      %180 = vector.shape_cast %158 : vector<128xf32> to vector<1x128xf32>
      %181 = vector.broadcast %180 : vector<1x128xf32> to vector<2x128xf32>
      %182 = arith.addf %179, %181 : vector<2x128xf32>
      %183 = arith.truncf %182 : vector<2x128xf32> to vector<2x128xbf16>
      %c0_69 = arith.constant 0 : index
      %c0_70 = arith.constant 0 : index
      %184 = vector.load %arg13[%c0_69, %c0_70] : memref<128x128xbf16, #tpu.memory_space<vmem>>, vector<128x128xbf16>
      %cst_71 = arith.constant dense<0.000000e+00> : vector<2x128xf32>
      %185 = tpu.matmul %183, %184, %cst_71 {dimension_numbers = #tpu.dot_dimension_numbers<[1], [0], [0], [1], [0, 0, 1, 1], [], []>} : vector<2x128xbf16>, vector<128x128xbf16>, vector<2x128xf32> -> vector<2x128xf32>
      %186 = arith.mulf %185, %185 : vector<2x128xf32>
      %cst_72 = arith.constant dense<0.000000e+00> : vector<2xf32>
      %187 = vector.multi_reduction <add>, %186, %cst_72 [1] : vector<2x128xf32> to vector<2xf32>
      %188 = vector.shape_cast %187 : vector<2xf32> to vector<2x1xf32>
      %189 = math.rsqrt %188 : vector<2x1xf32>
      %190 = vector.broadcast %189 : vector<2x1xf32> to vector<2x128xf32>
      %191 = arith.mulf %185, %190 : vector<2x128xf32>
      %c0_73 = arith.constant 0 : index
      %c0_74 = arith.constant 0 : index
      %192 = vector.load %arg15[%c0_73, %c0_74] : memref<1x1xf32, #tpu.memory_space<vmem>>, vector<1x1xf32>
      %193 = arith.truncf %191 : vector<2x128xf32> to vector<2x128xbf16>
      %c0_75 = arith.constant 0 : index
      %c0_76 = arith.constant 0 : index
      %194 = vector.load %arg14[%c0_75, %c0_76] : memref<128x16xbf16, #tpu.memory_space<vmem>>, vector<128x16xbf16>
      %cst_77 = arith.constant dense<0.000000e+00> : vector<2x16xf32>
      %195 = tpu.matmul %193, %194, %cst_77 {dimension_numbers = #tpu.dot_dimension_numbers<[1], [0], [0], [1], [0, 0, 1, 1], [], []>} : vector<2x128xbf16>, vector<128x16xbf16>, vector<2x16xf32> -> vector<2x16xf32>
      %196 = vector.broadcast %192 : vector<1x1xf32> to vector<2x16xf32>
      %197 = arith.mulf %196, %195 : vector<2x16xf32>
      %c0_78 = arith.constant 0 : index
      %c0_79 = arith.constant 0 : index
      %198 = vector.load %arg16[%c0_78, %c0_79] : memref<2x16xf32, #tpu.memory_space<vmem>>, vector<2x16xf32>
      tpu.vector_store %arg16[%c0_78, %c0_79], %197 {strides = array<i32>} : memref<2x16xf32, #tpu.memory_space<vmem>>, vector<2x16xf32>,
    } else {
    }
    return
  }
  func.func @transform_0(%arg0: i32, %arg1: i32) -> (i32, i32, i32) {
    %c0_i32 = arith.constant 0 : i32
    %c0_i32_0 = arith.constant 0 : i32
    %c0_i32_1 = arith.constant 0 : i32
    return %arg0, %c0_i32, %c0_i32_0 : i32, i32, i32
  }
  func.func @transform_1(%arg0: i32, %arg1: i32) -> (i32, i32) {
    %c0_i32 = arith.constant 0 : i32
    %c0_i32_0 = arith.constant 0 : i32
    %c0_i32_1 = arith.constant 0 : i32
    return %c0_i32, %c0_i32_0 : i32, i32
  }
  func.func @transform_2(%arg0: i32, %arg1: i32) -> (i32, i32) {
    %c0_i32 = arith.constant 0 : i32
    %c0_i32_0 = arith.constant 0 : i32
    %c0_i32_1 = arith.constant 0 : i32
    return %c0_i32, %c0_i32_0 : i32, i32
  }
  func.func @transform_3(%arg0: i32, %arg1: i32) -> (i32, i32, i32) {
    %c0_i32 = arith.constant 0 : i32
    %c0_i32_0 = arith.constant 0 : i32
    %c0_i32_1 = arith.constant 0 : i32
    return %arg1, %c0_i32, %c0_i32_0 : i32, i32, i32
  }
  func.func @transform_4(%arg0: i32, %arg1: i32) -> (i32, i32, i32) {
    %c0_i32 = arith.constant 0 : i32
    %c0_i32_0 = arith.constant 0 : i32
    %c0_i32_1 = arith.constant 0 : i32
    return %arg1, %c0_i32, %c0_i32_0 : i32, i32, i32
  }
  func.func @transform_5(%arg0: i32, %arg1: i32) -> (i32, i32, i32) {
    %c0_i32 = arith.constant 0 : i32
    %c0_i32_0 = arith.constant 0 : i32
    %c0_i32_1 = arith.constant 0 : i32
    return %arg1, %c0_i32, %c0_i32_0 : i32, i32, i32
  }
  func.func @transform_6(%arg0: i32, %arg1: i32) -> (i32, i32, i32) {
    %c0_i32 = arith.constant 0 : i32
    %c0_i32_0 = arith.constant 0 : i32
    %c0_i32_1 = arith.constant 0 : i32
    return %arg1, %c0_i32, %c0_i32_0 : i32, i32, i32
  }
  func.func @transform_7(%arg0: i32, %arg1: i32) -> (i32, i32, i32) {
    %c0_i32 = arith.constant 0 : i32
    %c0_i32_0 = arith.constant 0 : i32
    %c0_i32_1 = arith.constant 0 : i32
    return %arg1, %c0_i32, %c0_i32_0 : i32, i32, i32
  }
  func.func @transform_8(%arg0: i32, %arg1: i32) -> (i32, i32, i32) {
    %c0_i32 = arith.constant 0 : i32
    %c0_i32_0 = arith.constant 0 : i32
    %c0_i32_1 = arith.constant 0 : i32
    return %arg1, %c0_i32, %c0_i32_0 : i32, i32, i32
  }
  func.func @transform_9(%arg0: i32, %arg1: i32) -> (i32, i32, i32) {
    %c0_i32 = arith.constant 0 : i32
    %c0_i32_0 = arith.constant 0 : i32
    %c0_i32_1 = arith.constant 0 : i32
    return %arg1, %c0_i32, %c0_i32_0 : i32, i32, i32
  }
  func.func @transform_10(%arg0: i32, %arg1: i32) -> (i32, i32) {
    %c0_i32 = arith.constant 0 : i32
    %c0_i32_0 = arith.constant 0 : i32
    %c0_i32_1 = arith.constant 0 : i32
    return %c0_i32, %c0_i32_0 : i32, i32
  }
  func.func @transform_11(%arg0: i32, %arg1: i32) -> (i32, i32) {
    %c0_i32 = arith.constant 0 : i32
    %c0_i32_0 = arith.constant 0 : i32
    %c0_i32_1 = arith.constant 0 : i32
    return %c0_i32, %c0_i32_0 : i32, i32
  }
  func.func @transform_12(%arg0: i32, %arg1: i32) -> (i32, i32) {
    %c0_i32 = arith.constant 0 : i32
    %c0_i32_0 = arith.constant 0 : i32
    %c0_i32_1 = arith.constant 0 : i32
    return %c0_i32, %c0_i32_0 : i32, i32
  }
  func.func @transform_13(%arg0: i32, %arg1: i32) -> (i32, i32) {
    %c0_i32 = arith.constant 0 : i32
    %c0_i32_0 = arith.constant 0 : i32
    %c0_i32_1 = arith.constant 0 : i32
    return %c0_i32, %c0_i32_0 : i32, i32
  }
  func.func @transform_14(%arg0: i32, %arg1: i32) -> (i32, i32) {
    %c0_i32 = arith.constant 0 : i32
    %c0_i32_0 = arith.constant 0 : i32
    return %arg0, %c0_i32 : i32, i32
  }
}

</mosaic_0001>

<llo_original>
// kernel: tpu_custom_call.1
$region0: #{tpu_custom_call.1}
  #allocation0 [shape = 'u32[]', space=smem, size = 0x4, offset = 0x4, fixed_abs, tag = 'smem constant byte address 0x4 - core index']
  #allocation1 [shape = 'u32[144,128]{1,0:T(1,128)}', space=vmem, size = 0x12000, scoped, tag = 'internal scratch']
  #allocation2 [shape = 'f32[2,24,128]{2,1,0:T(8,128)}', space=vmem, size = 0x6000, scoped, tag = 'scratch operand']
  #allocation3 [shape = 'f32[1,1]{1,0:T(1,128)S(1)}', space=vmem, size = 0x200, scoped, tag = 'scoped memory for tpu_custom_call.1']
  %s0 = inlined_call_operand.hbm [shape: bf16[2,16,48], index: 0, kind: input, shape index: {}]
  %s1 = inlined_call_operand.vmem [shape: bf16[48,128], index: 1, kind: input, shape index: {}]
  %s2 = inlined_call_operand.hbm [shape: f32[24,128], index: 2, kind: input, shape index: {}]
  %s3 = inlined_call_operand.hbm [shape: bf16[2,128,384], index: 3, kind: input, shape index: {}]
  %s4 = inlined_call_operand.vmem [shape: f32[2,1,384], index: 4, kind: input, shape index: {}]
  %s5 = inlined_call_operand.hbm [shape: bf16[2,128,128], index: 5, kind: input, shape index: {}]
  %s6 = inlined_call_operand.hbm [shape: bf16[2,128,512], index: 6, kind: input, shape index: {}]
  %s7 = inlined_call_operand.hbm [shape: f32[2,1,512], index: 7, kind: input, shape index: {}]
  %s8 = inlined_call_operand.hbm [shape: bf16[2,512,128], index: 8, kind: input, shape index: {}]
  %s9 = inlined_call_operand.hbm [shape: f32[2,8,128], index: 9, kind: input, shape index: {}]
  %s10 = inlined_call_operand.hbm [shape: f32[8,128], index: 10, kind: input, shape index: {}]
  %s11 = inlined_call_operand.vmem [shape: bf16[128,128], index: 11, kind: input, shape index: {}]
  %s12 = inlined_call_operand.vmem [shape: bf16[128,16], index: 12, kind: input, shape index: {}]
  %s13 = inlined_call_operand.<no memory space> [shape: f32[1,1], index: 13, kind: input, shape index: {}]
  %s14 = inlined_call_operand.hbm [shape: f32[2,16], index: 14, kind: output, shape index: {}]
  %s15 = sld [smem:[#allocation0]]
  $region133: #{tpu_custom_call.1} parent=0
    _
  %s17 = ssub.s32 1, %s15
  %s18 = scalar_select 0, %s17, %s15
  %v19 = vstv %s13
  %20 = vst [vmem:[#allocation3] sm:$0x1] %v19
  $region1: #{tpu_custom_call.1} parent=0
    #allocation4 [shape = 'u8[8192]{0}', space=vmem, size = 0x2000, scoped, tag = 'input window, operand 0, single buffered']
    #allocation5 [shape = 's32[2]{0}', space=sflag, size = 0x8, scoped, tag = 'scoped memory for tpu_custom_call.1']
    #allocation6 [shape = 's32[2]{0}', space=sflag, size = 0x8, scoped, tag = 'scoped memory for tpu_custom_call.1']
    #allocation7 [shape = 'u8[12288]{0}', space=vmem, size = 0x3000, scoped, tag = 'input window, operand 2, single buffered']
    #allocation8 [shape = 's32[1]{0}', space=sflag, size = 0x4, scoped, tag = 'scoped memory for tpu_custom_call.1']
    #allocation9 [shape = 'u8[196608]{0}', space=vmem, size = 0x30000, scoped, tag = 'input window, operand 3']
    #allocation10 [shape = 'u8[65536]{0}', space=vmem, size = 0x10000, scoped, tag = 'input window, operand 5']
    #allocation11 [shape = 'u8[262144]{0}', space=vmem, size = 0x40000, scoped, tag = 'input window, operand 6']
    #allocation12 [shape = 'u8[4096]{0}', space=vmem, size = 0x1000, scoped, tag = 'input window, operand 7']
    #allocation13 [shape = 'u8[262144]{0}', space=vmem, size = 0x40000, scoped, tag = 'input window, operand 8']
    #allocation14 [shape = 'u8[8192]{0}', space=vmem, size = 0x2000, scoped, tag = 'input window, operand 9']
    #allocation15 [shape = 'u8[4096]{0}', space=vmem, size = 0x1000, scoped, tag = 'input window, operand 10, single buffered']
    #allocation16 [shape = 'u8[1024]{0}', space=vmem, size = 0x400, scoped, tag = 'output window, operand 0, single buffered']
    %21 = vsyncpa [#allocation5], 0
    %22 = vsyncpa [#allocation8], 0
    %23 = vsyncpa [#allocation6], 0
    loop: start=0, step=1, limit=4
    $region2: #{tpu_custom_call.1} parent=1 // loop_pre_header
      _
    $region3: #{tpu_custom_call.1} parent=1 // loop_header
      %s25 = sphi 0, %s29
      %p26 = scmp.ge.s32.totalorder %s25, 4
      %s32 = sphi 0, %s44
      %s33 = sphi 0, %s40
      %s34 = sphi 0, %s32
      %s35 = sphi 0, %s33
      %s36 = sphi 0, %s34
      %s37 = sphi 0, %s35
      %s47 = sphi 0, %s49
      %s50 = sphi 0, %s47
      %s51 = sphi 0, %s50
      %s67 = sphi 0, %s51
      %s71 = sphi 0, %s71
      %s73 = sphi 0, %s71
      %s74 = sphi 0, %s73
      %s88 = sphi 0, %s74
      %s92 = sphi 0, %s92
      %s94 = sphi 0, %s92
      %s95 = sphi 0, %s94
      %s109 = sphi 0, %s95
      %s115 = sphi 0, %s117
      %s118 = sphi 0, %s115
      %s119 = sphi 0, %s118
      %s135 = sphi 0, %s119
      %s141 = sphi 0, %s143
      %s144 = sphi 0, %s141
      %s145 = sphi 0, %s144
      %s161 = sphi 0, %s145
      %s167 = sphi 0, %s169
      %s170 = sphi 0, %s167
      %s171 = sphi 0, %s170
      %s187 = sphi 0, %s171
      %s193 = sphi 0, %s195
      %s196 = sphi 0, %s193
      %s197 = sphi 0, %s196
      %s213 = sphi 0, %s197
      %s219 = sphi 0, %s221
      %s222 = sphi 0, %s219
      %s223 = sphi 0, %s222
      %s239 = sphi 0, %s223
      %s245 = sphi 0, %s247
      %s248 = sphi 0, %s245
      %s249 = sphi 0, %s248
      %s265 = sphi 0, %s249
      %s271 = sphi 0, %s273
      %s274 = sphi 0, %s271
      %s275 = sphi 0, %s274
      %s291 = sphi 0, %s275
      %s295 = sphi 0, %s295
      %s297 = sphi 0, %s295
      %s298 = sphi 0, %s297
      %s312 = sphi 0, %s298
      %s316 = sphi 0, %s316
      %s318 = sphi 0, %s316
      %s319 = sphi 0, %s318
      %s333 = sphi 0, %s319
      %s337 = sphi 0, %s337
      %s339 = sphi 0, %s337
      %s340 = sphi 0, %s339
      %s354 = sphi 0, %s340
      %s358 = sphi 0, %s358
      %s360 = sphi 0, %s358
      %s361 = sphi 0, %s360
      %s375 = sphi 0, %s361
      %s381 = sphi 0, %s383
      %s384 = sphi 0, %s381
      %s385 = sphi 0, %s384
      %s401 = sphi 0, %s385
    $region4: #{tpu_custom_call.1} parent=1 // loop_header_branch
      %28 = sbr.rel (%p26) target = $region8
    $region5: #{tpu_custom_call.1} parent=1 // loop_body
      %s30 = ssub.s32 %s25, 1
      %s31 = ssub.s32 %s25, 2
      %s38 = sadd.s32 1, %s33
      %p39 = scmp.ge.s32.totalorder %s38, 2
      %s40 = scalar_select %p39, 0, %s38
      %s41 = sadd.s32 1, %s32
      %s42 = scalar_select %p39, %s41, %s32
      %p43 = scmp.ge.s32.totalorder %s42, 1
      %s44 = scalar_select %p43, 0, %s42
      %s45 = ssub.s32 %s32, %s44
      %p46 = scmp.eq.s32.totalorder %s45, 0
      %s48 = sadd.s32 %s47, 1
      %s49 = scalar_select %p46, %s47, %s48
      %p52 = pneg %p46
      %p53 = scmp.eq.s32.totalorder %s25, 1
      %p54 = por %p52, %p53
      %p55 = scmp.ne.s32.totalorder %s47, %s50
      %p56 = scmp.eq.s32.totalorder %s25, 0
      %p57 = por %p55, %p56
      %p58 = scmp.ne.s32.totalorder %s47, %s50
      %p59 = scmp.eq.s32.totalorder %s30, 1
      %p60 = por %p58, %p59
      %p61 = scmp.ne.s32.totalorder %s50, %s51
      %p62 = scmp.eq.s32.totalorder %s30, 0
      %p63 = por %p61, %p62
      %p64 = scmp.ne.s32.totalorder %s50, %s51
      %p65 = scmp.eq.s32.totalorder %s31, 1
      %p66 = por %p64, %p65
      %p68 = scmp.ne.s32.totalorder %s51, %s67
      %p69 = scmp.eq.s32.totalorder %s31, 0
      %p70 = por %p68, %p69
      %s72 = sadd.s32 %s71, 1
      %p75 = scmp.eq.s32.totalorder %s25, 1
      %p76 = scmp.ne.s32.totalorder %s71, %s73
      %p77 = scmp.eq.s32.totalorder %s25, 0
      %p78 = por %p76, %p77
      %p79 = scmp.ne.s32.totalorder %s71, %s73
      %p80 = scmp.eq.s32.totalorder %s30, 1
      %p81 = por %p79, %p80
      %p82 = scmp.ne.s32.totalorder %s73, %s74
      %p83 = scmp.eq.s32.totalorder %s30, 0
      %p84 = por %p82, %p83
      %p85 = scmp.ne.s32.totalorder %s73, %s74
      %p86 = scmp.eq.s32.totalorder %s31, 1
      %p87 = por %p85, %p86
      %p89 = scmp.ne.s32.totalorder %s74, %s88
      %p90 = scmp.eq.s32.totalorder %s31, 0
      %p91 = por %p89, %p90
      %s93 = sadd.s32 %s92, 1
      %p96 = scmp.eq.s32.totalorder %s25, 1
      %p97 = scmp.ne.s32.totalorder %s92, %s94
      %p98 = scmp.eq.s32.totalorder %s25, 0
      %p99 = por %p97, %p98
      %p100 = scmp.ne.s32.totalorder %s92, %s94
      %p101 = scmp.eq.s32.totalorder %s30, 1
      %p102 = por %p100, %p101
      %p103 = scmp.ne.s32.totalorder %s94, %s95
      %p104 = scmp.eq.s32.totalorder %s30, 0
      %p105 = por %p103, %p104
      %p106 = scmp.ne.s32.totalorder %s94, %s95
      %p107 = scmp.eq.s32.totalorder %s31, 1
      %p108 = por %p106, %p107
      %p110 = scmp.ne.s32.totalorder %s95, %s109
      %p111 = scmp.eq.s32.totalorder %s31, 0
      %p112 = por %p110, %p111
      %s113 = ssub.s32 %s33, %s40
      %p114 = scmp.eq.s32.totalorder %s113, 0
      %s116 = sadd.s32 %s115, 1
      %s117 = scalar_select %p114, %s115, %s116
      %p120 = pneg %p114
      %p121 = scmp.eq.s32.totalorder %s25, 1
      %p122 = por %p120, %p121
      %p123 = scmp.ne.s32.totalorder %s115, %s118
      %p124 = scmp.eq.s32.totalorder %s25, 0
      %p125 = por %p123, %p124
      %p126 = scmp.ne.s32.totalorder %s115, %s118
      %p127 = scmp.eq.s32.totalorder %s30, 1
      %p128 = por %p126, %p127
      %p129 = scmp.ne.s32.totalorder %s118, %s119
      %p130 = scmp.eq.s32.totalorder %s30, 0
      %p131 = por %p129, %p130
      %p132 = scmp.ne.s32.totalorder %s118, %s119
      %p133 = scmp.eq.s32.totalorder %s31, 1
      %p134 = por %p132, %p133
      %p136 = scmp.ne.s32.totalorder %s119, %s135
      %p137 = scmp.eq.s32.totalorder %s31, 0
      %p138 = por %p136, %p137
      %s139 = ssub.s32 %s33, %s40
      %p140 = scmp.eq.s32.totalorder %s139, 0
      %s142 = sadd.s32 %s141, 1
      %s143 = scalar_select %p140, %s141, %s142
      %p146 = pneg %p140
      %p147 = scmp.eq.s32.totalorder %s25, 1
      %p148 = por %p146, %p147
      %p149 = scmp.ne.s32.totalorder %s141, %s144
      %p150 = scmp.eq.s32.totalorder %s25, 0
      %p151 = por %p149, %p150
      %p152 = scmp.ne.s32.totalorder %s141, %s144
      %p153 = scmp.eq.s32.totalorder %s30, 1
      %p154 = por %p152, %p153
      %p155 = scmp.ne.s32.totalorder %s144, %s145
      %p156 = scmp.eq.s32.totalorder %s30, 0
      %p157 = por %p155, %p156
      %p158 = scmp.ne.s32.totalorder %s144, %s145
      %p159 = scmp.eq.s32.totalorder %s31, 1
      %p160 = por %p158, %p159
      %p162 = scmp.ne.s32.totalorder %s145, %s161
      %p163 = scmp.eq.s32.totalorder %s31, 0
      %p164 = por %p162, %p163
      %s165 = ssub.s32 %s33, %s40
      %p166 = scmp.eq.s32.totalorder %s165, 0
      %s168 = sadd.s32 %s167, 1
      %s169 = scalar_select %p166, %s167, %s168
      %p172 = pneg %p166
      %p173 = scmp.eq.s32.totalorder %s25, 1
      %p174 = por %p172, %p173
      %p175 = scmp.ne.s32.totalorder %s167, %s170
      %p176 = scmp.eq.s32.totalorder %s25, 0
      %p177 = por %p175, %p176
      %p178 = scmp.ne.s32.totalorder %s167, %s170
      %p179 = scmp.eq.s32.totalorder %s30, 1
      %p180 = por %p178, %p179
      %p181 = scmp.ne.s32.totalorder %s170, %s171
      %p182 = scmp.eq.s32.totalorder %s30, 0
      %p183 = por %p181, %p182
      %p184 = scmp.ne.s32.totalorder %s170, %s171
      %p185 = scmp.eq.s32.totalorder %s31, 1
      %p186 = por %p184, %p185
      %p188 = scmp.ne.s32.totalorder %s171, %s187
      %p189 = scmp.eq.s32.totalorder %s31, 0
      %p190 = por %p188, %p189
      %s191 = ssub.s32 %s33, %s40
      %p192 = scmp.eq.s32.totalorder %s191, 0
      %s194 = sadd.s32 %s193, 1
      %s195 = scalar_select %p192, %s193, %s194
      %p198 = pneg %p192
      %p199 = scmp.eq.s32.totalorder %s25, 1
      %p200 = por %p198, %p199
      %p201 = scmp.ne.s32.totalorder %s193, %s196
      %p202 = scmp.eq.s32.totalorder %s25, 0
      %p203 = por %p201, %p202
      %p204 = scmp.ne.s32.totalorder %s193, %s196
      %p205 = scmp.eq.s32.totalorder %s30, 1
      %p206 = por %p204, %p205
      %p207 = scmp.ne.s32.totalorder %s196, %s197
      %p208 = scmp.eq.s32.totalorder %s30, 0
      %p209 = por %p207, %p208
      %p210 = scmp.ne.s32.totalorder %s196, %s197
      %p211 = scmp.eq.s32.totalorder %s31, 1
      %p212 = por %p210, %p211
      %p214 = scmp.ne.s32.totalorder %s197, %s213
      %p215 = scmp.eq.s32.totalorder %s31, 0
      %p216 = por %p214, %p215
      %s217 = ssub.s32 %s33, %s40
      %p218 = scmp.eq.s32.totalorder %s217, 0
      %s220 = sadd.s32 %s219, 1
      %s221 = scalar_select %p218, %s219, %s220
      %p224 = pneg %p218
      %p225 = scmp.eq.s32.totalorder %s25, 1
      %p226 = por %p224, %p225
      %p227 = scmp.ne.s32.totalorder %s219, %s222
      %p228 = scmp.eq.s32.totalorder %s25, 0
      %p229 = por %p227, %p228
      %p230 = scmp.ne.s32.totalorder %s219, %s222
      %p231 = scmp.eq.s32.totalorder %s30, 1
      %p232 = por %p230, %p231
      %p233 = scmp.ne.s32.totalorder %s222, %s223
      %p234 = scmp.eq.s32.totalorder %s30, 0
      %p235 = por %p233, %p234
      %p236 = scmp.ne.s32.totalorder %s222, %s223
      %p237 = scmp.eq.s32.totalorder %s31, 1
      %p238 = por %p236, %p237
      %p240 = scmp.ne.s32.totalorder %s223, %s239
      %p241 = scmp.eq.s32.totalorder %s31, 0
      %p242 = por %p240, %p241
      %s243 = ssub.s32 %s33, %s40
      %p244 = scmp.eq.s32.totalorder %s243, 0
      %s246 = sadd.s32 %s245, 1
      %s247 = scalar_select %p244, %s245, %s246
      %p250 = pneg %p244
      %p251 = scmp.eq.s32.totalorder %s25, 1
      %p252 = por %p250, %p251
      %p253 = scmp.ne.s32.totalorder %s245, %s248
      %p254 = scmp.eq.s32.totalorder %s25, 0
      %p255 = por %p253, %p254
      %p256 = scmp.ne.s32.totalorder %s245, %s248
      %p257 = scmp.eq.s32.totalorder %s30, 1
      %p258 = por %p256, %p257
      %p259 = scmp.ne.s32.totalorder %s248, %s249
      %p260 = scmp.eq.s32.totalorder %s30, 0
      %p261 = por %p259, %p260
      %p262 = scmp.ne.s32.totalorder %s248, %s249
      %p263 = scmp.eq.s32.totalorder %s31, 1
      %p264 = por %p262, %p263
      %p266 = scmp.ne.s32.totalorder %s249, %s265
      %p267 = scmp.eq.s32.totalorder %s31, 0
      %p268 = por %p266, %p267
      %s269 = ssub.s32 %s33, %s40
      %p270 = scmp.eq.s32.totalorder %s269, 0
      %s272 = sadd.s32 %s271, 1
      %s273 = scalar_select %p270, %s271, %s272
      %p276 = pneg %p270
      %p277 = scmp.eq.s32.totalorder %s25, 1
      %p278 = por %p276, %p277
      %p279 = scmp.ne.s32.totalorder %s271, %s274
      %p280 = scmp.eq.s32.totalorder %s25, 0
      %p281 = por %p279, %p280
      %p282 = scmp.ne.s32.totalorder %s271, %s274
      %p283 = scmp.eq.s32.totalorder %s30, 1
      %p284 = por %p282, %p283
      %p285 = scmp.ne.s32.totalorder %s274, %s275
      %p286 = scmp.eq.s32.totalorder %s30, 0
      %p287 = por %p285, %p286
      %p288 = scmp.ne.s32.totalorder %s274, %s275
      %p289 = scmp.eq.s32.totalorder %s31, 1
      %p290 = por %p288, %p289
      %p292 = scmp.ne.s32.totalorder %s275, %s291
      %p293 = scmp.eq.s32.totalorder %s31, 0
      %p294 = por %p292, %p293
      %s296 = sadd.s32 %s295, 1
      %p299 = scmp.eq.s32.totalorder %s25, 1
      %p300 = scmp.ne.s32.totalorder %s295, %s297
      %p301 = scmp.eq.s32.totalorder %s25, 0
      %p302 = por %p300, %p301
      %p303 = scmp.ne.s32.totalorder %s295, %s297
      %p304 = scmp.eq.s32.totalorder %s30, 1
      %p305 = por %p303, %p304
      %p306 = scmp.ne.s32.totalorder %s297, %s298
      %p307 = scmp.eq.s32.totalorder %s30, 0
      %p308 = por %p306, %p307
      %p309 = scmp.ne.s32.totalorder %s297, %s298
      %p310 = scmp.eq.s32.totalorder %s31, 1
      %p311 = por %p309, %p310
      %p313 = scmp.ne.s32.totalorder %s298, %s312
      %p314 = scmp.eq.s32.totalorder %s31, 0
      %p315 = por %p313, %p314
      %s317 = sadd.s32 %s316, 1
      %p320 = scmp.eq.s32.totalorder %s25, 1
      %p321 = scmp.ne.s32.totalorder %s316, %s318
      %p322 = scmp.eq.s32.totalorder %s25, 0
      %p323 = por %p321, %p322
      %p324 = scmp.ne.s32.totalorder %s316, %s318
      %p325 = scmp.eq.s32.totalorder %s30, 1
      %p326 = por %p324, %p325
      %p327 = scmp.ne.s32.totalorder %s318, %s319
      %p328 = scmp.eq.s32.totalorder %s30, 0
      %p329 = por %p327, %p328
      %p330 = scmp.ne.s32.totalorder %s318, %s319
      %p331 = scmp.eq.s32.totalorder %s31, 1
      %p332 = por %p330, %p331
      %p334 = scmp.ne.s32.totalorder %s319, %s333
      %p335 = scmp.eq.s32.totalorder %s31, 0
      %p336 = por %p334, %p335
      %s338 = sadd.s32 %s337, 1
      %p341 = scmp.eq.s32.totalorder %s25, 1
      %p342 = scmp.ne.s32.totalorder %s337, %s339
      %p343 = scmp.eq.s32.totalorder %s25, 0
      %p344 = por %p342, %p343
      %p345 = scmp.ne.s32.totalorder %s337, %s339
      %p346 = scmp.eq.s32.totalorder %s30, 1
      %p347 = por %p345, %p346
      %p348 = scmp.ne.s32.totalorder %s339, %s340
      %p349 = scmp.eq.s32.totalorder %s30, 0
      %p350 = por %p348, %p349
      %p351 = scmp.ne.s32.totalorder %s339, %s340
      %p352 = scmp.eq.s32.totalorder %s31, 1
      %p353 = por %p351, %p352
      %p355 = scmp.ne.s32.totalorder %s340, %s354
      %p356 = scmp.eq.s32.totalorder %s31, 0
      %p357 = por %p355, %p356
      %s359 = sadd.s32 %s358, 1
      %p362 = scmp.eq.s32.totalorder %s25, 1
      %p363 = scmp.ne.s32.totalorder %s358, %s360
      %p364 = scmp.eq.s32.totalorder %s25, 0
      %p365 = por %p363, %p364
      %p366 = scmp.ne.s32.totalorder %s358, %s360
      %p367 = scmp.eq.s32.totalorder %s30, 1
      %p368 = por %p366, %p367
      %p369 = scmp.ne.s32.totalorder %s360, %s361
      %p370 = scmp.eq.s32.totalorder %s30, 0
      %p371 = por %p369, %p370
      %p372 = scmp.ne.s32.totalorder %s360, %s361
      %p373 = scmp.eq.s32.totalorder %s31, 1
      %p374 = por %p372, %p373
      %p376 = scmp.ne.s32.totalorder %s361, %s375
      %p377 = scmp.eq.s32.totalorder %s31, 0
      %p378 = por %p376, %p377
      %s379 = ssub.s32 %s32, %s44
      %p380 = scmp.eq.s32.totalorder %s379, 0
      %s382 = sadd.s32 %s381, 1
      %s383 = scalar_select %p380, %s381, %s382
      %p386 = pneg %p380
      %p387 = scmp.eq.s32.totalorder %s25, 1
      %p388 = por %p386, %p387
      %p389 = scmp.ne.s32.totalorder %s381, %s384
      %p390 = scmp.eq.s32.totalorder %s25, 0
      %p391 = por %p389, %p390
      %p392 = scmp.ne.s32.totalorder %s381, %s384
      %p393 = scmp.eq.s32.totalorder %s30, 1
      %p394 = por %p392, %p393
      %p395 = scmp.ne.s32.totalorder %s384, %s385
      %p396 = scmp.eq.s32.totalorder %s30, 0
      %p397 = por %p395, %p396
      %p398 = scmp.ne.s32.totalorder %s384, %s385
      %p399 = scmp.eq.s32.totalorder %s31, 1
      %p400 = por %p398, %p399
      %p402 = scmp.ne.s32.totalorder %s385, %s401
      %p403 = scmp.eq.s32.totalorder %s31, 0
      %p404 = por %p402, %p403
      %p405 = scmp.le.s32.totalorder 1, %s25
      %p406 = scmp.lt.s32.totalorder %s25, 3
      %p407 = pnand %p405, %p406
      %p408 = pneg %p407
      // Predicated region
      $region9: #{tpu_custom_call.1} parent=5 // pred_check
        _
      $region10: #{tpu_custom_call.1} parent=5 // pred_check_branch
        %410 = sbr.rel (%p407) target = $region12
      $region11: #{tpu_custom_call.1} parent=5 // pred_region
        %s411 = ssub.s32 %s25, 1
        // Predicated region
        $region13: #{tpu_custom_call.1} parent=11 // pred_check
          %p412 = pneg %p63
        $region14: #{tpu_custom_call.1} parent=11 // pred_check_branch
          %414 = sbr.rel (%p412) target = $region16
        $region15: #{tpu_custom_call.1} parent=11 // pred_region
          %s415 = smul.u32 2, %s34
          %s417 = ssub.s32 256, 256
          %418 = vsyncadd [#allocation5], %s417
          %s419 = smul.addr %s415, 2
          %s420 = smul.addr %s419, 64
          %s421 = scalar_lea.hbm %s0, %s420
          %s422 = sshll.u32 [#allocation4], 4
          %s423 = int_to_ptr.vmem [resolvable:$true] %s422
          %428 = dma.hbm_to_vmem [thread:$0]  %s421, 256, %s423, [#allocation5], 64, 64, 4
        $region16: #{tpu_custom_call.1} parent=11 // pred_fallthru
          _
        // Predicated region
        $region17: #{tpu_custom_call.1} parent=11 // pred_check
          %p429 = pneg %p84
        $region18: #{tpu_custom_call.1} parent=11 // pred_check_branch
          %431 = sbr.rel (%p429) target = $region20
        $region19: #{tpu_custom_call.1} parent=11 // pred_region
          _
        $region20: #{tpu_custom_call.1} parent=11 // pred_fallthru
          _
        // Predicated region
        $region21: #{tpu_custom_call.1} parent=11 // pred_check
          %p432 = pneg %p105
        $region22: #{tpu_custom_call.1} parent=11 // pred_check_branch
          %434 = sbr.rel (%p432) target = $region24
        $region23: #{tpu_custom_call.1} parent=11 // pred_region
          %s436 = ssub.s32 384, 384
          %437 = vsyncadd [#allocation8], %s436
          %s438 = sshll.u32 [#allocation7], 4
          %s439 = int_to_ptr.vmem [resolvable:$true] %s438
          %444 = dma.hbm_to_vmem [thread:$0]  %s2, 384, %s439, [#allocation8], 128, 128, 8
        $region24: #{tpu_custom_call.1} parent=11 // pred_fallthru
          _
        // Predicated region
        $region25: #{tpu_custom_call.1} parent=11 // pred_check
          %p445 = pneg %p308
        $region26: #{tpu_custom_call.1} parent=11 // pred_check_branch
          %447 = sbr.rel (%p445) target = $region28
        $region27: #{tpu_custom_call.1} parent=11 // pred_region
          %s449 = ssub.s32 128, 128
          %450 = vsyncadd [#allocation8], %s449
          %s452 = sshll.u32 [#allocation15], 4
          %s453 = int_to_ptr.vmem [resolvable:$true] %s452
          %455 = dma.hbm_to_vmem [thread:$0]  %s10, 128, %s453, [#allocation8]
        $region28: #{tpu_custom_call.1} parent=11 // pred_fallthru
          _
        // Predicated region
        $region29: #{tpu_custom_call.1} parent=11 // pred_check
          %p456 = pneg %p329
        $region30: #{tpu_custom_call.1} parent=11 // pred_check_branch
          %458 = sbr.rel (%p456) target = $region32
        $region31: #{tpu_custom_call.1} parent=11 // pred_region
          _
        $region32: #{tpu_custom_call.1} parent=11 // pred_fallthru
          _
        // Predicated region
        $region33: #{tpu_custom_call.1} parent=11 // pred_check
          %p459 = pneg %p350
        $region34: #{tpu_custom_call.1} parent=11 // pred_check_branch
          %461 = sbr.rel (%p459) target = $region36
        $region35: #{tpu_custom_call.1} parent=11 // pred_region
          _
        $region36: #{tpu_custom_call.1} parent=11 // pred_fallthru
          _
        // Predicated region
        $region37: #{tpu_custom_call.1} parent=11 // pred_check
          %p462 = pneg %p371
        $region38: #{tpu_custom_call.1} parent=11 // pred_check_branch
          %464 = sbr.rel (%p462) target = $region40
        $region39: #{tpu_custom_call.1} parent=11 // pred_region
          _
        $region40: #{tpu_custom_call.1} parent=11 // pred_fallthru
          _
      $region12: #{tpu_custom_call.1} parent=5 // pred_fallthru
        _
      %p465 = scmp.lt.s32.totalorder %s25, 2
      // Predicated region
      $region41: #{tpu_custom_call.1} parent=5 // pred_check
        %p466 = pneg %p465
      $region42: #{tpu_custom_call.1} parent=5 // pred_check_branch
        %468 = sbr.rel (%p466) target = $region44
      $region43: #{tpu_custom_call.1} parent=5 // pred_region
        // Predicated region
        $region45: #{tpu_custom_call.1} parent=43 // pred_check
          %p469 = pneg %p125
        $region46: #{tpu_custom_call.1} parent=43 // pred_check_branch
          %471 = sbr.rel (%p469) target = $region48
        $region47: #{tpu_custom_call.1} parent=43 // pred_region
          %s472 = sand.u32 %s25, 1
          %s473 = scalar_lea.sflag [#allocation5], %s472
          %s474 = sand.u32 %s115, 1
          %s475 = smul.addr %s474, 192
          %s476 = scalar_lea.vmem [#allocation9], %s475
          %s478 = ssub.s32 3072, 3072
          %479 = vsyncadd %s473, %s478
          %s480 = smul.addr %s33, 48
          %s481 = smul.addr %s480, 64
          %s482 = scalar_lea.hbm %s3, %s481
          %s483 = sshll.u32 %s476, 4
          %s484 = int_to_ptr.vmem [resolvable:$true] %s483
          %489 = dma.hbm_to_vmem [thread:$0]  %s482, 3072, %s484, %s473, 192, 192, 12
        $region48: #{tpu_custom_call.1} parent=43 // pred_fallthru
          _
        // Predicated region
        $region49: #{tpu_custom_call.1} parent=43 // pred_check
          %p490 = pneg %p151
        $region50: #{tpu_custom_call.1} parent=43 // pred_check_branch
          %492 = sbr.rel (%p490) target = $region52
        $region51: #{tpu_custom_call.1} parent=43 // pred_region
          %p493 = scmp.lt.s32.totalorder %s33, 1
          %s494 = scalar_select %p493, %s33, 1
          %s495 = smul.addr %s494, 3
          %s496 = scalar_lea.vmem %s4, %s495
        $region52: #{tpu_custom_call.1} parent=43 // pred_fallthru
          _
        // Predicated region
        $region53: #{tpu_custom_call.1} parent=43 // pred_check
          %p497 = pneg %p177
        $region54: #{tpu_custom_call.1} parent=43 // pred_check_branch
          %499 = sbr.rel (%p497) target = $region56
        $region55: #{tpu_custom_call.1} parent=43 // pred_region
          %s500 = sand.u32 %s25, 1
          %s501 = scalar_lea.sflag [#allocation5], %s500
          %s502 = sand.u32 %s167, 1
          %s503 = smul.addr %s502, 64
          %s504 = scalar_lea.vmem [#allocation10], %s503
          %s506 = ssub.s32 1024, 1024
          %507 = vsyncadd %s501, %s506
          %s508 = smul.addr %s33, 16
          %s509 = smul.addr %s508, 64
          %s510 = scalar_lea.hbm %s5, %s509
          %s511 = sshll.u32 %s504, 4
          %s512 = int_to_ptr.vmem [resolvable:$true] %s511
          %517 = dma.hbm_to_vmem [thread:$0]  %s510, 1024, %s512, %s501, 64, 64, 4
        $region56: #{tpu_custom_call.1} parent=43 // pred_fallthru
          _
        // Predicated region
        $region57: #{tpu_custom_call.1} parent=43 // pred_check
          %p518 = pneg %p203
        $region58: #{tpu_custom_call.1} parent=43 // pred_check_branch
          %520 = sbr.rel (%p518) target = $region60
        $region59: #{tpu_custom_call.1} parent=43 // pred_region
          %s521 = sand.u32 %s25, 1
          %s522 = scalar_lea.sflag [#allocation5], %s521
          %s523 = sand.u32 %s193, 1
          %s524 = smul.addr %s523, 256
          %s525 = scalar_lea.vmem [#allocation11], %s524
          %s527 = ssub.s32 4096, 4096
          %528 = vsyncadd %s522, %s527
          %s529 = smul.addr %s33, 64
          %s530 = smul.addr %s529, 64
          %s531 = scalar_lea.hbm %s6, %s530
          %s532 = sshll.u32 %s525, 4
          %s533 = int_to_ptr.vmem [resolvable:$true] %s532
          %538 = dma.hbm_to_vmem [thread:$0]  %s531, 4096, %s533, %s522, 256, 256, 16
        $region60: #{tpu_custom_call.1} parent=43 // pred_fallthru
          _
        // Predicated region
        $region61: #{tpu_custom_call.1} parent=43 // pred_check
          %p539 = pneg %p229
        $region62: #{tpu_custom_call.1} parent=43 // pred_check_branch
          %541 = sbr.rel (%p539) target = $region64
        $region63: #{tpu_custom_call.1} parent=43 // pred_region
          %s542 = sand.u32 %s25, 1
          %s543 = scalar_lea.sflag [#allocation5], %s542
          %s544 = sand.u32 %s219, 1
          %s545 = smul.addr %s544, 4
          %s546 = scalar_lea.vmem [#allocation12], %s545
          %s548 = ssub.s32 64, 64
          %549 = vsyncadd %s543, %s548
          %s550 = smul.addr %s33, 4
          %s551 = smul.addr %s550, 16
          %s552 = scalar_lea.hbm %s7, %s551
          %s554 = sshll.u32 %s546, 4
          %s555 = int_to_ptr.vmem [resolvable:$true] %s554
          %557 = dma.hbm_to_vmem [thread:$0]  %s552, 64, %s555, %s543
        $region64: #{tpu_custom_call.1} parent=43 // pred_fallthru
          _
        // Predicated region
        $region65: #{tpu_custom_call.1} parent=43 // pred_check
          %p558 = pneg %p255
        $region66: #{tpu_custom_call.1} parent=43 // pred_check_branch
          %560 = sbr.rel (%p558) target = $region68
        $region67: #{tpu_custom_call.1} parent=43 // pred_region
          %s561 = sand.u32 %s25, 1
          %s562 = scalar_lea.sflag [#allocation5], %s561
          %s563 = sand.u32 %s245, 1
          %s564 = smul.addr %s563, 256
          %s565 = scalar_lea.vmem [#allocation13], %s564
          %s567 = ssub.s32 4096, 4096
          %568 = vsyncadd %s562, %s567
          %s569 = smul.addr %s33, 64
          %s570 = smul.addr %s569, 64
          %s571 = scalar_lea.hbm %s8, %s570
          %s572 = sshll.u32 %s565, 4
          %s573 = int_to_ptr.vmem [resolvable:$true] %s572
          %578 = dma.hbm_to_vmem [thread:$0]  %s571, 4096, %s573, %s562, 64, 64, 4
        $region68: #{tpu_custom_call.1} parent=43 // pred_fallthru
          _
        // Predicated region
        $region69: #{tpu_custom_call.1} parent=43 // pred_check
          %p579 = pneg %p281
        $region70: #{tpu_custom_call.1} parent=43 // pred_check_branch
          %581 = sbr.rel (%p579) target = $region72
        $region71: #{tpu_custom_call.1} parent=43 // pred_region
          %s582 = sand.u32 %s25, 1
          %s583 = scalar_lea.sflag [#allocation5], %s582
          %s584 = sand.u32 %s271, 1
          %s585 = smul.addr %s584, 8
          %s586 = scalar_lea.vmem [#allocation14], %s585
          %s588 = ssub.s32 128, 128
          %589 = vsyncadd %s583, %s588
          %s590 = smul.addr %s33, 128
          %s591 = scalar_lea.hbm %s9, %s590
          %s593 = sshll.u32 %s586, 4
          %s594 = int_to_ptr.vmem [resolvable:$true] %s593
          %596 = dma.hbm_to_vmem [thread:$0]  %s591, 128, %s594, %s583
        $region72: #{tpu_custom_call.1} parent=43 // pred_fallthru
          _
      $region44: #{tpu_custom_call.1} parent=5 // pred_fallthru
        _
      %p597 = scmp.le.s32.totalorder 1, %s25
      %p598 = scmp.lt.s32.totalorder %s25, 3
      %p599 = pnand %p597, %p598
      %p600 = pneg %p599
      // Predicated region
      $region73: #{tpu_custom_call.1} parent=5 // pred_check
        _
      $region74: #{tpu_custom_call.1} parent=5 // pred_check_branch
        %602 = sbr.rel (%p599) target = $region76
      $region75: #{tpu_custom_call.1} parent=5 // pred_region
        %s603 = ssub.s32 %s25, 1
        // Predicated region
        $region77: #{tpu_custom_call.1} parent=75 // pred_check
          %p604 = pneg %p63
        $region78: #{tpu_custom_call.1} parent=75 // pred_check_branch
          %606 = sbr.rel (%p604) target = $region80
        $region79: #{tpu_custom_call.1} parent=75 // pred_region
          %607 = dma.done [#allocation5], 256
        $region80: #{tpu_custom_call.1} parent=75 // pred_fallthru
          _
        // Predicated region
        $region81: #{tpu_custom_call.1} parent=75 // pred_check
          %p608 = pneg %p105
        $region82: #{tpu_custom_call.1} parent=75 // pred_check_branch
          %610 = sbr.rel (%p608) target = $region84
        $region83: #{tpu_custom_call.1} parent=75 // pred_region
          %611 = dma.done [#allocation8], 384
        $region84: #{tpu_custom_call.1} parent=75 // pred_fallthru
          _
        %s612 = sand.u32 %s30, 1
        %s613 = scalar_lea.sflag [#allocation5], %s612
        %s614 = sand.u32 %s118, 1
        %s615 = smul.addr %s614, 192
        %s616 = scalar_lea.vmem [#allocation9], %s615
        // Predicated region
        $region85: #{tpu_custom_call.1} parent=75 // pred_check
          %p617 = pneg %p131
        $region86: #{tpu_custom_call.1} parent=75 // pred_check_branch
          %619 = sbr.rel (%p617) target = $region88
        $region87: #{tpu_custom_call.1} parent=75 // pred_region
          %620 = dma.done %s613, 3072
        $region88: #{tpu_custom_call.1} parent=75 // pred_fallthru
          _
        %s621 = sand.u32 %s30, 1
        %s622 = scalar_lea.sflag [#allocation5], %s621
        %s623 = sand.u32 %s170, 1
        %s624 = smul.addr %s623, 64
        %s625 = scalar_lea.vmem [#allocation10], %s624
        // Predicated region
        $region89: #{tpu_custom_call.1} parent=75 // pred_check
          %p626 = pneg %p183
        $region90: #{tpu_custom_call.1} parent=75 // pred_check_branch
          %628 = sbr.rel (%p626) target = $region92
        $region91: #{tpu_custom_call.1} parent=75 // pred_region
          %629 = dma.done %s622, 1024
        $region92: #{tpu_custom_call.1} parent=75 // pred_fallthru
          _
        %s630 = sand.u32 %s30, 1
        %s631 = scalar_lea.sflag [#allocation5], %s630
        %s632 = sand.u32 %s196, 1
        %s633 = smul.addr %s632, 256
        %s634 = scalar_lea.vmem [#allocation11], %s633
        // Predicated region
        $region93: #{tpu_custom_call.1} parent=75 // pred_check
          %p635 = pneg %p209
        $region94: #{tpu_custom_call.1} parent=75 // pred_check_branch
          %637 = sbr.rel (%p635) target = $region96
        $region95: #{tpu_custom_call.1} parent=75 // pred_region
          %638 = dma.done %s631, 4096
        $region96: #{tpu_custom_call.1} parent=75 // pred_fallthru
          _
        %s639 = sand.u32 %s30, 1
        %s640 = scalar_lea.sflag [#allocation5], %s639
        %s641 = sand.u32 %s222, 1
        %s642 = smul.addr %s641, 4
        %s643 = scalar_lea.vmem [#allocation12], %s642
        // Predicated region
        $region97: #{tpu_custom_call.1} parent=75 // pred_check
          %p644 = pneg %p235
        $region98: #{tpu_custom_call.1} parent=75 // pred_check_branch
          %646 = sbr.rel (%p644) target = $region100
        $region99: #{tpu_custom_call.1} parent=75 // pred_region
          %647 = dma.done %s640, 64
        $region100: #{tpu_custom_call.1} parent=75 // pred_fallthru
          _
        %s648 = sand.u32 %s30, 1
        %s649 = scalar_lea.sflag [#allocation5], %s648
        %s650 = sand.u32 %s248, 1
        %s651 = smul.addr %s650, 256
        %s652 = scalar_lea.vmem [#allocation13], %s651
        // Predicated region
        $region101: #{tpu_custom_call.1} parent=75 // pred_check
          %p653 = pneg %p261
        $region102: #{tpu_custom_call.1} parent=75 // pred_check_branch
          %655 = sbr.rel (%p653) target = $region104
        $region103: #{tpu_custom_call.1} parent=75 // pred_region
          %656 = dma.done %s649, 4096
        $region104: #{tpu_custom_call.1} parent=75 // pred_fallthru
          _
        %s657 = sand.u32 %s30, 1
        %s658 = scalar_lea.sflag [#allocation5], %s657
        %s659 = sand.u32 %s274, 1
        %s660 = smul.addr %s659, 8
        %s661 = scalar_lea.vmem [#allocation14], %s660
        // Predicated region
        $region105: #{tpu_custom_call.1} parent=75 // pred_check
          %p662 = pneg %p287
        $region106: #{tpu_custom_call.1} parent=75 // pred_check_branch
          %664 = sbr.rel (%p662) target = $region108
        $region107: #{tpu_custom_call.1} parent=75 // pred_region
          %665 = dma.done %s658, 128
        $region108: #{tpu_custom_call.1} parent=75 // pred_fallthru
          _
        // Predicated region
        $region109: #{tpu_custom_call.1} parent=75 // pred_check
          %p666 = pneg %p308
        $region110: #{tpu_custom_call.1} parent=75 // pred_check_branch
          %668 = sbr.rel (%p666) target = $region112
        $region111: #{tpu_custom_call.1} parent=75 // pred_region
          %669 = dma.done [#allocation8], 128
        $region112: #{tpu_custom_call.1} parent=75 // pred_fallthru
          _
        %p670 = pneg %p63
        %p671 = pneg %p60
        %p672 = pneg %p84
        %p673 = pneg %p81
        %p674 = pneg %p105
        %p675 = pneg %p102
        %s676 = sand.u32 %s30, 1
        %s677 = scalar_lea.sflag [#allocation5], %s676
        %s678 = sand.u32 %s118, 1
        %s679 = smul.addr %s678, 192
        %s680 = scalar_lea.vmem [#allocation9], %s679
        %p681 = pneg %p131
        %p682 = pneg %p128
        %p683 = scmp.lt.s32.totalorder %s35, 1
        %s684 = scalar_select %p683, %s35, 1
        %s685 = smul.addr %s684, 3
        %s686 = scalar_lea.vmem %s4, %s685
        %p687 = pneg %p157
        %p688 = pneg %p154
        %s689 = sand.u32 %s30, 1
        %s690 = scalar_lea.sflag [#allocation5], %s689
        %s691 = sand.u32 %s170, 1
        %s692 = smul.addr %s691, 64
        %s693 = scalar_lea.vmem [#allocation10], %s692
        %p694 = pneg %p183
        %p695 = pneg %p180
        %s696 = sand.u32 %s30, 1
        %s697 = scalar_lea.sflag [#allocation5], %s696
        %s698 = sand.u32 %s196, 1
        %s699 = smul.addr %s698, 256
        %s700 = scalar_lea.vmem [#allocation11], %s699
        %p701 = pneg %p209
        %p702 = pneg %p206
        %s703 = sand.u32 %s30, 1
        %s704 = scalar_lea.sflag [#allocation5], %s703
        %s705 = sand.u32 %s222, 1
        %s706 = smul.addr %s705, 4
        %s707 = scalar_lea.vmem [#allocation12], %s706
        %p708 = pneg %p235
        %p709 = pneg %p232
        %s710 = sand.u32 %s30, 1
        %s711 = scalar_lea.sflag [#allocation5], %s710
        %s712 = sand.u32 %s248, 1
        %s713 = smul.addr %s712, 256
        %s714 = scalar_lea.vmem [#allocation13], %s713
        %p715 = pneg %p261
        %p716 = pneg %p258
        %s717 = sand.u32 %s30, 1
        %s718 = scalar_lea.sflag [#allocation5], %s717
        %s719 = sand.u32 %s274, 1
        %s720 = smul.addr %s719, 8
        %s721 = scalar_lea.vmem [#allocation14], %s720
        %p722 = pneg %p287
        %p723 = pneg %p284
        %p724 = pneg %p308
        %p725 = pneg %p305
        %p726 = pneg %p329
        %p727 = pneg %p326
        %p728 = pneg %p350
        %p729 = pneg %p347
        %p730 = pneg %p371
        %p731 = pneg %p368
        %p732 = pneg %p397
        %p733 = pneg %p394
        %s734 = smul.u32 2, %s34
        %p735 = scmp.lt.s32.totalorder %s35, 1
        %s736 = scalar_select %p735, %s35, 1
        %s737 = smul.addr %s736, 3
        %s738 = scalar_lea.vmem %s4, %s737
        %p740 = scmp.eq.s32.totalorder %s35, 0
        // Predicated region
        $region113: #{tpu_custom_call.1} parent=75 // pred_check
          %p741 = pneg %p740
        $region114: #{tpu_custom_call.1} parent=75 // pred_check_branch
          %743 = sbr.rel (%p741) target = $region116
        $region115: #{tpu_custom_call.1} parent=75 // pred_region
          %v744 = vld [vmem:[#allocation4] sm:$0xf]
          %v745 = vld [vmem:[#allocation4 + $0x4] sm:$0xf]
          %v746 = vld [vmem:[#allocation4 + $0x8] sm:$0xf]
          %v747 = vld [vmem:[#allocation4 + $0xc] sm:$0xf]
          %v748 = vld [vmem:[%s1] sm:$0xf]
          %v749 = vld [vmem:[%s1 + $0x4] sm:$0xf]
          %v750 = vld [vmem:[%s1 + $0x8] sm:$0xf]
          %v751 = vld [vmem:[%s1 + $0xc] sm:$0xf]
          %v752 = vld [vmem:[%s1 + $0x10] sm:$0xf]
          %v753 = vld [vmem:[%s1 + $0x14] sm:$0xf]
          %v758 = vunpack.c.l.b16 %v744
          %v759 = vunpack.c.l.b16 %v745
          %v760 = vunpack.c.l.b16 %v746
          %v761 = vunpack.c.l.b16 %v747
          %v762 = vpack.c.b16 %v759, %v758
          %v763 = vpack.c.b16 %v761, %v760
          %v770 = vunpack.c.l.b16 %v748
          %v771 = vunpack.c.l.b16 %v749
          %v772 = vunpack.c.l.b16 %v750
          %v773 = vunpack.c.l.b16 %v751
          %v774 = vunpack.c.l.b16 %v752
          %v775 = vunpack.c.l.b16 %v753
          %v776 = vpack.c.b16 %v771, %v770
          %v777 = vpack.c.b16 %v773, %v772
          %v778 = vpack.c.b16 %v775, %v774
          %vm782 = vcmask 392192
          %v784 = vsel %vm782, %v762, 0
          %v787 = vsel %vm782, %v763, 0
          %789 = vmatprep.subr.bf16.mxu0 0
          %790 = vmatpush1.bf16.msra.mxu0 0
          %791 = vmatprep.subr.bf16.mxu0 0
          %792 = vmatpush1.bf16.msra.mxu0 0
          %793 = vmatprep.subr.bf16.mxu0 0
          %794 = vmatpush1.bf16.msra.mxu0 0
          %795 = vmatprep.subr.bf16.mxu0 0
          %796 = vmatpush1.bf16.msra.mxu0 0
          %797 = vmatprep.subr.bf16.mxu0 0
          %798 = vmatpush1.bf16.msra.mxu0 0
          %799 = vmatprep.subr.bf16.mxu0 0
          %800 = vmatpush1.bf16.msra.mxu0 %v778
          %801 = vmatprep.subr.bf16.mxu0 0
          %802 = vmatpush1.bf16.msra.mxu0 %v777
          %803 = vmatprep.subr.bf16.mxu0 0
          %804 = vmatpush1.bf16.msra.mxu0 %v776
          %805 = vmatprep.subr.bf16.mxu0 0
          %806 = vmatpush2.bf16.msra.mxu0 0
          %807 = vmatprep.subr.bf16.mxu0 0
          %808 = vmatpush2.bf16.msra.mxu0 0
          %809 = vmatprep.subr.bf16.mxu0 0
          %810 = vmatpush2.bf16.msra.mxu0 0
          %811 = vmatprep.subr.bf16.mxu0 0
          %812 = vmatpush2.bf16.msra.mxu0 0
          %813 = vmatprep.subr.bf16.mxu0 0
          %814 = vmatpush2.bf16.msra.mxu0 0
          %815 = vmatprep.subr.bf16.mxu0 0
          %816 = vmatpush2.bf16.msra.mxu0 0
          %817 = vmatprep.subr.bf16.mxu0 0
          %818 = vmatpush2.bf16.msra.mxu0 0
          %819 = vmatprep.subr.bf16.mxu0 0
          %820 = vmatpush2.bf16.msra.mxu0 0
          %821 = vmatprep.mubr.bf16.mxu0 0
          %822 = vmatmul.mubr.bf16.gmra.mxu0 %v784
          %v823 = vpop.f32.mrf.mxu0
          %v824 = vadd.f32 0.0, %v823
          %v825 = vpop.f32.mrf.mxu0
          %v826 = vpop.f32.mrf.mxu0
          %v827 = vadd.f32 0.0, %v826
          %v828 = vpop.f32.mrf.mxu0
          %829 = vmatprep.mubr.bf16.mxu0 0
          %830 = vmatmul.mubr.bf16.gmra.mxu0 %v787
          %v831 = vpop.f32.mrf.mxu0
          %v832 = vadd.f32 0.0, %v831
          %v833 = vpop.f32.mrf.mxu0
          %v834 = vpop.f32.mrf.mxu0
          %v835 = vadd.f32 0.0, %v834
          %v836 = vpop.f32.mrf.mxu0
          %837 = vdwg.mxu0
          %v838 = vld [vmem:[#allocation7] sm:$0xff]
          %v839 = vld [vmem:[#allocation7 + $0x8] sm:$0xff]
          %v840 = vld [vmem:[#allocation7 + $0x10] sm:$0xff]
          %841 = vst [vmem:[#allocation2] sm:$0xff] %v838
          %842 = vst [vmem:[#allocation2 + $0x18] sm:$0xff] %v838
          %v843 = vadd.f32 %v824, %v839
          %v844 = vadd.f32 %v827, %v840
          %v845 = vadd.f32 %v832, %v839
          %v846 = vadd.f32 %v835, %v840
          %847 = vst [vmem:[#allocation2 + $0x8] sm:$0xff] %v843
          %848 = vst [vmem:[#allocation2 + $0x10] sm:$0xff] %v844
          %849 = vst [vmem:[#allocation2 + $0x20] sm:$0xff] %v845
          %850 = vst [vmem:[#allocation2 + $0x28] sm:$0xff] %v846
          %v851 = vld [vmem:[#allocation2] sm:$0xff]
          %v852 = vld [vmem:[#allocation2 + $0x8] sm:$0xff]
          %v853 = vld [vmem:[#allocation2 + $0x10] sm:$0xff]
          %v854 = vld [vmem:[#allocation2 + $0x18] sm:$0xff]
          %v855 = vld [vmem:[#allocation2 + $0x20] sm:$0xff]
          %v856 = vld [vmem:[#allocation2 + $0x28] sm:$0xff]
          %v857 = vld [vmem:[#allocation15] sm:$0x1]
          %v858 = vld [vmem:[#allocation15 + $0x1] sm:$0x1]
          %859 = vadd.xlane.f32.xlu0 %v851
          %v860 = vpop.xlane.xlu0 %859
          %861 = vadd.xlane.f32.xlu0 %v852
          %v862 = vpop.xlane.xlu0 %861
          %863 = vadd.xlane.f32.xlu0 %v853
          %v864 = vpop.xlane.xlu0 %863
          %865 = vadd.xlane.f32.xlu0 %v854
          %v866 = vpop.xlane.xlu0 %865
          %867 = vadd.xlane.f32.xlu0 %v855
          %v868 = vpop.xlane.xlu0 %867
          %869 = vadd.xlane.f32.xlu0 %v856
          %v870 = vpop.xlane.xlu0 %869
          %v871 = vrcp.pop 128.0
          %v872 = vmul.f32 %v860, %v871
          %v873 = vmul.f32 %v862, %v871
          %v874 = vmul.f32 %v864, %v871
          %v875 = vmul.f32 %v866, %v871
          %v876 = vmul.f32 %v868, %v871
          %v877 = vmul.f32 %v870, %v871
          %v878 = vsub.f32 %v851, %v872
          %v879 = vsub.f32 %v852, %v873
          %v880 = vsub.f32 %v853, %v874
          %v881 = vsub.f32 %v854, %v875
          %v882 = vsub.f32 %v855, %v876
          %v883 = vsub.f32 %v856, %v877
          %v884 = vmul.f32 %v878, %v878
          %v885 = vmul.f32 %v879, %v879
          %v886 = vmul.f32 %v880, %v880
          %v887 = vmul.f32 %v881, %v881
          %v888 = vmul.f32 %v882, %v882
          %v889 = vmul.f32 %v883, %v883
          %890 = vadd.xlane.f32.xlu0 %v884
          %v891 = vpop.xlane.xlu0 %890
          %892 = vadd.xlane.f32.xlu0 %v885
          %v893 = vpop.xlane.xlu0 %892
          %894 = vadd.xlane.f32.xlu0 %v886
          %v895 = vpop.xlane.xlu0 %894
          %896 = vadd.xlane.f32.xlu0 %v887
          %v897 = vpop.xlane.xlu0 %896
          %898 = vadd.xlane.f32.xlu0 %v888
          %v899 = vpop.xlane.xlu0 %898
          %900 = vadd.xlane.f32.xlu0 %v889
          %v901 = vpop.xlane.xlu0 %900
          %v902 = vmul.f32 %v891, %v871
          %v903 = vmul.f32 %v893, %v871
          %v904 = vmul.f32 %v895, %v871
          %v905 = vmul.f32 %v897, %v871
          %v906 = vmul.f32 %v899, %v871
          %v907 = vmul.f32 %v901, %v871
          %v908 = vadd.f32 %v902, 1e-05
          %v909 = vadd.f32 %v903, 1e-05
          %v910 = vadd.f32 %v904, 1e-05
          %v911 = vadd.f32 %v905, 1e-05
          %v912 = vadd.f32 %v906, 1e-05
          %v913 = vadd.f32 %v907, 1e-05
          %v914 = vrsqrt.pop %v908
          %v915 = vrsqrt.pop %v909
          %v916 = vrsqrt.pop %v910
          %v917 = vrsqrt.pop %v911
          %v918 = vrsqrt.pop %v912
          %v919 = vrsqrt.pop %v913
          %v920 = vmul.f32 %v878, %v914
          %v921 = vmul.f32 %v879, %v915
          %v922 = vmul.f32 %v880, %v916
          %v923 = vmul.f32 %v881, %v917
          %v924 = vmul.f32 %v882, %v918
          %v925 = vmul.f32 %v883, %v919
          %v926 = vlaneseq
          %v927 = vshrl.u32 %v926, 7
          %v928 = vsub.s32 0, %v927
          %v929 = vrot.slane %v857, %v928
          %v930 = vmul.f32 %v920, %v929
          %v931 = vmul.f32 %v921, %v929
          %v932 = vmul.f32 %v922, %v929
          %v933 = vmul.f32 %v923, %v929
          %v934 = vmul.f32 %v924, %v929
          %v935 = vmul.f32 %v925, %v929
          %v936 = vlaneseq
          %v937 = vshrl.u32 %v936, 7
          %v938 = vsub.s32 0, %v937
          %v939 = vrot.slane %v858, %v938
          %v940 = vadd.f32 %v930, %v939
          %v941 = vadd.f32 %v931, %v939
          %v942 = vadd.f32 %v932, %v939
          %v943 = vadd.f32 %v933, %v939
          %v944 = vadd.f32 %v934, %v939
          %v945 = vadd.f32 %v935, %v939
          %946 = vst [vmem:[#allocation2] sm:$0xff] %v940
          %947 = vst [vmem:[#allocation2 + $0x8] sm:$0xff] %v941
          %948 = vst [vmem:[#allocation2 + $0x10] sm:$0xff] %v942
          %949 = vst [vmem:[#allocation2 + $0x18] sm:$0xff] %v943
          %950 = vst [vmem:[#allocation2 + $0x20] sm:$0xff] %v944
          %951 = vst [vmem:[#allocation2 + $0x28] sm:$0xff] %v945
        $region116: #{tpu_custom_call.1} parent=75 // pred_fallthru
          _
        %v952 = vld [vmem:[#allocation2] sm:$0xff]
        %v953 = vld [vmem:[#allocation2 + $0x8] sm:$0xff]
        %v954 = vld [vmem:[#allocation2 + $0x10] sm:$0xff]
        %v955 = vld [vmem:[#allocation2 + $0x18] sm:$0xff]
        %v956 = vld [vmem:[#allocation2 + $0x20] sm:$0xff]
        %v957 = vld [vmem:[#allocation2 + $0x28] sm:$0xff]
        %v958 = vld [vmem:[%s661] sm:$0x1]
        %v959 = vld [vmem:[%s661 + $0x1] sm:$0x1]
        %960 = vadd.xlane.f32.xlu0 %v952
        %v961 = vpop.xlane.xlu0 %960
        %962 = vadd.xlane.f32.xlu0 %v953
        %v963 = vpop.xlane.xlu0 %962
        %964 = vadd.xlane.f32.xlu0 %v954
        %v965 = vpop.xlane.xlu0 %964
        %966 = vadd.xlane.f32.xlu0 %v955
        %v967 = vpop.xlane.xlu0 %966
        %968 = vadd.xlane.f32.xlu0 %v956
        %v969 = vpop.xlane.xlu0 %968
        %970 = vadd.xlane.f32.xlu0 %v957
        %v971 = vpop.xlane.xlu0 %970
        %v972 = vrcp.pop 128.0
        %v973 = vmul.f32 %v961, %v972
        %v974 = vmul.f32 %v963, %v972
        %v975 = vmul.f32 %v965, %v972
        %v976 = vmul.f32 %v967, %v972
        %v977 = vmul.f32 %v969, %v972
        %v978 = vmul.f32 %v971, %v972
        %v979 = vsub.f32 %v952, %v973
        %v980 = vsub.f32 %v953, %v974
        %v981 = vsub.f32 %v954, %v975
        %v982 = vsub.f32 %v955, %v976
        %v983 = vsub.f32 %v956, %v977
        %v984 = vsub.f32 %v957, %v978
        %v985 = vmul.f32 %v979, %v979
        %v986 = vmul.f32 %v980, %v980
        %v987 = vmul.f32 %v981, %v981
        %v988 = vmul.f32 %v982, %v982
        %v989 = vmul.f32 %v983, %v983
        %v990 = vmul.f32 %v984, %v984
        %991 = vadd.xlane.f32.xlu0 %v985
        %v992 = vpop.xlane.xlu0 %991
        %993 = vadd.xlane.f32.xlu0 %v986
        %v994 = vpop.xlane.xlu0 %993
        %995 = vadd.xlane.f32.xlu0 %v987
        %v996 = vpop.xlane.xlu0 %995
        %997 = vadd.xlane.f32.xlu0 %v988
        %v998 = vpop.xlane.xlu0 %997
        %999 = vadd.xlane.f32.xlu0 %v989
        %v1000 = vpop.xlane.xlu0 %999
        %1001 = vadd.xlane.f32.xlu0 %v990
        %v1002 = vpop.xlane.xlu0 %1001
        %v1003 = vmul.f32 %v992, %v972
        %v1004 = vmul.f32 %v994, %v972
        %v1005 = vmul.f32 %v996, %v972
        %v1006 = vmul.f32 %v998, %v972
        %v1007 = vmul.f32 %v1000, %v972
        %v1008 = vmul.f32 %v1002, %v972
        %v1009 = vadd.f32 %v1003, 1e-05
        %v1010 = vadd.f32 %v1004, 1e-05
        %v1011 = vadd.f32 %v1005, 1e-05
        %v1012 = vadd.f32 %v1006, 1e-05
        %v1013 = vadd.f32 %v1007, 1e-05
        %v1014 = vadd.f32 %v1008, 1e-05
        %v1015 = vrsqrt.pop %v1009
        %v1016 = vrsqrt.pop %v1010
        %v1017 = vrsqrt.pop %v1011
        %v1018 = vrsqrt.pop %v1012
        %v1019 = vrsqrt.pop %v1013
        %v1020 = vrsqrt.pop %v1014
        %v1021 = vmul.f32 %v979, %v1015
        %v1022 = vmul.f32 %v980, %v1016
        %v1023 = vmul.f32 %v981, %v1017
        %v1024 = vmul.f32 %v982, %v1018
        %v1025 = vmul.f32 %v983, %v1019
        %v1026 = vmul.f32 %v984, %v1020
        %v1027 = vlaneseq
        %v1028 = vshrl.u32 %v1027, 7
        %v1029 = vsub.s32 0, %v1028
        %v1030 = vrot.slane %v958, %v1029
        %v1031 = vmul.f32 %v1021, %v1030
        %v1032 = vmul.f32 %v1022, %v1030
        %v1033 = vmul.f32 %v1023, %v1030
        %v1034 = vmul.f32 %v1024, %v1030
        %v1035 = vmul.f32 %v1025, %v1030
        %v1036 = vmul.f32 %v1026, %v1030
        %v1037 = vlaneseq
        %v1038 = vshrl.u32 %v1037, 7
        %v1039 = vsub.s32 0, %v1038
        %v1040 = vrot.slane %v959, %v1039
        %v1041 = vadd.f32 %v1031, %v1040
        %v1042 = vadd.f32 %v1032, %v1040
        %v1043 = vadd.f32 %v1033, %v1040
        %v1044 = vadd.f32 %v1034, %v1040
        %v1045 = vadd.f32 %v1035, %v1040
        %v1046 = vadd.f32 %v1036, %v1040
        %v1047 = vpack.c.bf16 %v1042, %v1041
        %v1048 = vpack.c.bf16 %v1044, %v1043
        %v1049 = vpack.c.bf16 %v1046, %v1045
        %v1050 = vld [vmem:[%s616] sm:$0xff]
        %v1051 = vld [vmem:[%s616 + $0x8] sm:$0xf]
        %v1052 = vld [vmem:[%s616 + $0xc] sm:$0xff]
        %v1053 = vld [vmem:[%s616 + $0x14] sm:$0xf]
        %v1054 = vld [vmem:[%s616 + $0x18] sm:$0xff]
        %v1055 = vld [vmem:[%s616 + $0x20] sm:$0xf]
        %v1056 = vld [vmem:[%s616 + $0x24] sm:$0xff]
        %v1057 = vld [vmem:[%s616 + $0x2c] sm:$0xf]
        %v1058 = vld [vmem:[%s616 + $0x30] sm:$0xff]
        %v1059 = vld [vmem:[%s616 + $0x38] sm:$0xf]
        %v1060 = vld [vmem:[%s616 + $0x3c] sm:$0xff]
        %v1061 = vld [vmem:[%s616 + $0x44] sm:$0xf]
        %v1062 = vld [vmem:[%s616 + $0x48] sm:$0xff]
        %v1063 = vld [vmem:[%s616 + $0x50] sm:$0xf]
        %v1064 = vld [vmem:[%s616 + $0x54] sm:$0xff]
        %v1065 = vld [vmem:[%s616 + $0x5c] sm:$0xf]
        %v1066 = vld [vmem:[%s616 + $0x60] sm:$0xff]
        %v1067 = vld [vmem:[%s616 + $0x68] sm:$0xf]
        %v1068 = vld [vmem:[%s616 + $0x6c] sm:$0xff]
        %v1069 = vld [vmem:[%s616 + $0x74] sm:$0xf]
        %v1070 = vld [vmem:[%s616 + $0x78] sm:$0xff]
        %v1071 = vld [vmem:[%s616 + $0x80] sm:$0xf]
        %v1072 = vld [vmem:[%s616 + $0x84] sm:$0xff]
        %v1073 = vld [vmem:[%s616 + $0x8c] sm:$0xf]
        %v1074 = vld [vmem:[%s616 + $0x90] sm:$0xff]
        %v1075 = vld [vmem:[%s616 + $0x98] sm:$0xf]
        %v1076 = vld [vmem:[%s616 + $0x9c] sm:$0xff]
        %v1077 = vld [vmem:[%s616 + $0xa4] sm:$0xf]
        %v1078 = vld [vmem:[%s616 + $0xa8] sm:$0xff]
        %v1079 = vld [vmem:[%s616 + $0xb0] sm:$0xf]
        %v1080 = vld [vmem:[%s616 + $0xb4] sm:$0xff]
        %v1081 = vld [vmem:[%s616 + $0xbc] sm:$0xf]
        %v1082 = vld [vmem:[%s738] sm:$0x7]
        %v1084 = vlaneseq
        %v1085 = vshrl.u32 %v1084, 7
        %v1086 = vsub.s32 0, %v1085
        %v1087 = vrot.slane %v1082, %v1086
        %v1088 = vlaneseq
        %v1089 = vshrl.u32 %v1088, 7
        %v1090 = vsub.s32 1, %v1089
        %v1091 = vrot.slane %v1082, %v1090
        %v1092 = vlaneseq
        %v1093 = vshrl.u32 %v1092, 7
        %v1094 = vsub.s32 2, %v1093
        %v1095 = vrot.slane %v1082, %v1094
        %v1131 = vunpack.c.l.b16 %v1050
        %v1132 = vunpack.c.h.b16 %v1050
        %v1133 = vunpack.c.l.b16 %v1051
        %v1134 = vunpack.c.l.b16 %v1052
        %v1135 = vunpack.c.h.b16 %v1052
        %v1136 = vunpack.c.l.b16 %v1053
        %v1137 = vunpack.c.l.b16 %v1054
        %v1138 = vunpack.c.h.b16 %v1054
        %v1139 = vunpack.c.l.b16 %v1055
        %v1140 = vunpack.c.l.b16 %v1056
        %v1141 = vunpack.c.h.b16 %v1056
        %v1142 = vunpack.c.l.b16 %v1057
        %v1143 = vunpack.c.l.b16 %v1058
        %v1144 = vunpack.c.h.b16 %v1058
        %v1145 = vunpack.c.l.b16 %v1059
        %v1146 = vunpack.c.l.b16 %v1060
        %v1147 = vunpack.c.h.b16 %v1060
        %v1148 = vunpack.c.l.b16 %v1061
        %v1149 = vunpack.c.l.b16 %v1062
        %v1150 = vunpack.c.h.b16 %v1062
        %v1151 = vunpack.c.l.b16 %v1063
        %v1152 = vunpack.c.l.b16 %v1064
        %v1153 = vunpack.c.h.b16 %v1064
        %v1154 = vunpack.c.l.b16 %v1065
        %v1155 = vunpack.c.l.b16 %v1066
        %v1156 = vunpack.c.h.b16 %v1066
        %v1157 = vunpack.c.l.b16 %v1067
        %v1158 = vunpack.c.l.b16 %v1068
        %v1159 = vunpack.c.h.b16 %v1068
        %v1160 = vunpack.c.l.b16 %v1069
        %v1161 = vunpack.c.l.b16 %v1070
        %v1162 = vunpack.c.h.b16 %v1070
        %v1163 = vunpack.c.l.b16 %v1071
        %v1164 = vunpack.c.l.b16 %v1072
        %v1165 = vunpack.c.h.b16 %v1072
        %v1166 = vunpack.c.l.b16 %v1073
        %v1167 = vunpack.c.l.b16 %v1074
        %v1168 = vunpack.c.h.b16 %v1074
        %v1169 = vunpack.c.l.b16 %v1075
        %v1170 = vunpack.c.l.b16 %v1076
        %v1171 = vunpack.c.h.b16 %v1076
        %v1172 = vunpack.c.l.b16 %v1077
        %v1173 = vunpack.c.l.b16 %v1078
        %v1174 = vunpack.c.h.b16 %v1078
        %v1175 = vunpack.c.l.b16 %v1079
        %v1176 = vunpack.c.l.b16 %v1080
        %v1177 = vunpack.c.h.b16 %v1080
        %v1178 = vunpack.c.l.b16 %v1081
        %v1179 = vpack.c.b16 %v1134, %v1131
        %v1180 = vpack.c.b16 %v1135, %v1132
        %v1181 = vpack.c.b16 %v1136, %v1133
        %v1182 = vpack.c.b16 %v1140, %v1137
        %v1183 = vpack.c.b16 %v1141, %v1138
        %v1184 = vpack.c.b16 %v1142, %v1139
        %v1185 = vpack.c.b16 %v1146, %v1143
        %v1186 = vpack.c.b16 %v1147, %v1144
        %v1187 = vpack.c.b16 %v1148, %v1145
        %v1188 = vpack.c.b16 %v1152, %v1149
        %v1189 = vpack.c.b16 %v1153, %v1150
        %v1190 = vpack.c.b16 %v1154, %v1151
        %v1191 = vpack.c.b16 %v1158, %v1155
        %v1192 = vpack.c.b16 %v1159, %v1156
        %v1193 = vpack.c.b16 %v1160, %v1157
        %v1194 = vpack.c.b16 %v1164, %v1161
        %v1195 = vpack.c.b16 %v1165, %v1162
        %v1196 = vpack.c.b16 %v1166, %v1163
        %v1197 = vpack.c.b16 %v1170, %v1167
        %v1198 = vpack.c.b16 %v1171, %v1168
        %v1199 = vpack.c.b16 %v1172, %v1169
        %v1200 = vpack.c.b16 %v1176, %v1173
        %v1201 = vpack.c.b16 %v1177, %v1174
        %v1202 = vpack.c.b16 %v1178, %v1175
        %1227 = vmatprep.subr.bf16.mxu0 %v1201
        %1228 = vmatpush1.bf16.msra.mxu0 %v1200
        %1229 = vmatprep.subr.bf16.mxu0 %v1198
        %1230 = vmatpush1.bf16.msra.mxu0 %v1197
        %1231 = vmatprep.subr.bf16.mxu0 %v1195
        %1232 = vmatpush1.bf16.msra.mxu0 %v1194
        %1233 = vmatprep.subr.bf16.mxu0 %v1192
        %1234 = vmatpush1.bf16.msra.mxu0 %v1191
        %1235 = vmatprep.subr.bf16.mxu0 %v1189
        %1236 = vmatpush1.bf16.msra.mxu0 %v1188
        %1237 = vmatprep.subr.bf16.mxu0 %v1186
        %1238 = vmatpush1.bf16.msra.mxu0 %v1185
        %1239 = vmatprep.subr.bf16.mxu0 %v1183
        %1240 = vmatpush1.bf16.msra.mxu0 %v1182
        %1241 = vmatprep.subr.bf16.mxu0 %v1180
        %1242 = vmatpush1.bf16.msra.mxu0 %v1179
        %1243 = vmatprep.subr.bf16.mxu0 0
        %1244 = vmatpush2.bf16.msra.mxu0 0
        %1245 = vmatprep.subr.bf16.mxu0 0
        %1246 = vmatpush2.bf16.msra.mxu0 0
        %1247 = vmatprep.subr.bf16.mxu0 0
        %1248 = vmatpush2.bf16.msra.mxu0 0
        %1249 = vmatprep.subr.bf16.mxu0 0
        %1250 = vmatpush2.bf16.msra.mxu0 0
        %1251 = vmatprep.subr.bf16.mxu0 0
        %1252 = vmatpush2.bf16.msra.mxu0 0
        %1253 = vmatprep.subr.bf16.mxu0 0
        %1254 = vmatpush2.bf16.msra.mxu0 0
        %1255 = vmatprep.subr.bf16.mxu0 0
        %1256 = vmatpush2.bf16.msra.mxu0 0
        %1257 = vmatprep.subr.bf16.mxu0 0
        %1258 = vmatpush2.bf16.msra.mxu0 0
        %1259 = vmatprep.mubr.bf16.mxu0 0
        %1260 = vmatmul.mubr.bf16.gmra.mxu0 %v1047
        %v1261 = vpop.f32.mrf.mxu0
        %v1262 = vadd.f32 %v1087, %v1261
        %v1263 = vpop.f32.mrf.mxu0
        %v1264 = vadd.f32 %v1091, %v1263
        %v1265 = vpop.f32.mrf.mxu0
        %v1266 = vadd.f32 %v1087, %v1265
        %v1267 = vpop.f32.mrf.mxu0
        %v1268 = vadd.f32 %v1091, %v1267
        %1269 = vmatprep.mubr.bf16.mxu0 0
        %1270 = vmatmul.mubr.bf16.gmra.mxu0 %v1048
        %v1271 = vpop.f32.mrf.mxu0
        %v1272 = vadd.f32 %v1087, %v1271
        %v1273 = vpop.f32.mrf.mxu0
        %v1274 = vadd.f32 %v1091, %v1273
        %v1275 = vpop.f32.mrf.mxu0
        %v1276 = vadd.f32 %v1087, %v1275
        %v1277 = vpop.f32.mrf.mxu0
        %v1278 = vadd.f32 %v1091, %v1277
        %1279 = vmatprep.mubr.bf16.mxu0 0
        %1280 = vmatmul.mubr.bf16.gmra.mxu0 %v1049
        %v1281 = vpop.f32.mrf.mxu0
        %v1282 = vadd.f32 %v1087, %v1281
        %v1283 = vpop.f32.mrf.mxu0
        %v1284 = vadd.f32 %v1091, %v1283
        %v1285 = vpop.f32.mrf.mxu0
        %v1286 = vadd.f32 %v1087, %v1285
        %v1287 = vpop.f32.mrf.mxu0
        %v1288 = vadd.f32 %v1091, %v1287
        %1289 = vdwg.mxu0
        %1290 = vmatprep.subr.bf16.mxu0 0
        %1291 = vmatpush1.bf16.msra.mxu0 %v1202
        %1292 = vmatprep.subr.bf16.mxu0 0
        %1293 = vmatpush1.bf16.msra.mxu0 %v1199
        %1294 = vmatprep.subr.bf16.mxu0 0
        %1295 = vmatpush1.bf16.msra.mxu0 %v1196
        %1296 = vmatprep.subr.bf16.mxu0 0
        %1297 = vmatpush1.bf16.msra.mxu0 %v1193
        %1298 = vmatprep.subr.bf16.mxu0 0
        %1299 = vmatpush1.bf16.msra.mxu0 %v1190
        %1300 = vmatprep.subr.bf16.mxu0 0
        %1301 = vmatpush1.bf16.msra.mxu0 %v1187
        %1302 = vmatprep.subr.bf16.mxu0 0
        %1303 = vmatpush1.bf16.msra.mxu0 %v1184
        %1304 = vmatprep.subr.bf16.mxu0 0
        %1305 = vmatpush1.bf16.msra.mxu0 %v1181
        %1306 = vmatprep.subr.bf16.mxu0 0
        %1307 = vmatpush2.bf16.msra.mxu0 0
        %1308 = vmatprep.subr.bf16.mxu0 0
        %1309 = vmatpush2.bf16.msra.mxu0 0
        %1310 = vmatprep.subr.bf16.mxu0 0
        %1311 = vmatpush2.bf16.msra.mxu0 0
        %1312 = vmatprep.subr.bf16.mxu0 0
        %1313 = vmatpush2.bf16.msra.mxu0 0
        %1314 = vmatprep.subr.bf16.mxu0 0
        %1315 = vmatpush2.bf16.msra.mxu0 0
        %1316 = vmatprep.subr.bf16.mxu0 0
        %1317 = vmatpush2.bf16.msra.mxu0 0
        %1318 = vmatprep.subr.bf16.mxu0 0
        %1319 = vmatpush2.bf16.msra.mxu0 0
        %1320 = vmatprep.subr.bf16.mxu0 0
        %1321 = vmatpush2.bf16.msra.mxu0 0
        %1322 = vmatprep.mubr.bf16.mxu0 0
        %1323 = vmatmul.mubr.bf16.gmra.mxu0 %v1047
        %v1324 = vpop.f32.mrf.mxu0
        %v1325 = vadd.f32 %v1095, %v1324
        %v1326 = vpop.f32.mrf.mxu0
        %v1327 = vpop.f32.mrf.mxu0
        %v1328 = vadd.f32 %v1095, %v1327
        %v1329 = vpop.f32.mrf.mxu0
        %1330 = vmatprep.mubr.bf16.mxu0 0
        %1331 = vmatmul.mubr.bf16.gmra.mxu0 %v1048
        %v1332 = vpop.f32.mrf.mxu0
        %v1333 = vadd.f32 %v1095, %v1332
        %v1334 = vpop.f32.mrf.mxu0
        %v1335 = vpop.f32.mrf.mxu0
        %v1336 = vadd.f32 %v1095, %v1335
        %v1337 = vpop.f32.mrf.mxu0
        %1338 = vmatprep.mubr.bf16.mxu0 0
        %1339 = vmatmul.mubr.bf16.gmra.mxu0 %v1049
        %v1340 = vpop.f32.mrf.mxu0
        %v1341 = vadd.f32 %v1095, %v1340
        %v1342 = vpop.f32.mrf.mxu0
        %v1343 = vpop.f32.mrf.mxu0
        %v1344 = vadd.f32 %v1095, %v1343
        %v1345 = vpop.f32.mrf.mxu0
        %1346 = vdwg.mxu0
        %1353 = vrot.lane.b32.xlu0 %v1262, 64
        %v1354 = vpop.permute.xlu0 %1353
        %1355 = vrot.lane.b32.xlu0 %v1266, 64
        %v1356 = vpop.permute.xlu0 %1355
        %1357 = vrot.lane.b32.xlu0 %v1272, 64
        %v1358 = vpop.permute.xlu0 %1357
        %1359 = vrot.lane.b32.xlu0 %v1276, 64
        %v1360 = vpop.permute.xlu0 %1359
        %1361 = vrot.lane.b32.xlu0 %v1282, 64
        %v1362 = vpop.permute.xlu0 %1361
        %1363 = vrot.lane.b32.xlu0 %v1286, 64
        %v1364 = vpop.permute.xlu0 %1363
        %v1371 = vpack.c.bf16 %v1266, %v1262
        %v1372 = vpack.c.bf16 %v1272, %v1272
        %v1373 = vpack.c.bf16 %v1282, %v1276
        %v1374 = vpack.c.bf16 %v1286, %v1286
        %v1375 = vpack.c.bf16 %v1356, %v1354
        %v1376 = vpack.c.bf16 %v1358, %v1358
        %v1377 = vpack.c.bf16 %v1362, %v1360
        %v1378 = vpack.c.bf16 %v1364, %v1364
        %1385 = vrot.lane.b32.xlu0 %v1264, 64
        %v1386 = vpop.permute.xlu0 %1385
        %1387 = vrot.lane.b32.xlu0 %v1268, 64
        %v1388 = vpop.permute.xlu0 %1387
        %1389 = vrot.lane.b32.xlu0 %v1274, 64
        %v1390 = vpop.permute.xlu0 %1389
        %1391 = vrot.lane.b32.xlu0 %v1278, 64
        %v1392 = vpop.permute.xlu0 %1391
        %1393 = vrot.lane.b32.xlu0 %v1284, 64
        %v1394 = vpop.permute.xlu0 %1393
        %1395 = vrot.lane.b32.xlu0 %v1288, 64
        %v1396 = vpop.permute.xlu0 %1395
        %v1403 = vpack.c.bf16 %v1268, %v1264
        %v1404 = vpack.c.bf16 %v1274, %v1274
        %v1405 = vpack.c.bf16 %v1284, %v1278
        %v1406 = vpack.c.bf16 %v1288, %v1288
        %v1407 = vpack.c.bf16 %v1388, %v1386
        %v1408 = vpack.c.bf16 %v1390, %v1390
        %v1409 = vpack.c.bf16 %v1394, %v1392
        %v1410 = vpack.c.bf16 %v1396, %v1396
        %1417 = vrot.lane.b32.xlu0 %v1325, 64
        %v1418 = vpop.permute.xlu0 %1417
        %1419 = vrot.lane.b32.xlu0 %v1328, 64
        %v1420 = vpop.permute.xlu0 %1419
        %1421 = vrot.lane.b32.xlu0 %v1333, 64
        %v1422 = vpop.permute.xlu0 %1421
        %1423 = vrot.lane.b32.xlu0 %v1336, 64
        %v1424 = vpop.permute.xlu0 %1423
        %1425 = vrot.lane.b32.xlu0 %v1341, 64
        %v1426 = vpop.permute.xlu0 %1425
        %1427 = vrot.lane.b32.xlu0 %v1344, 64
        %v1428 = vpop.permute.xlu0 %1427
        %v1435 = vpack.c.bf16 %v1328, %v1325
        %v1436 = vpack.c.bf16 %v1333, %v1333
        %v1437 = vpack.c.bf16 %v1341, %v1336
        %v1438 = vpack.c.bf16 %v1344, %v1344
        %v1439 = vpack.c.bf16 %v1420, %v1418
        %v1440 = vpack.c.bf16 %v1422, %v1422
        %v1441 = vpack.c.bf16 %v1426, %v1424
        %v1442 = vpack.c.bf16 %v1428, %v1428
        %vm1443 = vcmask 523264
        %v1445 = vsel %vm1443, %v1371, 0
        %v1448 = vsel %vm1443, %v1372, 0
        %v1451 = vsel %vm1443, %v1403, 0
        %v1454 = vsel %vm1443, %v1404, 0
        %1456 = vmatprep.subr.bf16.mxu0 0
        %1457 = vmatpush1.bf16.xpose.msra.mxu0 0
        %1458 = vmatprep.subr.bf16.mxu0 0
        %1459 = vmatpush1.bf16.xpose.msra.mxu0 0
        %1460 = vmatprep.subr.bf16.mxu0 0
        %1461 = vmatpush1.bf16.xpose.msra.mxu0 0
        %1462 = vmatprep.subr.bf16.mxu0 0
        %1463 = vmatpush1.bf16.xpose.msra.mxu0 0
        %1464 = vmatprep.subr.bf16.mxu0 0
        %1465 = vmatpush1.bf16.xpose.msra.mxu0 0
        %1466 = vmatprep.subr.bf16.mxu0 0
        %1467 = vmatpush1.bf16.xpose.msra.mxu0 0
        %1468 = vmatprep.subr.bf16.mxu0 0
        %1469 = vmatpush1.bf16.xpose.msra.mxu0 %v1454
        %1470 = vmatprep.subr.bf16.mxu0 0
        %1471 = vmatpush1.bf16.xpose.msra.mxu0 %v1451
        %1472 = vmatprep.subr.bf16.mxu0 0
        %1473 = vmatpush2.bf16.xpose.msra.mxu0 0
        %1474 = vmatprep.subr.bf16.mxu0 0
        %1475 = vmatpush2.bf16.xpose.msra.mxu0 0
        %1476 = vmatprep.subr.bf16.mxu0 0
        %1477 = vmatpush2.bf16.xpose.msra.mxu0 0
        %1478 = vmatprep.subr.bf16.mxu0 0
        %1479 = vmatpush2.bf16.xpose.msra.mxu0 0
        %1480 = vmatprep.subr.bf16.mxu0 0
        %1481 = vmatpush2.bf16.xpose.msra.mxu0 0
        %1482 = vmatprep.subr.bf16.mxu0 0
        %1483 = vmatpush2.bf16.xpose.msra.mxu0 0
        %1484 = vmatprep.subr.bf16.mxu0 0
        %1485 = vmatpush2.bf16.xpose.msra.mxu0 0
        %1486 = vmatprep.subr.bf16.mxu0 0
        %1487 = vmatpush2.bf16.xpose.msra.mxu0 0
        %1488 = vmatprep.mubr.bf16.mxu0 0
        %1489 = vmatmul.mubr.bf16.gmra.mxu0 %v1445
        %v1490 = vpop.f32.mrf.mxu0
        %v1491 = vadd.f32 0.0, %v1490
        %v1492 = vpop.f32.mrf.mxu0
        %v1493 = vpop.f32.mrf.mxu0
        %v1494 = vadd.f32 0.0, %v1493
        %v1495 = vpop.f32.mrf.mxu0
        %1496 = vmatprep.mubr.bf16.mxu0 0
        %1497 = vmatmul.mubr.bf16.gmra.mxu0 %v1448
        %v1498 = vpop.f32.mrf.mxu0
        %v1499 = vadd.f32 0.0, %v1498
        %v1500 = vpop.f32.mrf.mxu0
        %v1501 = vpop.f32.mrf.mxu0
        %v1502 = vpop.f32.mrf.mxu0
        %1503 = vdwg.mxu0
        %v1505 = vsel %vm1443, %v1373, 0
        %v1508 = vsel %vm1443, %v1374, 0
        %v1511 = vsel %vm1443, %v1405, 0
        %v1514 = vsel %vm1443, %v1406, 0
        %1516 = vmatprep.subr.bf16.mxu0 0
        %1517 = vmatpush1.bf16.xpose.msra.mxu0 0
        %1518 = vmatprep.subr.bf16.mxu0 0
        %1519 = vmatpush1.bf16.xpose.msra.mxu0 0
        %1520 = vmatprep.subr.bf16.mxu0 0
        %1521 = vmatpush1.bf16.xpose.msra.mxu0 0
        %1522 = vmatprep.subr.bf16.mxu0 0
        %1523 = vmatpush1.bf16.xpose.msra.mxu0 0
        %1524 = vmatprep.subr.bf16.mxu0 0
        %1525 = vmatpush1.bf16.xpose.msra.mxu0 0
        %1526 = vmatprep.subr.bf16.mxu0 0
        %1527 = vmatpush1.bf16.xpose.msra.mxu0 0
        %1528 = vmatprep.subr.bf16.mxu0 0
        %1529 = vmatpush1.bf16.xpose.msra.mxu0 %v1514
        %1530 = vmatprep.subr.bf16.mxu0 0
        %1531 = vmatpush1.bf16.xpose.msra.mxu0 %v1511
        %1532 = vmatprep.subr.bf16.mxu0 0
        %1533 = vmatpush2.bf16.xpose.msra.mxu0 0
        %1534 = vmatprep.subr.bf16.mxu0 0
        %1535 = vmatpush2.bf16.xpose.msra.mxu0 0
        %1536 = vmatprep.subr.bf16.mxu0 0
        %1537 = vmatpush2.bf16.xpose.msra.mxu0 0
        %1538 = vmatprep.subr.bf16.mxu0 0
        %1539 = vmatpush2.bf16.xpose.msra.mxu0 0
        %1540 = vmatprep.subr.bf16.mxu0 0
        %1541 = vmatpush2.bf16.xpose.msra.mxu0 0
        %1542 = vmatprep.subr.bf16.mxu0 0
        %1543 = vmatpush2.bf16.xpose.msra.mxu0 0
        %1544 = vmatprep.subr.bf16.mxu0 0
        %1545 = vmatpush2.bf16.xpose.msra.mxu0 0
        %1546 = vmatprep.subr.bf16.mxu0 0
        %1547 = vmatpush2.bf16.xpose.msra.mxu0 0
        %1548 = vmatprep.mubr.bf16.mxu0 0
        %1549 = vmatmul.mubr.bf16.gmra.mxu0 %v1505
        %v1550 = vpop.f32.mrf.mxu0
        %v1551 = vadd.f32 0.0, %v1550
        %v1552 = vpop.f32.mrf.mxu0
        %v1553 = vpop.f32.mrf.mxu0
        %v1554 = vadd.f32 0.0, %v1553
        %v1555 = vpop.f32.mrf.mxu0
        %1556 = vmatprep.mubr.bf16.mxu0 0
        %1557 = vmatmul.mubr.bf16.gmra.mxu0 %v1508
        %v1558 = vpop.f32.mrf.mxu0
        %v1559 = vadd.f32 0.0, %v1558
        %v1560 = vpop.f32.mrf.mxu0
        %v1561 = vpop.f32.mrf.mxu0
        %v1562 = vpop.f32.mrf.mxu0
        %1563 = vdwg.mxu0
        %v1565 = vsel %vm1443, %v1375, 0
        %v1568 = vsel %vm1443, %v1376, 0
        %v1571 = vsel %vm1443, %v1407, 0
        %v1574 = vsel %vm1443, %v1408, 0
        %1576 = vmatprep.subr.bf16.mxu0 0
        %1577 = vmatpush1.bf16.xpose.msra.mxu0 0
        %1578 = vmatprep.subr.bf16.mxu0 0
        %1579 = vmatpush1.bf16.xpose.msra.mxu0 0
        %1580 = vmatprep.subr.bf16.mxu0 0
        %1581 = vmatpush1.bf16.xpose.msra.mxu0 0
        %1582 = vmatprep.subr.bf16.mxu0 0
        %1583 = vmatpush1.bf16.xpose.msra.mxu0 0
        %1584 = vmatprep.subr.bf16.mxu0 0
        %1585 = vmatpush1.bf16.xpose.msra.mxu0 0
        %1586 = vmatprep.subr.bf16.mxu0 0
        %1587 = vmatpush1.bf16.xpose.msra.mxu0 0
        %1588 = vmatprep.subr.bf16.mxu0 0
        %1589 = vmatpush1.bf16.xpose.msra.mxu0 %v1574
        %1590 = vmatprep.subr.bf16.mxu0 0
        %1591 = vmatpush1.bf16.xpose.msra.mxu0 %v1571
        %1592 = vmatprep.subr.bf16.mxu0 0
        %1593 = vmatpush2.bf16.xpose.msra.mxu0 0
        %1594 = vmatprep.subr.bf16.mxu0 0
        %1595 = vmatpush2.bf16.xpose.msra.mxu0 0
        %1596 = vmatprep.subr.bf16.mxu0 0
        %1597 = vmatpush2.bf16.xpose.msra.mxu0 0
        %1598 = vmatprep.subr.bf16.mxu0 0
        %1599 = vmatpush2.bf16.xpose.msra.mxu0 0
        %1600 = vmatprep.subr.bf16.mxu0 0
        %1601 = vmatpush2.bf16.xpose.msra.mxu0 0
        %1602 = vmatprep.subr.bf16.mxu0 0
        %1603 = vmatpush2.bf16.xpose.msra.mxu0 0
        %1604 = vmatprep.subr.bf16.mxu0 0
        %1605 = vmatpush2.bf16.xpose.msra.mxu0 0
        %1606 = vmatprep.subr.bf16.mxu0 0
        %1607 = vmatpush2.bf16.xpose.msra.mxu0 0
        %1608 = vmatprep.mubr.bf16.mxu0 0
        %1609 = vmatmul.mubr.bf16.gmra.mxu0 %v1565
        %v1610 = vpop.f32.mrf.mxu0
        %v1611 = vadd.f32 0.0, %v1610
        %v1612 = vpop.f32.mrf.mxu0
        %v1613 = vpop.f32.mrf.mxu0
        %v1614 = vadd.f32 0.0, %v1613
        %v1615 = vpop.f32.mrf.mxu0
        %1616 = vmatprep.mubr.bf16.mxu0 0
        %1617 = vmatmul.mubr.bf16.gmra.mxu0 %v1568
        %v1618 = vpop.f32.mrf.mxu0
        %v1619 = vadd.f32 0.0, %v1618
        %v1620 = vpop.f32.mrf.mxu0
        %v1621 = vpop.f32.mrf.mxu0
        %v1622 = vpop.f32.mrf.mxu0
        %1623 = vdwg.mxu0
        %v1625 = vsel %vm1443, %v1377, 0
        %v1628 = vsel %vm1443, %v1378, 0
        %v1631 = vsel %vm1443, %v1409, 0
        %v1634 = vsel %vm1443, %v1410, 0
        %1636 = vmatprep.subr.bf16.mxu0 0
        %1637 = vmatpush1.bf16.xpose.msra.mxu0 0
        %1638 = vmatprep.subr.bf16.mxu0 0
        %1639 = vmatpush1.bf16.xpose.msra.mxu0 0
        %1640 = vmatprep.subr.bf16.mxu0 0
        %1641 = vmatpush1.bf16.xpose.msra.mxu0 0
        %1642 = vmatprep.subr.bf16.mxu0 0
        %1643 = vmatpush1.bf16.xpose.msra.mxu0 0
        %1644 = vmatprep.subr.bf16.mxu0 0
        %1645 = vmatpush1.bf16.xpose.msra.mxu0 0
        %1646 = vmatprep.subr.bf16.mxu0 0
        %1647 = vmatpush1.bf16.xpose.msra.mxu0 0
        %1648 = vmatprep.subr.bf16.mxu0 0
        %1649 = vmatpush1.bf16.xpose.msra.mxu0 %v1634
        %1650 = vmatprep.subr.bf16.mxu0 0
        %1651 = vmatpush1.bf16.xpose.msra.mxu0 %v1631
        %1652 = vmatprep.subr.bf16.mxu0 0
        %1653 = vmatpush2.bf16.xpose.msra.mxu0 0
        %1654 = vmatprep.subr.bf16.mxu0 0
        %1655 = vmatpush2.bf16.xpose.msra.mxu0 0
        %1656 = vmatprep.subr.bf16.mxu0 0
        %1657 = vmatpush2.bf16.xpose.msra.mxu0 0
        %1658 = vmatprep.subr.bf16.mxu0 0
        %1659 = vmatpush2.bf16.xpose.msra.mxu0 0
        %1660 = vmatprep.subr.bf16.mxu0 0
        %1661 = vmatpush2.bf16.xpose.msra.mxu0 0
        %1662 = vmatprep.subr.bf16.mxu0 0
        %1663 = vmatpush2.bf16.xpose.msra.mxu0 0
        %1664 = vmatprep.subr.bf16.mxu0 0
        %1665 = vmatpush2.bf16.xpose.msra.mxu0 0
        %1666 = vmatprep.subr.bf16.mxu0 0
        %1667 = vmatpush2.bf16.xpose.msra.mxu0 0
        %1668 = vmatprep.mubr.bf16.mxu0 0
        %1669 = vmatmul.mubr.bf16.gmra.mxu0 %v1625
        %v1670 = vpop.f32.mrf.mxu0
        %v1671 = vadd.f32 0.0, %v1670
        %v1672 = vpop.f32.mrf.mxu0
        %v1673 = vpop.f32.mrf.mxu0
        %v1674 = vadd.f32 0.0, %v1673
        %v1675 = vpop.f32.mrf.mxu0
        %1676 = vmatprep.mubr.bf16.mxu0 0
        %1677 = vmatmul.mubr.bf16.gmra.mxu0 %v1628
        %v1678 = vpop.f32.mrf.mxu0
        %v1679 = vadd.f32 0.0, %v1678
        %v1680 = vpop.f32.mrf.mxu0
        %v1681 = vpop.f32.mrf.mxu0
        %v1682 = vpop.f32.mrf.mxu0
        %1683 = vdwg.mxu0
        %vm1684 = vcmask 195584
        %v1685 = vsel %vm1684, %v1491, -inf
        %1686 = vmax.xlane.f32.xlu0 %v1685
        %v1687 = vpop.xlane.xlu0 %1686
        %v1688 = vsel %vm1684, %v1494, -inf
        %1689 = vmax.xlane.f32.xlu0 %v1688
        %v1690 = vpop.xlane.xlu0 %1689
        %v1691 = vsel %vm1684, %v1499, -inf
        %1692 = vmax.xlane.f32.xlu0 %v1691
        %v1693 = vpop.xlane.xlu0 %1692
        %v1694 = vsel %vm1684, %v1551, -inf
        %1695 = vmax.xlane.f32.xlu0 %v1694
        %v1696 = vpop.xlane.xlu0 %1695
        %v1697 = vsel %vm1684, %v1554, -inf
        %1698 = vmax.xlane.f32.xlu0 %v1697
        %v1699 = vpop.xlane.xlu0 %1698
        %v1700 = vsel %vm1684, %v1559, -inf
        %1701 = vmax.xlane.f32.xlu0 %v1700
        %v1702 = vpop.xlane.xlu0 %1701
        %v1703 = vsel %vm1684, %v1611, -inf
        %1704 = vmax.xlane.f32.xlu0 %v1703
        %v1705 = vpop.xlane.xlu0 %1704
        %v1706 = vsel %vm1684, %v1614, -inf
        %1707 = vmax.xlane.f32.xlu0 %v1706
        %v1708 = vpop.xlane.xlu0 %1707
        %v1709 = vsel %vm1684, %v1619, -inf
        %1710 = vmax.xlane.f32.xlu0 %v1709
        %v1711 = vpop.xlane.xlu0 %1710
        %v1712 = vsel %vm1684, %v1671, -inf
        %1713 = vmax.xlane.f32.xlu0 %v1712
        %v1714 = vpop.xlane.xlu0 %1713
        %v1715 = vsel %vm1684, %v1674, -inf
        %1716 = vmax.xlane.f32.xlu0 %v1715
        %v1717 = vpop.xlane.xlu0 %1716
        %v1718 = vsel %vm1684, %v1679, -inf
        %1719 = vmax.xlane.f32.xlu0 %v1718
        %v1720 = vpop.xlane.xlu0 %1719
        %v1721 = vsub.f32 %v1491, %v1687
        %v1722 = vsub.f32 %v1494, %v1690
        %v1723 = vsub.f32 %v1499, %v1693
        %v1724 = vsub.f32 %v1551, %v1696
        %v1725 = vsub.f32 %v1554, %v1699
        %v1726 = vsub.f32 %v1559, %v1702
        %v1727 = vsub.f32 %v1611, %v1705
        %v1728 = vsub.f32 %v1614, %v1708
        %v1729 = vsub.f32 %v1619, %v1711
        %v1730 = vsub.f32 %v1671, %v1714
        %v1731 = vsub.f32 %v1674, %v1717
        %v1732 = vsub.f32 %v1679, %v1720
        %v1733 = vmul.f32 %v1721, 1.442695
        %v1734 = vpow.pop %v1733
        %v1735 = vmul.f32 %v1722, 1.442695
        %v1736 = vpow.pop %v1735
        %v1737 = vmul.f32 %v1723, 1.442695
        %v1738 = vpow.pop %v1737
        %v1739 = vmul.f32 %v1724, 1.442695
        %v1740 = vpow.pop %v1739
        %v1741 = vmul.f32 %v1725, 1.442695
        %v1742 = vpow.pop %v1741
        %v1743 = vmul.f32 %v1726, 1.442695
        %v1744 = vpow.pop %v1743
        %v1745 = vmul.f32 %v1727, 1.442695
        %v1746 = vpow.pop %v1745
        %v1747 = vmul.f32 %v1728, 1.442695
        %v1748 = vpow.pop %v1747
        %v1749 = vmul.f32 %v1729, 1.442695
        %v1750 = vpow.pop %v1749
        %v1751 = vmul.f32 %v1730, 1.442695
        %v1752 = vpow.pop %v1751
        %v1753 = vmul.f32 %v1731, 1.442695
        %v1754 = vpow.pop %v1753
        %v1755 = vmul.f32 %v1732, 1.442695
        %v1756 = vpow.pop %v1755
        %v1757 = vsel %vm1684, %v1734, 0.0
        %1758 = vadd.xlane.f32.xlu0 %v1757
        %v1759 = vpop.xlane.xlu0 %1758
        %v1760 = vsel %vm1684, %v1736, 0.0
        %1761 = vadd.xlane.f32.xlu0 %v1760
        %v1762 = vpop.xlane.xlu0 %1761
        %v1763 = vsel %vm1684, %v1738, 0.0
        %1764 = vadd.xlane.f32.xlu0 %v1763
        %v1765 = vpop.xlane.xlu0 %1764
        %v1766 = vsel %vm1684, %v1740, 0.0
        %1767 = vadd.xlane.f32.xlu0 %v1766
        %v1768 = vpop.xlane.xlu0 %1767
        %v1769 = vsel %vm1684, %v1742, 0.0
        %1770 = vadd.xlane.f32.xlu0 %v1769
        %v1771 = vpop.xlane.xlu0 %1770
        %v1772 = vsel %vm1684, %v1744, 0.0
        %1773 = vadd.xlane.f32.xlu0 %v1772
        %v1774 = vpop.xlane.xlu0 %1773
        %v1775 = vsel %vm1684, %v1746, 0.0
        %1776 = vadd.xlane.f32.xlu0 %v1775
        %v1777 = vpop.xlane.xlu0 %1776
        %v1778 = vsel %vm1684, %v1748, 0.0
        %1779 = vadd.xlane.f32.xlu0 %v1778
        %v1780 = vpop.xlane.xlu0 %1779
        %v1781 = vsel %vm1684, %v1750, 0.0
        %1782 = vadd.xlane.f32.xlu0 %v1781
        %v1783 = vpop.xlane.xlu0 %1782
        %v1784 = vsel %vm1684, %v1752, 0.0
        %1785 = vadd.xlane.f32.xlu0 %v1784
        %v1786 = vpop.xlane.xlu0 %1785
        %v1787 = vsel %vm1684, %v1754, 0.0
        %1788 = vadd.xlane.f32.xlu0 %v1787
        %v1789 = vpop.xlane.xlu0 %1788
        %v1790 = vsel %vm1684, %v1756, 0.0
        %1791 = vadd.xlane.f32.xlu0 %v1790
        %v1792 = vpop.xlane.xlu0 %1791
        %v1793 = vrcp.pop %v1759
        %v1794 = vrcp.pop %v1762
        %v1795 = vrcp.pop %v1765
        %v1796 = vrcp.pop %v1768
        %v1797 = vrcp.pop %v1771
        %v1798 = vrcp.pop %v1774
        %v1799 = vrcp.pop %v1777
        %v1800 = vrcp.pop %v1780
        %v1801 = vrcp.pop %v1783
        %v1802 = vrcp.pop %v1786
        %v1803 = vrcp.pop %v1789
        %v1804 = vrcp.pop %v1792
        %v1805 = vmul.f32 %v1734, %v1793
        %v1806 = vmul.f32 %v1736, %v1794
        %v1807 = vmul.f32 %v1738, %v1795
        %v1808 = vmul.f32 %v1740, %v1796
        %v1809 = vmul.f32 %v1742, %v1797
        %v1810 = vmul.f32 %v1744, %v1798
        %v1811 = vmul.f32 %v1746, %v1799
        %v1812 = vmul.f32 %v1748, %v1800
        %v1813 = vmul.f32 %v1750, %v1801
        %v1814 = vmul.f32 %v1752, %v1802
        %v1815 = vmul.f32 %v1754, %v1803
        %v1816 = vmul.f32 %v1756, %v1804
        %v1817 = vpack.c.bf16 %v1806, %v1805
        %v1818 = vpack.c.bf16 %v1807, %v1807
        %v1819 = vpack.c.bf16 %v1809, %v1808
        %v1820 = vpack.c.bf16 %v1810, %v1810
        %v1821 = vpack.c.bf16 %v1812, %v1811
        %v1822 = vpack.c.bf16 %v1813, %v1813
        %v1823 = vpack.c.bf16 %v1815, %v1814
        %v1824 = vpack.c.bf16 %v1816, %v1816
        %v1826 = vsel %vm1684, %v1817, 0
        %v1829 = vsel %vm1684, %v1818, 0
        %vm1831 = vcmask 1043456
        %v1833 = vsel %vm1831, %v1436, 0
        %1835 = vmatprep.subr.bf16.mxu0 0
        %1836 = vmatpush1.bf16.msra.mxu0 0
        %1837 = vmatprep.subr.bf16.mxu0 0
        %1838 = vmatpush1.bf16.msra.mxu0 0
        %1839 = vmatprep.subr.bf16.mxu0 0
        %1840 = vmatpush1.bf16.msra.mxu0 0
        %1841 = vmatprep.subr.bf16.mxu0 0
        %1842 = vmatpush1.bf16.msra.mxu0 0
        %1843 = vmatprep.subr.bf16.mxu0 0
        %1844 = vmatpush1.bf16.msra.mxu0 0
        %1845 = vmatprep.subr.bf16.mxu0 0
        %1846 = vmatpush1.bf16.msra.mxu0 0
        %1847 = vmatprep.subr.bf16.mxu0 0
        %1848 = vmatpush1.bf16.msra.mxu0 %v1833
        %1849 = vmatprep.subr.bf16.mxu0 0
        %1850 = vmatpush1.bf16.msra.mxu0 %v1435
        %1851 = vmatprep.subr.bf16.mxu0 0
        %1852 = vmatpush2.bf16.msra.mxu0 0
        %1853 = vmatprep.subr.bf16.mxu0 0
        %1854 = vmatpush2.bf16.msra.mxu0 0
        %1855 = vmatprep.subr.bf16.mxu0 0
        %1856 = vmatpush2.bf16.msra.mxu0 0
        %1857 = vmatprep.subr.bf16.mxu0 0
        %1858 = vmatpush2.bf16.msra.mxu0 0
        %1859 = vmatprep.subr.bf16.mxu0 0
        %1860 = vmatpush2.bf16.msra.mxu0 0
        %1861 = vmatprep.subr.bf16.mxu0 0
        %1862 = vmatpush2.bf16.msra.mxu0 0
        %1863 = vmatprep.subr.bf16.mxu0 0
        %1864 = vmatpush2.bf16.msra.mxu0 0
        %1865 = vmatprep.subr.bf16.mxu0 0
        %1866 = vmatpush2.bf16.msra.mxu0 0
        %1867 = vmatprep.mubr.bf16.mxu0 0
        %1868 = vmatmul.mubr.bf16.gmra.mxu0 %v1826
        %v1869 = vpop.f32.mrf.mxu0
        %v1870 = vadd.f32 0.0, %v1869
        %v1871 = vpop.f32.mrf.mxu0
        %v1872 = vpop.f32.mrf.mxu0
        %v1873 = vadd.f32 0.0, %v1872
        %v1874 = vpop.f32.mrf.mxu0
        %1875 = vmatprep.mubr.bf16.mxu0 0
        %1876 = vmatmul.mubr.bf16.gmra.mxu0 %v1829
        %v1877 = vpop.f32.mrf.mxu0
        %v1878 = vadd.f32 0.0, %v1877
        %v1879 = vpop.f32.mrf.mxu0
        %v1880 = vpop.f32.mrf.mxu0
        %v1881 = vpop.f32.mrf.mxu0
        %1882 = vdwg.mxu0
        %v1884 = vsel %vm1684, %v1819, 0
        %v1887 = vsel %vm1684, %v1820, 0
        %v1890 = vsel %vm1831, %v1438, 0
        %1892 = vmatprep.subr.bf16.mxu0 0
        %1893 = vmatpush1.bf16.msra.mxu0 0
        %1894 = vmatprep.subr.bf16.mxu0 0
        %1895 = vmatpush1.bf16.msra.mxu0 0
        %1896 = vmatprep.subr.bf16.mxu0 0
        %1897 = vmatpush1.bf16.msra.mxu0 0
        %1898 = vmatprep.subr.bf16.mxu0 0
        %1899 = vmatpush1.bf16.msra.mxu0 0
        %1900 = vmatprep.subr.bf16.mxu0 0
        %1901 = vmatpush1.bf16.msra.mxu0 0
        %1902 = vmatprep.subr.bf16.mxu0 0
        %1903 = vmatpush1.bf16.msra.mxu0 0
        %1904 = vmatprep.subr.bf16.mxu0 0
        %1905 = vmatpush1.bf16.msra.mxu0 %v1890
        %1906 = vmatprep.subr.bf16.mxu0 0
        %1907 = vmatpush1.bf16.msra.mxu0 %v1437
        %1908 = vmatprep.subr.bf16.mxu0 0
        %1909 = vmatpush2.bf16.msra.mxu0 0
        %1910 = vmatprep.subr.bf16.mxu0 0
        %1911 = vmatpush2.bf16.msra.mxu0 0
        %1912 = vmatprep.subr.bf16.mxu0 0
        %1913 = vmatpush2.bf16.msra.mxu0 0
        %1914 = vmatprep.subr.bf16.mxu0 0
        %1915 = vmatpush2.bf16.msra.mxu0 0
        %1916 = vmatprep.subr.bf16.mxu0 0
        %1917 = vmatpush2.bf16.msra.mxu0 0
        %1918 = vmatprep.subr.bf16.mxu0 0
        %1919 = vmatpush2.bf16.msra.mxu0 0
        %1920 = vmatprep.subr.bf16.mxu0 0
        %1921 = vmatpush2.bf16.msra.mxu0 0
        %1922 = vmatprep.subr.bf16.mxu0 0
        %1923 = vmatpush2.bf16.msra.mxu0 0
        %1924 = vmatprep.mubr.bf16.mxu0 0
        %1925 = vmatmul.mubr.bf16.gmra.mxu0 %v1884
        %v1926 = vpop.f32.mrf.mxu0
        %v1927 = vadd.f32 0.0, %v1926
        %v1928 = vpop.f32.mrf.mxu0
        %v1929 = vpop.f32.mrf.mxu0
        %v1930 = vadd.f32 0.0, %v1929
        %v1931 = vpop.f32.mrf.mxu0
        %1932 = vmatprep.mubr.bf16.mxu0 0
        %1933 = vmatmul.mubr.bf16.gmra.mxu0 %v1887
        %v1934 = vpop.f32.mrf.mxu0
        %v1935 = vadd.f32 0.0, %v1934
        %v1936 = vpop.f32.mrf.mxu0
        %v1937 = vpop.f32.mrf.mxu0
        %v1938 = vpop.f32.mrf.mxu0
        %1939 = vdwg.mxu0
        %v1941 = vsel %vm1684, %v1821, 0
        %v1944 = vsel %vm1684, %v1822, 0
        %v1947 = vsel %vm1831, %v1440, 0
        %1949 = vmatprep.subr.bf16.mxu0 0
        %1950 = vmatpush1.bf16.msra.mxu0 0
        %1951 = vmatprep.subr.bf16.mxu0 0
        %1952 = vmatpush1.bf16.msra.mxu0 0
        %1953 = vmatprep.subr.bf16.mxu0 0
        %1954 = vmatpush1.bf16.msra.mxu0 0
        %1955 = vmatprep.subr.bf16.mxu0 0
        %1956 = vmatpush1.bf16.msra.mxu0 0
        %1957 = vmatprep.subr.bf16.mxu0 0
        %1958 = vmatpush1.bf16.msra.mxu0 0
        %1959 = vmatprep.subr.bf16.mxu0 0
        %1960 = vmatpush1.bf16.msra.mxu0 0
        %1961 = vmatprep.subr.bf16.mxu0 0
        %1962 = vmatpush1.bf16.msra.mxu0 %v1947
        %1963 = vmatprep.subr.bf16.mxu0 0
        %1964 = vmatpush1.bf16.msra.mxu0 %v1439
        %1965 = vmatprep.subr.bf16.mxu0 0
        %1966 = vmatpush2.bf16.msra.mxu0 0
        %1967 = vmatprep.subr.bf16.mxu0 0
        %1968 = vmatpush2.bf16.msra.mxu0 0
        %1969 = vmatprep.subr.bf16.mxu0 0
        %1970 = vmatpush2.bf16.msra.mxu0 0
        %1971 = vmatprep.subr.bf16.mxu0 0
        %1972 = vmatpush2.bf16.msra.mxu0 0
        %1973 = vmatprep.subr.bf16.mxu0 0
        %1974 = vmatpush2.bf16.msra.mxu0 0
        %1975 = vmatprep.subr.bf16.mxu0 0
        %1976 = vmatpush2.bf16.msra.mxu0 0
        %1977 = vmatprep.subr.bf16.mxu0 0
        %1978 = vmatpush2.bf16.msra.mxu0 0
        %1979 = vmatprep.subr.bf16.mxu0 0
        %1980 = vmatpush2.bf16.msra.mxu0 0
        %1981 = vmatprep.mubr.bf16.mxu0 0
        %1982 = vmatmul.mubr.bf16.gmra.mxu0 %v1941
        %v1983 = vpop.f32.mrf.mxu0
        %v1984 = vadd.f32 0.0, %v1983
        %v1985 = vpop.f32.mrf.mxu0
        %v1986 = vpop.f32.mrf.mxu0
        %v1987 = vadd.f32 0.0, %v1986
        %v1988 = vpop.f32.mrf.mxu0
        %1989 = vmatprep.mubr.bf16.mxu0 0
        %1990 = vmatmul.mubr.bf16.gmra.mxu0 %v1944
        %v1991 = vpop.f32.mrf.mxu0
        %v1992 = vadd.f32 0.0, %v1991
        %v1993 = vpop.f32.mrf.mxu0
        %v1994 = vpop.f32.mrf.mxu0
        %v1995 = vpop.f32.mrf.mxu0
        %1996 = vdwg.mxu0
        %v1998 = vsel %vm1684, %v1823, 0
        %v2001 = vsel %vm1684, %v1824, 0
        %v2004 = vsel %vm1831, %v1442, 0
        %2006 = vmatprep.subr.bf16.mxu0 0
        %2007 = vmatpush1.bf16.msra.mxu0 0
        %2008 = vmatprep.subr.bf16.mxu0 0
        %2009 = vmatpush1.bf16.msra.mxu0 0
        %2010 = vmatprep.subr.bf16.mxu0 0
        %2011 = vmatpush1.bf16.msra.mxu0 0
        %2012 = vmatprep.subr.bf16.mxu0 0
        %2013 = vmatpush1.bf16.msra.mxu0 0
        %2014 = vmatprep.subr.bf16.mxu0 0
        %2015 = vmatpush1.bf16.msra.mxu0 0
        %2016 = vmatprep.subr.bf16.mxu0 0
        %2017 = vmatpush1.bf16.msra.mxu0 0
        %2018 = vmatprep.subr.bf16.mxu0 0
        %2019 = vmatpush1.bf16.msra.mxu0 %v2004
        %2020 = vmatprep.subr.bf16.mxu0 0
        %2021 = vmatpush1.bf16.msra.mxu0 %v1441
        %2022 = vmatprep.subr.bf16.mxu0 0
        %2023 = vmatpush2.bf16.msra.mxu0 0
        %2024 = vmatprep.subr.bf16.mxu0 0
        %2025 = vmatpush2.bf16.msra.mxu0 0
        %2026 = vmatprep.subr.bf16.mxu0 0
        %2027 = vmatpush2.bf16.msra.mxu0 0
        %2028 = vmatprep.subr.bf16.mxu0 0
        %2029 = vmatpush2.bf16.msra.mxu0 0
        %2030 = vmatprep.subr.bf16.mxu0 0
        %2031 = vmatpush2.bf16.msra.mxu0 0
        %2032 = vmatprep.subr.bf16.mxu0 0
        %2033 = vmatpush2.bf16.msra.mxu0 0
        %2034 = vmatprep.subr.bf16.mxu0 0
        %2035 = vmatpush2.bf16.msra.mxu0 0
        %2036 = vmatprep.subr.bf16.mxu0 0
        %2037 = vmatpush2.bf16.msra.mxu0 0
        %2038 = vmatprep.mubr.bf16.mxu0 0
        %2039 = vmatmul.mubr.bf16.gmra.mxu0 %v1998
        %v2040 = vpop.f32.mrf.mxu0
        %v2041 = vadd.f32 0.0, %v2040
        %v2042 = vpop.f32.mrf.mxu0
        %v2043 = vpop.f32.mrf.mxu0
        %v2044 = vadd.f32 0.0, %v2043
        %v2045 = vpop.f32.mrf.mxu0
        %2046 = vmatprep.mubr.bf16.mxu0 0
        %2047 = vmatmul.mubr.bf16.gmra.mxu0 %v2001
        %v2048 = vpop.f32.mrf.mxu0
        %v2049 = vadd.f32 0.0, %v2048
        %v2050 = vpop.f32.mrf.mxu0
        %v2051 = vpop.f32.mrf.mxu0
        %v2052 = vpop.f32.mrf.mxu0
        %2053 = vdwg.mxu0
        %2060 = vrot.lane.b32.xlu0 %v1984, 64
        %v2061 = vpop.permute.xlu0 %2060
        %2062 = vrot.lane.b32.xlu0 %v1987, 64
        %v2063 = vpop.permute.xlu0 %2062
        %2064 = vrot.lane.b32.xlu0 %v1992, 64
        %v2065 = vpop.permute.xlu0 %2064
        %2066 = vrot.lane.b32.xlu0 %v2041, 64
        %v2067 = vpop.permute.xlu0 %2066
        %2068 = vrot.lane.b32.xlu0 %v2044, 64
        %v2069 = vpop.permute.xlu0 %2068
        %2070 = vrot.lane.b32.xlu0 %v2049, 64
        %v2071 = vpop.permute.xlu0 %2070
        %v2078 = vsel %vm1443, %v1870, %v2061
        %v2079 = vsel %vm1443, %v1873, %v2063
        %v2080 = vsel %vm1443, %v1878, %v2065
        %v2081 = vsel %vm1443, %v1927, %v2067
        %v2082 = vsel %vm1443, %v1930, %v2069
        %v2083 = vsel %vm1443, %v1935, %v2071
        %v2084 = vpack.c.bf16 %v2079, %v2078
        %v2085 = vpack.c.bf16 %v2081, %v2080
        %v2086 = vpack.c.bf16 %v2083, %v2082
        %v2087 = vld [vmem:[%s625] sm:$0xf]
        %v2088 = vld [vmem:[%s625 + $0x4] sm:$0xf]
        %v2089 = vld [vmem:[%s625 + $0x8] sm:$0xf]
        %v2090 = vld [vmem:[%s625 + $0xc] sm:$0xf]
        %v2091 = vld [vmem:[%s625 + $0x10] sm:$0xf]
        %v2092 = vld [vmem:[%s625 + $0x14] sm:$0xf]
        %v2093 = vld [vmem:[%s625 + $0x18] sm:$0xf]
        %v2094 = vld [vmem:[%s625 + $0x1c] sm:$0xf]
        %v2095 = vld [vmem:[%s625 + $0x20] sm:$0xf]
        %v2096 = vld [vmem:[%s625 + $0x24] sm:$0xf]
        %v2097 = vld [vmem:[%s625 + $0x28] sm:$0xf]
        %v2098 = vld [vmem:[%s625 + $0x2c] sm:$0xf]
        %v2099 = vld [vmem:[%s625 + $0x30] sm:$0xf]
        %v2100 = vld [vmem:[%s625 + $0x34] sm:$0xf]
        %v2101 = vld [vmem:[%s625 + $0x38] sm:$0xf]
        %v2102 = vld [vmem:[%s625 + $0x3c] sm:$0xf]
        %v2103 = vld [vmem:[%s661 + $0x4] sm:$0x1]
        %v2104 = vlaneseq
        %v2105 = vshrl.u32 %v2104, 7
        %v2106 = vsub.s32 0, %v2105
        %v2107 = vrot.slane %v2103, %v2106
        %v2124 = vunpack.c.l.b16 %v2087
        %v2125 = vunpack.c.l.b16 %v2088
        %v2126 = vunpack.c.l.b16 %v2089
        %v2127 = vunpack.c.l.b16 %v2090
        %v2128 = vunpack.c.l.b16 %v2091
        %v2129 = vunpack.c.l.b16 %v2092
        %v2130 = vunpack.c.l.b16 %v2093
        %v2131 = vunpack.c.l.b16 %v2094
        %v2132 = vunpack.c.l.b16 %v2095
        %v2133 = vunpack.c.l.b16 %v2096
        %v2134 = vunpack.c.l.b16 %v2097
        %v2135 = vunpack.c.l.b16 %v2098
        %v2136 = vunpack.c.l.b16 %v2099
        %v2137 = vunpack.c.l.b16 %v2100
        %v2138 = vunpack.c.l.b16 %v2101
        %v2139 = vunpack.c.l.b16 %v2102
        %v2140 = vpack.c.b16 %v2125, %v2124
        %v2141 = vpack.c.b16 %v2127, %v2126
        %v2142 = vpack.c.b16 %v2129, %v2128
        %v2143 = vpack.c.b16 %v2131, %v2130
        %v2144 = vpack.c.b16 %v2133, %v2132
        %v2145 = vpack.c.b16 %v2135, %v2134
        %v2146 = vpack.c.b16 %v2137, %v2136
        %v2147 = vpack.c.b16 %v2139, %v2138
        %2156 = vmatprep.subr.bf16.mxu0 0
        %2157 = vmatpush1.bf16.msra.mxu0 %v2147
        %2158 = vmatprep.subr.bf16.mxu0 0
        %2159 = vmatpush1.bf16.msra.mxu0 %v2146
        %2160 = vmatprep.subr.bf16.mxu0 0
        %2161 = vmatpush1.bf16.msra.mxu0 %v2145
        %2162 = vmatprep.subr.bf16.mxu0 0
        %2163 = vmatpush1.bf16.msra.mxu0 %v2144
        %2164 = vmatprep.subr.bf16.mxu0 0
        %2165 = vmatpush1.bf16.msra.mxu0 %v2143
        %2166 = vmatprep.subr.bf16.mxu0 0
        %2167 = vmatpush1.bf16.msra.mxu0 %v2142
        %2168 = vmatprep.subr.bf16.mxu0 0
        %2169 = vmatpush1.bf16.msra.mxu0 %v2141
        %2170 = vmatprep.subr.bf16.mxu0 0
        %2171 = vmatpush1.bf16.msra.mxu0 %v2140
        %2172 = vmatprep.subr.bf16.mxu0 0
        %2173 = vmatpush2.bf16.msra.mxu0 0
        %2174 = vmatprep.subr.bf16.mxu0 0
        %2175 = vmatpush2.bf16.msra.mxu0 0
        %2176 = vmatprep.subr.bf16.mxu0 0
        %2177 = vmatpush2.bf16.msra.mxu0 0
        %2178 = vmatprep.subr.bf16.mxu0 0
        %2179 = vmatpush2.bf16.msra.mxu0 0
        %2180 = vmatprep.subr.bf16.mxu0 0
        %2181 = vmatpush2.bf16.msra.mxu0 0
        %2182 = vmatprep.subr.bf16.mxu0 0
        %2183 = vmatpush2.bf16.msra.mxu0 0
        %2184 = vmatprep.subr.bf16.mxu0 0
        %2185 = vmatpush2.bf16.msra.mxu0 0
        %2186 = vmatprep.subr.bf16.mxu0 0
        %2187 = vmatpush2.bf16.msra.mxu0 0
        %2188 = vmatprep.mubr.bf16.mxu0 0
        %2189 = vmatmul.mubr.bf16.gmra.mxu0 %v2084
        %v2190 = vpop.f32.mrf.mxu0
        %v2191 = vadd.f32 %v2107, %v2190
        %v2192 = vpop.f32.mrf.mxu0
        %v2193 = vpop.f32.mrf.mxu0
        %v2194 = vadd.f32 %v2107, %v2193
        %v2195 = vpop.f32.mrf.mxu0
        %2196 = vmatprep.mubr.bf16.mxu0 0
        %2197 = vmatmul.mubr.bf16.gmra.mxu0 %v2085
        %v2198 = vpop.f32.mrf.mxu0
        %v2199 = vadd.f32 %v2107, %v2198
        %v2200 = vpop.f32.mrf.mxu0
        %v2201 = vpop.f32.mrf.mxu0
        %v2202 = vadd.f32 %v2107, %v2201
        %v2203 = vpop.f32.mrf.mxu0
        %2204 = vmatprep.mubr.bf16.mxu0 0
        %2205 = vmatmul.mubr.bf16.gmra.mxu0 %v2086
        %v2206 = vpop.f32.mrf.mxu0
        %v2207 = vadd.f32 %v2107, %v2206
        %v2208 = vpop.f32.mrf.mxu0
        %v2209 = vpop.f32.mrf.mxu0
        %v2210 = vadd.f32 %v2107, %v2209
        %v2211 = vpop.f32.mrf.mxu0
        %2212 = vdwg.mxu0
        %v2213 = vadd.f32 %v952, %v2191
        %v2214 = vadd.f32 %v953, %v2194
        %v2215 = vadd.f32 %v954, %v2199
        %v2216 = vadd.f32 %v955, %v2202
        %v2217 = vadd.f32 %v956, %v2207
        %v2218 = vadd.f32 %v957, %v2210
        %v2219 = vld [vmem:[%s661 + $0x2] sm:$0x1]
        %v2220 = vld [vmem:[%s661 + $0x3] sm:$0x1]
        %2221 = vadd.xlane.f32.xlu0 %v2213
        %v2222 = vpop.xlane.xlu0 %2221
        %2223 = vadd.xlane.f32.xlu0 %v2214
        %v2224 = vpop.xlane.xlu0 %2223
        %2225 = vadd.xlane.f32.xlu0 %v2215
        %v2226 = vpop.xlane.xlu0 %2225
        %2227 = vadd.xlane.f32.xlu0 %v2216
        %v2228 = vpop.xlane.xlu0 %2227
        %2229 = vadd.xlane.f32.xlu0 %v2217
        %v2230 = vpop.xlane.xlu0 %2229
        %2231 = vadd.xlane.f32.xlu0 %v2218
        %v2232 = vpop.xlane.xlu0 %2231
        %v2233 = vmul.f32 %v2222, %v972
        %v2234 = vmul.f32 %v2224, %v972
        %v2235 = vmul.f32 %v2226, %v972
        %v2236 = vmul.f32 %v2228, %v972
        %v2237 = vmul.f32 %v2230, %v972
        %v2238 = vmul.f32 %v2232, %v972
        %v2239 = vsub.f32 %v2213, %v2233
        %v2240 = vsub.f32 %v2214, %v2234
        %v2241 = vsub.f32 %v2215, %v2235
        %v2242 = vsub.f32 %v2216, %v2236
        %v2243 = vsub.f32 %v2217, %v2237
        %v2244 = vsub.f32 %v2218, %v2238
        %v2245 = vmul.f32 %v2239, %v2239
        %v2246 = vmul.f32 %v2240, %v2240
        %v2247 = vmul.f32 %v2241, %v2241
        %v2248 = vmul.f32 %v2242, %v2242
        %v2249 = vmul.f32 %v2243, %v2243
        %v2250 = vmul.f32 %v2244, %v2244
        %2251 = vadd.xlane.f32.xlu0 %v2245
        %v2252 = vpop.xlane.xlu0 %2251
        %2253 = vadd.xlane.f32.xlu0 %v2246
        %v2254 = vpop.xlane.xlu0 %2253
        %2255 = vadd.xlane.f32.xlu0 %v2247
        %v2256 = vpop.xlane.xlu0 %2255
        %2257 = vadd.xlane.f32.xlu0 %v2248
        %v2258 = vpop.xlane.xlu0 %2257
        %2259 = vadd.xlane.f32.xlu0 %v2249
        %v2260 = vpop.xlane.xlu0 %2259
        %2261 = vadd.xlane.f32.xlu0 %v2250
        %v2262 = vpop.xlane.xlu0 %2261
        %v2263 = vmul.f32 %v2252, %v972
        %v2264 = vmul.f32 %v2254, %v972
        %v2265 = vmul.f32 %v2256, %v972
        %v2266 = vmul.f32 %v2258, %v972
        %v2267 = vmul.f32 %v2260, %v972
        %v2268 = vmul.f32 %v2262, %v972
        %v2269 = vadd.f32 %v2263, 1e-05
        %v2270 = vadd.f32 %v2264, 1e-05
        %v2271 = vadd.f32 %v2265, 1e-05
        %v2272 = vadd.f32 %v2266, 1e-05
        %v2273 = vadd.f32 %v2267, 1e-05
        %v2274 = vadd.f32 %v2268, 1e-05
        %v2275 = vrsqrt.pop %v2269
        %v2276 = vrsqrt.pop %v2270
        %v2277 = vrsqrt.pop %v2271
        %v2278 = vrsqrt.pop %v2272
        %v2279 = vrsqrt.pop %v2273
        %v2280 = vrsqrt.pop %v2274
        %v2281 = vmul.f32 %v2239, %v2275
        %v2282 = vmul.f32 %v2240, %v2276
        %v2283 = vmul.f32 %v2241, %v2277
        %v2284 = vmul.f32 %v2242, %v2278
        %v2285 = vmul.f32 %v2243, %v2279
        %v2286 = vmul.f32 %v2244, %v2280
        %v2287 = vlaneseq
        %v2288 = vshrl.u32 %v2287, 7
        %v2289 = vsub.s32 0, %v2288
        %v2290 = vrot.slane %v2219, %v2289
        %v2291 = vmul.f32 %v2281, %v2290
        %v2292 = vmul.f32 %v2282, %v2290
        %v2293 = vmul.f32 %v2283, %v2290
        %v2294 = vmul.f32 %v2284, %v2290
        %v2295 = vmul.f32 %v2285, %v2290
        %v2296 = vmul.f32 %v2286, %v2290
        %v2297 = vlaneseq
        %v2298 = vshrl.u32 %v2297, 7
        %v2299 = vsub.s32 0, %v2298
        %v2300 = vrot.slane %v2220, %v2299
        %v2301 = vadd.f32 %v2291, %v2300
        %v2302 = vadd.f32 %v2292, %v2300
        %v2303 = vadd.f32 %v2293, %v2300
        %v2304 = vadd.f32 %v2294, %v2300
        %v2305 = vadd.f32 %v2295, %v2300
        %v2306 = vadd.f32 %v2296, %v2300
        %v2307 = vpack.c.bf16 %v2302, %v2301
        %v2308 = vpack.c.bf16 %v2304, %v2303
        %v2309 = vpack.c.bf16 %v2306, %v2305
        %v2310 = vld [vmem:[%s634] sm:$0xff]
        %v2311 = vld [vmem:[%s634 + $0x8] sm:$0xff]
        %v2312 = vld [vmem:[%s634 + $0x10] sm:$0xff]
        %v2313 = vld [vmem:[%s634 + $0x18] sm:$0xff]
        %v2314 = vld [vmem:[%s634 + $0x20] sm:$0xff]
        %v2315 = vld [vmem:[%s634 + $0x28] sm:$0xff]
        %v2316 = vld [vmem:[%s634 + $0x30] sm:$0xff]
        %v2317 = vld [vmem:[%s634 + $0x38] sm:$0xff]
        %v2318 = vld [vmem:[%s634 + $0x40] sm:$0xff]
        %v2319 = vld [vmem:[%s634 + $0x48] sm:$0xff]
        %v2320 = vld [vmem:[%s634 + $0x50] sm:$0xff]
        %v2321 = vld [vmem:[%s634 + $0x58] sm:$0xff]
        %v2322 = vld [vmem:[%s634 + $0x60] sm:$0xff]
        %v2323 = vld [vmem:[%s634 + $0x68] sm:$0xff]
        %v2324 = vld [vmem:[%s634 + $0x70] sm:$0xff]
        %v2325 = vld [vmem:[%s634 + $0x78] sm:$0xff]
        %v2326 = vld [vmem:[%s634 + $0x80] sm:$0xff]
        %v2327 = vld [vmem:[%s634 + $0x88] sm:$0xff]
        %v2328 = vld [vmem:[%s634 + $0x90] sm:$0xff]
        %v2329 = vld [vmem:[%s634 + $0x98] sm:$0xff]
        %v2330 = vld [vmem:[%s634 + $0xa0] sm:$0xff]
        %v2331 = vld [vmem:[%s634 + $0xa8] sm:$0xff]
        %v2332 = vld [vmem:[%s634 + $0xb0] sm:$0xff]
        %v2333 = vld [vmem:[%s634 + $0xb8] sm:$0xff]
        %v2334 = vld [vmem:[%s634 + $0xc0] sm:$0xff]
        %v2335 = vld [vmem:[%s634 + $0xc8] sm:$0xff]
        %v2336 = vld [vmem:[%s634 + $0xd0] sm:$0xff]
        %v2337 = vld [vmem:[%s634 + $0xd8] sm:$0xff]
        %v2338 = vld [vmem:[%s634 + $0xe0] sm:$0xff]
        %v2339 = vld [vmem:[%s634 + $0xe8] sm:$0xff]
        %v2340 = vld [vmem:[%s634 + $0xf0] sm:$0xff]
        %v2341 = vld [vmem:[%s634 + $0xf8] sm:$0xff]
        %v2342 = vld [vmem:[%s643] sm:$0xf]
        %v2344 = vlaneseq
        %v2345 = vshrl.u32 %v2344, 7
        %v2346 = vsub.s32 0, %v2345
        %v2347 = vrot.slane %v2342, %v2346
        %v2348 = vlaneseq
        %v2349 = vshrl.u32 %v2348, 7
        %v2350 = vsub.s32 1, %v2349
        %v2351 = vrot.slane %v2342, %v2350
        %v2352 = vlaneseq
        %v2353 = vshrl.u32 %v2352, 7
        %v2354 = vsub.s32 2, %v2353
        %v2355 = vrot.slane %v2342, %v2354
        %v2356 = vlaneseq
        %v2357 = vshrl.u32 %v2356, 7
        %v2358 = vsub.s32 3, %v2357
        %v2359 = vrot.slane %v2342, %v2358
        %v2396 = vunpack.c.l.b16 %v2310
        %v2397 = vunpack.c.h.b16 %v2310
        %v2398 = vunpack.c.l.b16 %v2311
        %v2399 = vunpack.c.h.b16 %v2311
        %v2400 = vunpack.c.l.b16 %v2312
        %v2401 = vunpack.c.h.b16 %v2312
        %v2402 = vunpack.c.l.b16 %v2313
        %v2403 = vunpack.c.h.b16 %v2313
        %v2404 = vunpack.c.l.b16 %v2314
        %v2405 = vunpack.c.h.b16 %v2314
        %v2406 = vunpack.c.l.b16 %v2315
        %v2407 = vunpack.c.h.b16 %v2315
        %v2408 = vunpack.c.l.b16 %v2316
        %v2409 = vunpack.c.h.b16 %v2316
        %v2410 = vunpack.c.l.b16 %v2317
        %v2411 = vunpack.c.h.b16 %v2317
        %v2412 = vunpack.c.l.b16 %v2318
        %v2413 = vunpack.c.h.b16 %v2318
        %v2414 = vunpack.c.l.b16 %v2319
        %v2415 = vunpack.c.h.b16 %v2319
        %v2416 = vunpack.c.l.b16 %v2320
        %v2417 = vunpack.c.h.b16 %v2320
        %v2418 = vunpack.c.l.b16 %v2321
        %v2419 = vunpack.c.h.b16 %v2321
        %v2420 = vunpack.c.l.b16 %v2322
        %v2421 = vunpack.c.h.b16 %v2322
        %v2422 = vunpack.c.l.b16 %v2323
        %v2423 = vunpack.c.h.b16 %v2323
        %v2424 = vunpack.c.l.b16 %v2324
        %v2425 = vunpack.c.h.b16 %v2324
        %v2426 = vunpack.c.l.b16 %v2325
        %v2427 = vunpack.c.h.b16 %v2325
        %v2428 = vunpack.c.l.b16 %v2326
        %v2429 = vunpack.c.h.b16 %v2326
        %v2430 = vunpack.c.l.b16 %v2327
        %v2431 = vunpack.c.h.b16 %v2327
        %v2432 = vunpack.c.l.b16 %v2328
        %v2433 = vunpack.c.h.b16 %v2328
        %v2434 = vunpack.c.l.b16 %v2329
        %v2435 = vunpack.c.h.b16 %v2329
        %v2436 = vunpack.c.l.b16 %v2330
        %v2437 = vunpack.c.h.b16 %v2330
        %v2438 = vunpack.c.l.b16 %v2331
        %v2439 = vunpack.c.h.b16 %v2331
        %v2440 = vunpack.c.l.b16 %v2332
        %v2441 = vunpack.c.h.b16 %v2332
        %v2442 = vunpack.c.l.b16 %v2333
        %v2443 = vunpack.c.h.b16 %v2333
        %v2444 = vunpack.c.l.b16 %v2334
        %v2445 = vunpack.c.h.b16 %v2334
        %v2446 = vunpack.c.l.b16 %v2335
        %v2447 = vunpack.c.h.b16 %v2335
        %v2448 = vunpack.c.l.b16 %v2336
        %v2449 = vunpack.c.h.b16 %v2336
        %v2450 = vunpack.c.l.b16 %v2337
        %v2451 = vunpack.c.h.b16 %v2337
        %v2452 = vunpack.c.l.b16 %v2338
        %v2453 = vunpack.c.h.b16 %v2338
        %v2454 = vunpack.c.l.b16 %v2339
        %v2455 = vunpack.c.h.b16 %v2339
        %v2456 = vunpack.c.l.b16 %v2340
        %v2457 = vunpack.c.h.b16 %v2340
        %v2458 = vunpack.c.l.b16 %v2341
        %v2459 = vunpack.c.h.b16 %v2341
        %v2460 = vpack.c.b16 %v2400, %v2396
        %v2461 = vpack.c.b16 %v2401, %v2397
        %v2462 = vpack.c.b16 %v2402, %v2398
        %v2463 = vpack.c.b16 %v2403, %v2399
        %v2464 = vpack.c.b16 %v2408, %v2404
        %v2465 = vpack.c.b16 %v2409, %v2405
        %v2466 = vpack.c.b16 %v2410, %v2406
        %v2467 = vpack.c.b16 %v2411, %v2407
        %v2468 = vpack.c.b16 %v2416, %v2412
        %v2469 = vpack.c.b16 %v2417, %v2413
        %v2470 = vpack.c.b16 %v2418, %v2414
        %v2471 = vpack.c.b16 %v2419, %v2415
        %v2472 = vpack.c.b16 %v2424, %v2420
        %v2473 = vpack.c.b16 %v2425, %v2421
        %v2474 = vpack.c.b16 %v2426, %v2422
        %v2475 = vpack.c.b16 %v2427, %v2423
        %v2476 = vpack.c.b16 %v2432, %v2428
        %v2477 = vpack.c.b16 %v2433, %v2429
        %v2478 = vpack.c.b16 %v2434, %v2430
        %v2479 = vpack.c.b16 %v2435, %v2431
        %v2480 = vpack.c.b16 %v2440, %v2436
        %v2481 = vpack.c.b16 %v2441, %v2437
        %v2482 = vpack.c.b16 %v2442, %v2438
        %v2483 = vpack.c.b16 %v2443, %v2439
        %v2484 = vpack.c.b16 %v2448, %v2444
        %v2485 = vpack.c.b16 %v2449, %v2445
        %v2486 = vpack.c.b16 %v2450, %v2446
        %v2487 = vpack.c.b16 %v2451, %v2447
        %v2488 = vpack.c.b16 %v2456, %v2452
        %v2489 = vpack.c.b16 %v2457, %v2453
        %v2490 = vpack.c.b16 %v2458, %v2454
        %v2491 = vpack.c.b16 %v2459, %v2455
        %2524 = vmatprep.subr.bf16.mxu0 %v2489
        %2525 = vmatpush1.bf16.msra.mxu0 %v2488
        %2526 = vmatprep.subr.bf16.mxu0 %v2485
        %2527 = vmatpush1.bf16.msra.mxu0 %v2484
        %2528 = vmatprep.subr.bf16.mxu0 %v2481
        %2529 = vmatpush1.bf16.msra.mxu0 %v2480
        %2530 = vmatprep.subr.bf16.mxu0 %v2477
        %2531 = vmatpush1.bf16.msra.mxu0 %v2476
        %2532 = vmatprep.subr.bf16.mxu0 %v2473
        %2533 = vmatpush1.bf16.msra.mxu0 %v2472
        %2534 = vmatprep.subr.bf16.mxu0 %v2469
        %2535 = vmatpush1.bf16.msra.mxu0 %v2468
        %2536 = vmatprep.subr.bf16.mxu0 %v2465
        %2537 = vmatpush1.bf16.msra.mxu0 %v2464
        %2538 = vmatprep.subr.bf16.mxu0 %v2461
        %2539 = vmatpush1.bf16.msra.mxu0 %v2460
        %2540 = vmatprep.subr.bf16.mxu0 0
        %2541 = vmatpush2.bf16.msra.mxu0 0
        %2542 = vmatprep.subr.bf16.mxu0 0
        %2543 = vmatpush2.bf16.msra.mxu0 0
        %2544 = vmatprep.subr.bf16.mxu0 0
        %2545 = vmatpush2.bf16.msra.mxu0 0
        %2546 = vmatprep.subr.bf16.mxu0 0
        %2547 = vmatpush2.bf16.msra.mxu0 0
        %2548 = vmatprep.subr.bf16.mxu0 0
        %2549 = vmatpush2.bf16.msra.mxu0 0
        %2550 = vmatprep.subr.bf16.mxu0 0
        %2551 = vmatpush2.bf16.msra.mxu0 0
        %2552 = vmatprep.subr.bf16.mxu0 0
        %2553 = vmatpush2.bf16.msra.mxu0 0
        %2554 = vmatprep.subr.bf16.mxu0 0
        %2555 = vmatpush2.bf16.msra.mxu0 0
        %2556 = vmatprep.mubr.bf16.mxu0 0
        %2557 = vmatmul.mubr.bf16.gmra.mxu0 %v2307
        %v2558 = vpop.f32.mrf.mxu0
        %v2559 = vadd.f32 %v2347, %v2558
        %v2560 = vpop.f32.mrf.mxu0
        %v2561 = vadd.f32 %v2351, %v2560
        %v2562 = vpop.f32.mrf.mxu0
        %v2563 = vadd.f32 %v2347, %v2562
        %v2564 = vpop.f32.mrf.mxu0
        %v2565 = vadd.f32 %v2351, %v2564
        %2566 = vmatprep.mubr.bf16.mxu0 0
        %2567 = vmatmul.mubr.bf16.gmra.mxu0 %v2308
        %v2568 = vpop.f32.mrf.mxu0
        %v2569 = vadd.f32 %v2347, %v2568
        %v2570 = vpop.f32.mrf.mxu0
        %v2571 = vadd.f32 %v2351, %v2570
        %v2572 = vpop.f32.mrf.mxu0
        %v2573 = vadd.f32 %v2347, %v2572
        %v2574 = vpop.f32.mrf.mxu0
        %v2575 = vadd.f32 %v2351, %v2574
        %2576 = vmatprep.mubr.bf16.mxu0 0
        %2577 = vmatmul.mubr.bf16.gmra.mxu0 %v2309
        %v2578 = vpop.f32.mrf.mxu0
        %v2579 = vadd.f32 %v2347, %v2578
        %v2580 = vpop.f32.mrf.mxu0
        %v2581 = vadd.f32 %v2351, %v2580
        %v2582 = vpop.f32.mrf.mxu0
        %v2583 = vadd.f32 %v2347, %v2582
        %v2584 = vpop.f32.mrf.mxu0
        %v2585 = vadd.f32 %v2351, %v2584
        %2586 = vdwg.mxu0
        %2587 = vmatprep.subr.bf16.mxu0 %v2491
        %2588 = vmatpush1.bf16.msra.mxu0 %v2490
        %2589 = vmatprep.subr.bf16.mxu0 %v2487
        %2590 = vmatpush1.bf16.msra.mxu0 %v2486
        %2591 = vmatprep.subr.bf16.mxu0 %v2483
        %2592 = vmatpush1.bf16.msra.mxu0 %v2482
        %2593 = vmatprep.subr.bf16.mxu0 %v2479
        %2594 = vmatpush1.bf16.msra.mxu0 %v2478
        %2595 = vmatprep.subr.bf16.mxu0 %v2475
        %2596 = vmatpush1.bf16.msra.mxu0 %v2474
        %2597 = vmatprep.subr.bf16.mxu0 %v2471
        %2598 = vmatpush1.bf16.msra.mxu0 %v2470
        %2599 = vmatprep.subr.bf16.mxu0 %v2467
        %2600 = vmatpush1.bf16.msra.mxu0 %v2466
        %2601 = vmatprep.subr.bf16.mxu0 %v2463
        %2602 = vmatpush1.bf16.msra.mxu0 %v2462
        %2603 = vmatprep.subr.bf16.mxu0 0
        %2604 = vmatpush2.bf16.msra.mxu0 0
        %2605 = vmatprep.subr.bf16.mxu0 0
        %2606 = vmatpush2.bf16.msra.mxu0 0
        %2607 = vmatprep.subr.bf16.mxu0 0
        %2608 = vmatpush2.bf16.msra.mxu0 0
        %2609 = vmatprep.subr.bf16.mxu0 0
        %2610 = vmatpush2.bf16.msra.mxu0 0
        %2611 = vmatprep.subr.bf16.mxu0 0
        %2612 = vmatpush2.bf16.msra.mxu0 0
        %2613 = vmatprep.subr.bf16.mxu0 0
        %2614 = vmatpush2.bf16.msra.mxu0 0
        %2615 = vmatprep.subr.bf16.mxu0 0
        %2616 = vmatpush2.bf16.msra.mxu0 0
        %2617 = vmatprep.subr.bf16.mxu0 0
        %2618 = vmatpush2.bf16.msra.mxu0 0
        %2619 = vmatprep.mubr.bf16.mxu0 0
        %2620 = vmatmul.mubr.bf16.gmra.mxu0 %v2307
        %v2621 = vpop.f32.mrf.mxu0
        %v2622 = vadd.f32 %v2355, %v2621
        %v2623 = vpop.f32.mrf.mxu0
        %v2624 = vadd.f32 %v2359, %v2623
        %v2625 = vpop.f32.mrf.mxu0
        %v2626 = vadd.f32 %v2355, %v2625
        %v2627 = vpop.f32.mrf.mxu0
        %v2628 = vadd.f32 %v2359, %v2627
        %2629 = vmatprep.mubr.bf16.mxu0 0
        %2630 = vmatmul.mubr.bf16.gmra.mxu0 %v2308
        %v2631 = vpop.f32.mrf.mxu0
        %v2632 = vadd.f32 %v2355, %v2631
        %v2633 = vpop.f32.mrf.mxu0
        %v2634 = vadd.f32 %v2359, %v2633
        %v2635 = vpop.f32.mrf.mxu0
        %v2636 = vadd.f32 %v2355, %v2635
        %v2637 = vpop.f32.mrf.mxu0
        %v2638 = vadd.f32 %v2359, %v2637
        %2639 = vmatprep.mubr.bf16.mxu0 0
        %2640 = vmatmul.mubr.bf16.gmra.mxu0 %v2309
        %v2641 = vpop.f32.mrf.mxu0
        %v2642 = vadd.f32 %v2355, %v2641
        %v2643 = vpop.f32.mrf.mxu0
        %v2644 = vadd.f32 %v2359, %v2643
        %v2645 = vpop.f32.mrf.mxu0
        %v2646 = vadd.f32 %v2355, %v2645
        %v2647 = vpop.f32.mrf.mxu0
        %v2648 = vadd.f32 %v2359, %v2647
        %2649 = vdwg.mxu0
        %v2650 = vmul.f32 %v2559, 1.702
        %v2651 = vmul.f32 %v2561, 1.702
        %v2652 = vmul.f32 %v2622, 1.702
        %v2653 = vmul.f32 %v2624, 1.702
        %v2654 = vmul.f32 %v2563, 1.702
        %v2655 = vmul.f32 %v2565, 1.702
        %v2656 = vmul.f32 %v2626, 1.702
        %v2657 = vmul.f32 %v2628, 1.702
        %v2658 = vmul.f32 %v2569, 1.702
        %v2659 = vmul.f32 %v2571, 1.702
        %v2660 = vmul.f32 %v2632, 1.702
        %v2661 = vmul.f32 %v2634, 1.702
        %v2662 = vmul.f32 %v2573, 1.702
        %v2663 = vmul.f32 %v2575, 1.702
        %v2664 = vmul.f32 %v2636, 1.702
        %v2665 = vmul.f32 %v2638, 1.702
        %v2666 = vmul.f32 %v2579, 1.702
        %v2667 = vmul.f32 %v2581, 1.702
        %v2668 = vmul.f32 %v2642, 1.702
        %v2669 = vmul.f32 %v2644, 1.702
        %v2670 = vmul.f32 %v2583, 1.702
        %v2671 = vmul.f32 %v2585, 1.702
        %v2672 = vmul.f32 %v2646, 1.702
        %v2673 = vmul.f32 %v2648, 1.702
        %v2674 = vxor.u32 %v2650, 2147483648
        %v2675 = vxor.u32 %v2651, 2147483648
        %v2676 = vxor.u32 %v2652, 2147483648
        %v2677 = vxor.u32 %v2653, 2147483648
        %v2678 = vxor.u32 %v2654, 2147483648
        %v2679 = vxor.u32 %v2655, 2147483648
        %v2680 = vxor.u32 %v2656, 2147483648
        %v2681 = vxor.u32 %v2657, 2147483648
        %v2682 = vxor.u32 %v2658, 2147483648
        %v2683 = vxor.u32 %v2659, 2147483648
        %v2684 = vxor.u32 %v2660, 2147483648
        %v2685 = vxor.u32 %v2661, 2147483648
        %v2686 = vxor.u32 %v2662, 2147483648
        %v2687 = vxor.u32 %v2663, 2147483648
        %v2688 = vxor.u32 %v2664, 2147483648
        %v2689 = vxor.u32 %v2665, 2147483648
        %v2690 = vxor.u32 %v2666, 2147483648
        %v2691 = vxor.u32 %v2667, 2147483648
        %v2692 = vxor.u32 %v2668, 2147483648
        %v2693 = vxor.u32 %v2669, 2147483648
        %v2694 = vxor.u32 %v2670, 2147483648
        %v2695 = vxor.u32 %v2671, 2147483648
        %v2696 = vxor.u32 %v2672, 2147483648
        %v2697 = vxor.u32 %v2673, 2147483648
        %v2698 = vmul.f32 %v2674, 1.442695
        %v2699 = vpow.pop %v2698
        %v2700 = vmul.f32 %v2675, 1.442695
        %v2701 = vpow.pop %v2700
        %v2702 = vmul.f32 %v2676, 1.442695
        %v2703 = vpow.pop %v2702
        %v2704 = vmul.f32 %v2677, 1.442695
        %v2705 = vpow.pop %v2704
        %v2706 = vmul.f32 %v2678, 1.442695
        %v2707 = vpow.pop %v2706
        %v2708 = vmul.f32 %v2679, 1.442695
        %v2709 = vpow.pop %v2708
        %v2710 = vmul.f32 %v2680, 1.442695
        %v2711 = vpow.pop %v2710
        %v2712 = vmul.f32 %v2681, 1.442695
        %v2713 = vpow.pop %v2712
        %v2714 = vmul.f32 %v2682, 1.442695
        %v2715 = vpow.pop %v2714
        %v2716 = vmul.f32 %v2683, 1.442695
        %v2717 = vpow.pop %v2716
        %v2718 = vmul.f32 %v2684, 1.442695
        %v2719 = vpow.pop %v2718
        %v2720 = vmul.f32 %v2685, 1.442695
        %v2721 = vpow.pop %v2720
        %v2722 = vmul.f32 %v2686, 1.442695
        %v2723 = vpow.pop %v2722
        %v2724 = vmul.f32 %v2687, 1.442695
        %v2725 = vpow.pop %v2724
        %v2726 = vmul.f32 %v2688, 1.442695
        %v2727 = vpow.pop %v2726
        %v2728 = vmul.f32 %v2689, 1.442695
        %v2729 = vpow.pop %v2728
        %v2730 = vmul.f32 %v2690, 1.442695
        %v2731 = vpow.pop %v2730
        %v2732 = vmul.f32 %v2691, 1.442695
        %v2733 = vpow.pop %v2732
        %v2734 = vmul.f32 %v2692, 1.442695
        %v2735 = vpow.pop %v2734
        %v2736 = vmul.f32 %v2693, 1.442695
        %v2737 = vpow.pop %v2736
        %v2738 = vmul.f32 %v2694, 1.442695
        %v2739 = vpow.pop %v2738
        %v2740 = vmul.f32 %v2695, 1.442695
        %v2741 = vpow.pop %v2740
        %v2742 = vmul.f32 %v2696, 1.442695
        %v2743 = vpow.pop %v2742
        %v2744 = vmul.f32 %v2697, 1.442695
        %v2745 = vpow.pop %v2744
        %v2746 = vadd.f32 %v2699, 1.0
        %v2747 = vadd.f32 %v2701, 1.0
        %v2748 = vadd.f32 %v2703, 1.0
        %v2749 = vadd.f32 %v2705, 1.0
        %v2750 = vadd.f32 %v2707, 1.0
        %v2751 = vadd.f32 %v2709, 1.0
        %v2752 = vadd.f32 %v2711, 1.0
        %v2753 = vadd.f32 %v2713, 1.0
        %v2754 = vadd.f32 %v2715, 1.0
        %v2755 = vadd.f32 %v2717, 1.0
        %v2756 = vadd.f32 %v2719, 1.0
        %v2757 = vadd.f32 %v2721, 1.0
        %v2758 = vadd.f32 %v2723, 1.0
        %v2759 = vadd.f32 %v2725, 1.0
        %v2760 = vadd.f32 %v2727, 1.0
        %v2761 = vadd.f32 %v2729, 1.0
        %v2762 = vadd.f32 %v2731, 1.0
        %v2763 = vadd.f32 %v2733, 1.0
        %v2764 = vadd.f32 %v2735, 1.0
        %v2765 = vadd.f32 %v2737, 1.0
        %v2766 = vadd.f32 %v2739, 1.0
        %v2767 = vadd.f32 %v2741, 1.0
        %v2768 = vadd.f32 %v2743, 1.0
        %v2769 = vadd.f32 %v2745, 1.0
        %v2770 = vrcp.pop %v2746
        %v2771 = vmul.f32 1.0, %v2770
        %v2772 = vrcp.pop %v2747
        %v2773 = vmul.f32 1.0, %v2772
        %v2774 = vrcp.pop %v2748
        %v2775 = vmul.f32 1.0, %v2774
        %v2776 = vrcp.pop %v2749
        %v2777 = vmul.f32 1.0, %v2776
        %v2778 = vrcp.pop %v2750
        %v2779 = vmul.f32 1.0, %v2778
        %v2780 = vrcp.pop %v2751
        %v2781 = vmul.f32 1.0, %v2780
        %v2782 = vrcp.pop %v2752
        %v2783 = vmul.f32 1.0, %v2782
        %v2784 = vrcp.pop %v2753
        %v2785 = vmul.f32 1.0, %v2784
        %v2786 = vrcp.pop %v2754
        %v2787 = vmul.f32 1.0, %v2786
        %v2788 = vrcp.pop %v2755
        %v2789 = vmul.f32 1.0, %v2788
        %v2790 = vrcp.pop %v2756
        %v2791 = vmul.f32 1.0, %v2790
        %v2792 = vrcp.pop %v2757
        %v2793 = vmul.f32 1.0, %v2792
        %v2794 = vrcp.pop %v2758
        %v2795 = vmul.f32 1.0, %v2794
        %v2796 = vrcp.pop %v2759
        %v2797 = vmul.f32 1.0, %v2796
        %v2798 = vrcp.pop %v2760
        %v2799 = vmul.f32 1.0, %v2798
        %v2800 = vrcp.pop %v2761
        %v2801 = vmul.f32 1.0, %v2800
        %v2802 = vrcp.pop %v2762
        %v2803 = vmul.f32 1.0, %v2802
        %v2804 = vrcp.pop %v2763
        %v2805 = vmul.f32 1.0, %v2804
        %v2806 = vrcp.pop %v2764
        %v2807 = vmul.f32 1.0, %v2806
        %v2808 = vrcp.pop %v2765
        %v2809 = vmul.f32 1.0, %v2808
        %v2810 = vrcp.pop %v2766
        %v2811 = vmul.f32 1.0, %v2810
        %v2812 = vrcp.pop %v2767
        %v2813 = vmul.f32 1.0, %v2812
        %v2814 = vrcp.pop %v2768
        %v2815 = vmul.f32 1.0, %v2814
        %v2816 = vrcp.pop %v2769
        %v2817 = vmul.f32 1.0, %v2816
        %v2818 = vmul.f32 %v2559, %v2771
        %v2819 = vmul.f32 %v2561, %v2773
        %v2820 = vmul.f32 %v2622, %v2775
        %v2821 = vmul.f32 %v2624, %v2777
        %v2822 = vmul.f32 %v2563, %v2779
        %v2823 = vmul.f32 %v2565, %v2781
        %v2824 = vmul.f32 %v2626, %v2783
        %v2825 = vmul.f32 %v2628, %v2785
        %v2826 = vmul.f32 %v2569, %v2787
        %v2827 = vmul.f32 %v2571, %v2789
        %v2828 = vmul.f32 %v2632, %v2791
        %v2829 = vmul.f32 %v2634, %v2793
        %v2830 = vmul.f32 %v2573, %v2795
        %v2831 = vmul.f32 %v2575, %v2797
        %v2832 = vmul.f32 %v2636, %v2799
        %v2833 = vmul.f32 %v2638, %v2801
        %v2834 = vmul.f32 %v2579, %v2803
        %v2835 = vmul.f32 %v2581, %v2805
        %v2836 = vmul.f32 %v2642, %v2807
        %v2837 = vmul.f32 %v2644, %v2809
        %v2838 = vmul.f32 %v2583, %v2811
        %v2839 = vmul.f32 %v2585, %v2813
        %v2840 = vmul.f32 %v2646, %v2815
        %v2841 = vmul.f32 %v2648, %v2817
        %v2842 = vpack.c.bf16 %v2822, %v2818
        %v2843 = vpack.c.bf16 %v2823, %v2819
        %v2844 = vpack.c.bf16 %v2824, %v2820
        %v2845 = vpack.c.bf16 %v2825, %v2821
        %v2846 = vpack.c.bf16 %v2830, %v2826
        %v2847 = vpack.c.bf16 %v2831, %v2827
        %v2848 = vpack.c.bf16 %v2832, %v2828
        %v2849 = vpack.c.bf16 %v2833, %v2829
        %v2850 = vpack.c.bf16 %v2838, %v2834
        %v2851 = vpack.c.bf16 %v2839, %v2835
        %v2852 = vpack.c.bf16 %v2840, %v2836
        %v2853 = vpack.c.bf16 %v2841, %v2837
        %v2854 = vld [vmem:[%s652] sm:$0xf]
        %v2855 = vld [vmem:[%s652 + $0x4] sm:$0xf]
        %v2856 = vld [vmem:[%s652 + $0x8] sm:$0xf]
        %v2857 = vld [vmem:[%s652 + $0xc] sm:$0xf]
        %v2858 = vld [vmem:[%s652 + $0x10] sm:$0xf]
        %v2859 = vld [vmem:[%s652 + $0x14] sm:$0xf]
        %v2860 = vld [vmem:[%s652 + $0x18] sm:$0xf]
        %v2861 = vld [vmem:[%s652 + $0x1c] sm:$0xf]
        %v2862 = vld [vmem:[%s652 + $0x20] sm:$0xf]
        %v2863 = vld [vmem:[%s652 + $0x24] sm:$0xf]
        %v2864 = vld [vmem:[%s652 + $0x28] sm:$0xf]
        %v2865 = vld [vmem:[%s652 + $0x2c] sm:$0xf]
        %v2866 = vld [vmem:[%s652 + $0x30] sm:$0xf]
        %v2867 = vld [vmem:[%s652 + $0x34] sm:$0xf]
        %v2868 = vld [vmem:[%s652 + $0x38] sm:$0xf]
        %v2869 = vld [vmem:[%s652 + $0x3c] sm:$0xf]
        %v2870 = vld [vmem:[%s652 + $0x40] sm:$0xf]
        %v2871 = vld [vmem:[%s652 + $0x44] sm:$0xf]
        %v2872 = vld [vmem:[%s652 + $0x48] sm:$0xf]
        %v2873 = vld [vmem:[%s652 + $0x4c] sm:$0xf]
        %v2874 = vld [vmem:[%s652 + $0x50] sm:$0xf]
        %v2875 = vld [vmem:[%s652 + $0x54] sm:$0xf]
        %v2876 = vld [vmem:[%s652 + $0x58] sm:$0xf]
        %v2877 = vld [vmem:[%s652 + $0x5c] sm:$0xf]
        %v2878 = vld [vmem:[%s652 + $0x60] sm:$0xf]
        %v2879 = vld [vmem:[%s652 + $0x64] sm:$0xf]
        %v2880 = vld [vmem:[%s652 + $0x68] sm:$0xf]
        %v2881 = vld [vmem:[%s652 + $0x6c] sm:$0xf]
        %v2882 = vld [vmem:[%s652 + $0x70] sm:$0xf]
        %v2883 = vld [vmem:[%s652 + $0x74] sm:$0xf]
        %v2884 = vld [vmem:[%s652 + $0x78] sm:$0xf]
        %v2885 = vld [vmem:[%s652 + $0x7c] sm:$0xf]
        %v2886 = vld [vmem:[%s652 + $0x80] sm:$0xf]
        %v2887 = vld [vmem:[%s652 + $0x84] sm:$0xf]
        %v2888 = vld [vmem:[%s652 + $0x88] sm:$0xf]
        %v2889 = vld [vmem:[%s652 + $0x8c] sm:$0xf]
        %v2890 = vld [vmem:[%s652 + $0x90] sm:$0xf]
        %v2891 = vld [vmem:[%s652 + $0x94] sm:$0xf]
        %v2892 = vld [vmem:[%s652 + $0x98] sm:$0xf]
        %v2893 = vld [vmem:[%s652 + $0x9c] sm:$0xf]
        %v2894 = vld [vmem:[%s652 + $0xa0] sm:$0xf]
        %v2895 = vld [vmem:[%s652 + $0xa4] sm:$0xf]
        %v2896 = vld [vmem:[%s652 + $0xa8] sm:$0xf]
        %v2897 = vld [vmem:[%s652 + $0xac] sm:$0xf]
        %v2898 = vld [vmem:[%s652 + $0xb0] sm:$0xf]
        %v2899 = vld [vmem:[%s652 + $0xb4] sm:$0xf]
        %v2900 = vld [vmem:[%s652 + $0xb8] sm:$0xf]
        %v2901 = vld [vmem:[%s652 + $0xbc] sm:$0xf]
        %v2902 = vld [vmem:[%s652 + $0xc0] sm:$0xf]
        %v2903 = vld [vmem:[%s652 + $0xc4] sm:$0xf]
        %v2904 = vld [vmem:[%s652 + $0xc8] sm:$0xf]
        %v2905 = vld [vmem:[%s652 + $0xcc] sm:$0xf]
        %v2906 = vld [vmem:[%s652 + $0xd0] sm:$0xf]
        %v2907 = vld [vmem:[%s652 + $0xd4] sm:$0xf]
        %v2908 = vld [vmem:[%s652 + $0xd8] sm:$0xf]
        %v2909 = vld [vmem:[%s652 + $0xdc] sm:$0xf]
        %v2910 = vld [vmem:[%s652 + $0xe0] sm:$0xf]
        %v2911 = vld [vmem:[%s652 + $0xe4] sm:$0xf]
        %v2912 = vld [vmem:[%s652 + $0xe8] sm:$0xf]
        %v2913 = vld [vmem:[%s652 + $0xec] sm:$0xf]
        %v2914 = vld [vmem:[%s652 + $0xf0] sm:$0xf]
        %v2915 = vld [vmem:[%s652 + $0xf4] sm:$0xf]
        %v2916 = vld [vmem:[%s652 + $0xf8] sm:$0xf]
        %v2917 = vld [vmem:[%s652 + $0xfc] sm:$0xf]
        %v2918 = vld [vmem:[%s661 + $0x5] sm:$0x1]
        %v2919 = vlaneseq
        %v2920 = vshrl.u32 %v2919, 7
        %v2921 = vsub.s32 0, %v2920
        %v2922 = vrot.slane %v2918, %v2921
        %v2987 = vunpack.c.l.b16 %v2854
        %v2988 = vunpack.c.l.b16 %v2855
        %v2989 = vunpack.c.l.b16 %v2856
        %v2990 = vunpack.c.l.b16 %v2857
        %v2991 = vunpack.c.l.b16 %v2858
        %v2992 = vunpack.c.l.b16 %v2859
        %v2993 = vunpack.c.l.b16 %v2860
        %v2994 = vunpack.c.l.b16 %v2861
        %v2995 = vunpack.c.l.b16 %v2862
        %v2996 = vunpack.c.l.b16 %v2863
        %v2997 = vunpack.c.l.b16 %v2864
        %v2998 = vunpack.c.l.b16 %v2865
        %v2999 = vunpack.c.l.b16 %v2866
        %v3000 = vunpack.c.l.b16 %v2867
        %v3001 = vunpack.c.l.b16 %v2868
        %v3002 = vunpack.c.l.b16 %v2869
        %v3003 = vunpack.c.l.b16 %v2870
        %v3004 = vunpack.c.l.b16 %v2871
        %v3005 = vunpack.c.l.b16 %v2872
        %v3006 = vunpack.c.l.b16 %v2873
        %v3007 = vunpack.c.l.b16 %v2874
        %v3008 = vunpack.c.l.b16 %v2875
        %v3009 = vunpack.c.l.b16 %v2876
        %v3010 = vunpack.c.l.b16 %v2877
        %v3011 = vunpack.c.l.b16 %v2878
        %v3012 = vunpack.c.l.b16 %v2879
        %v3013 = vunpack.c.l.b16 %v2880
        %v3014 = vunpack.c.l.b16 %v2881
        %v3015 = vunpack.c.l.b16 %v2882
        %v3016 = vunpack.c.l.b16 %v2883
        %v3017 = vunpack.c.l.b16 %v2884
        %v3018 = vunpack.c.l.b16 %v2885
        %v3019 = vunpack.c.l.b16 %v2886
        %v3020 = vunpack.c.l.b16 %v2887
        %v3021 = vunpack.c.l.b16 %v2888
        %v3022 = vunpack.c.l.b16 %v2889
        %v3023 = vunpack.c.l.b16 %v2890
        %v3024 = vunpack.c.l.b16 %v2891
        %v3025 = vunpack.c.l.b16 %v2892
        %v3026 = vunpack.c.l.b16 %v2893
        %v3027 = vunpack.c.l.b16 %v2894
        %v3028 = vunpack.c.l.b16 %v2895
        %v3029 = vunpack.c.l.b16 %v2896
        %v3030 = vunpack.c.l.b16 %v2897
        %v3031 = vunpack.c.l.b16 %v2898
        %v3032 = vunpack.c.l.b16 %v2899
        %v3033 = vunpack.c.l.b16 %v2900
        %v3034 = vunpack.c.l.b16 %v2901
        %v3035 = vunpack.c.l.b16 %v2902
        %v3036 = vunpack.c.l.b16 %v2903
        %v3037 = vunpack.c.l.b16 %v2904
        %v3038 = vunpack.c.l.b16 %v2905
        %v3039 = vunpack.c.l.b16 %v2906
        %v3040 = vunpack.c.l.b16 %v2907
        %v3041 = vunpack.c.l.b16 %v2908
        %v3042 = vunpack.c.l.b16 %v2909
        %v3043 = vunpack.c.l.b16 %v2910
        %v3044 = vunpack.c.l.b16 %v2911
        %v3045 = vunpack.c.l.b16 %v2912
        %v3046 = vunpack.c.l.b16 %v2913
        %v3047 = vunpack.c.l.b16 %v2914
        %v3048 = vunpack.c.l.b16 %v2915
        %v3049 = vunpack.c.l.b16 %v2916
        %v3050 = vunpack.c.l.b16 %v2917
        %v3051 = vpack.c.b16 %v2988, %v2987
        %v3052 = vpack.c.b16 %v2990, %v2989
        %v3053 = vpack.c.b16 %v2992, %v2991
        %v3054 = vpack.c.b16 %v2994, %v2993
        %v3055 = vpack.c.b16 %v2996, %v2995
        %v3056 = vpack.c.b16 %v2998, %v2997
        %v3057 = vpack.c.b16 %v3000, %v2999
        %v3058 = vpack.c.b16 %v3002, %v3001
        %v3059 = vpack.c.b16 %v3004, %v3003
        %v3060 = vpack.c.b16 %v3006, %v3005
        %v3061 = vpack.c.b16 %v3008, %v3007
        %v3062 = vpack.c.b16 %v3010, %v3009
        %v3063 = vpack.c.b16 %v3012, %v3011
        %v3064 = vpack.c.b16 %v3014, %v3013
        %v3065 = vpack.c.b16 %v3016, %v3015
        %v3066 = vpack.c.b16 %v3018, %v3017
        %v3067 = vpack.c.b16 %v3020, %v3019
        %v3068 = vpack.c.b16 %v3022, %v3021
        %v3069 = vpack.c.b16 %v3024, %v3023
        %v3070 = vpack.c.b16 %v3026, %v3025
        %v3071 = vpack.c.b16 %v3028, %v3027
        %v3072 = vpack.c.b16 %v3030, %v3029
        %v3073 = vpack.c.b16 %v3032, %v3031
        %v3074 = vpack.c.b16 %v3034, %v3033
        %v3075 = vpack.c.b16 %v3036, %v3035
        %v3076 = vpack.c.b16 %v3038, %v3037
        %v3077 = vpack.c.b16 %v3040, %v3039
        %v3078 = vpack.c.b16 %v3042, %v3041
        %v3079 = vpack.c.b16 %v3044, %v3043
        %v3080 = vpack.c.b16 %v3046, %v3045
        %v3081 = vpack.c.b16 %v3048, %v3047
        %v3082 = vpack.c.b16 %v3050, %v3049
        %3115 = vmatprep.subr.bf16.mxu0 0
        %3116 = vmatpush1.bf16.msra.mxu0 %v3058
        %3117 = vmatprep.subr.bf16.mxu0 0
        %3118 = vmatpush1.bf16.msra.mxu0 %v3057
        %3119 = vmatprep.subr.bf16.mxu0 0
        %3120 = vmatpush1.bf16.msra.mxu0 %v3056
        %3121 = vmatprep.subr.bf16.mxu0 0
        %3122 = vmatpush1.bf16.msra.mxu0 %v3055
        %3123 = vmatprep.subr.bf16.mxu0 0
        %3124 = vmatpush1.bf16.msra.mxu0 %v3054
        %3125 = vmatprep.subr.bf16.mxu0 0
        %3126 = vmatpush1.bf16.msra.mxu0 %v3053
        %3127 = vmatprep.subr.bf16.mxu0 0
        %3128 = vmatpush1.bf16.msra.mxu0 %v3052
        %3129 = vmatprep.subr.bf16.mxu0 0
        %3130 = vmatpush1.bf16.msra.mxu0 %v3051
        %3131 = vmatprep.subr.bf16.mxu0 0
        %3132 = vmatpush2.bf16.msra.mxu0 %v3066
        %3133 = vmatprep.subr.bf16.mxu0 0
        %3134 = vmatpush2.bf16.msra.mxu0 %v3065
        %3135 = vmatprep.subr.bf16.mxu0 0
        %3136 = vmatpush2.bf16.msra.mxu0 %v3064
        %3137 = vmatprep.subr.bf16.mxu0 0
        %3138 = vmatpush2.bf16.msra.mxu0 %v3063
        %3139 = vmatprep.subr.bf16.mxu0 0
        %3140 = vmatpush2.bf16.msra.mxu0 %v3062
        %3141 = vmatprep.subr.bf16.mxu0 0
        %3142 = vmatpush2.bf16.msra.mxu0 %v3061
        %3143 = vmatprep.subr.bf16.mxu0 0
        %3144 = vmatpush2.bf16.msra.mxu0 %v3060
        %3145 = vmatprep.subr.bf16.mxu0 0
        %3146 = vmatpush2.bf16.msra.mxu0 %v3059
        %3147 = vmatprep.mubr.bf16.mxu0 %v2843
        %3148 = vmatmul.mubr.bf16.gmra.mxu0 %v2842
        %v3149 = vpop.f32.mrf.mxu0
        %v3150 = vadd.f32 %v2922, %v3149
        %v3151 = vpop.f32.mrf.mxu0
        %v3152 = vpop.f32.mrf.mxu0
        %v3153 = vadd.f32 %v2922, %v3152
        %v3154 = vpop.f32.mrf.mxu0
        %3155 = vmatprep.mubr.bf16.mxu0 %v2847
        %3156 = vmatmul.mubr.bf16.gmra.mxu0 %v2846
        %v3157 = vpop.f32.mrf.mxu0
        %v3158 = vadd.f32 %v2922, %v3157
        %v3159 = vpop.f32.mrf.mxu0
        %v3160 = vpop.f32.mrf.mxu0
        %v3161 = vadd.f32 %v2922, %v3160
        %v3162 = vpop.f32.mrf.mxu0
        %3163 = vmatprep.mubr.bf16.mxu0 %v2851
        %3164 = vmatmul.mubr.bf16.gmra.mxu0 %v2850
        %v3165 = vpop.f32.mrf.mxu0
        %v3166 = vadd.f32 %v2922, %v3165
        %v3167 = vpop.f32.mrf.mxu0
        %v3168 = vpop.f32.mrf.mxu0
        %v3169 = vadd.f32 %v2922, %v3168
        %v3170 = vpop.f32.mrf.mxu0
        %3171 = vdwg.mxu0
        %3172 = vmatprep.subr.bf16.mxu0 0
        %3173 = vmatpush1.bf16.msra.mxu0 %v3074
        %3174 = vmatprep.subr.bf16.mxu0 0
        %3175 = vmatpush1.bf16.msra.mxu0 %v3073
        %3176 = vmatprep.subr.bf16.mxu0 0
        %3177 = vmatpush1.bf16.msra.mxu0 %v3072
        %3178 = vmatprep.subr.bf16.mxu0 0
        %3179 = vmatpush1.bf16.msra.mxu0 %v3071
        %3180 = vmatprep.subr.bf16.mxu0 0
        %3181 = vmatpush1.bf16.msra.mxu0 %v3070
        %3182 = vmatprep.subr.bf16.mxu0 0
        %3183 = vmatpush1.bf16.msra.mxu0 %v3069
        %3184 = vmatprep.subr.bf16.mxu0 0
        %3185 = vmatpush1.bf16.msra.mxu0 %v3068
        %3186 = vmatprep.subr.bf16.mxu0 0
        %3187 = vmatpush1.bf16.msra.mxu0 %v3067
        %3188 = vmatprep.subr.bf16.mxu0 0
        %3189 = vmatpush2.bf16.msra.mxu0 %v3082
        %3190 = vmatprep.subr.bf16.mxu0 0
        %3191 = vmatpush2.bf16.msra.mxu0 %v3081
        %3192 = vmatprep.subr.bf16.mxu0 0
        %3193 = vmatpush2.bf16.msra.mxu0 %v3080
        %3194 = vmatprep.subr.bf16.mxu0 0
        %3195 = vmatpush2.bf16.msra.mxu0 %v3079
        %3196 = vmatprep.subr.bf16.mxu0 0
        %3197 = vmatpush2.bf16.msra.mxu0 %v3078
        %3198 = vmatprep.subr.bf16.mxu0 0
        %3199 = vmatpush2.bf16.msra.mxu0 %v3077
        %3200 = vmatprep.subr.bf16.mxu0 0
        %3201 = vmatpush2.bf16.msra.mxu0 %v3076
        %3202 = vmatprep.subr.bf16.mxu0 0
        %3203 = vmatpush2.bf16.msra.mxu0 %v3075
        %3204 = vmatprep.mubr.bf16.mxu0 %v2845
        %3205 = vmatmul.mubr.bf16.gmra.mxu0 %v2844
        %v3206 = vpop.f32.mrf.mxu0
        %v3207 = vadd.f32 %v3150, %v3206
        %v3208 = vpop.f32.mrf.mxu0
        %v3209 = vpop.f32.mrf.mxu0
        %v3210 = vadd.f32 %v3153, %v3209
        %v3211 = vpop.f32.mrf.mxu0
        %3212 = vmatprep.mubr.bf16.mxu0 %v2849
        %3213 = vmatmul.mubr.bf16.gmra.mxu0 %v2848
        %v3214 = vpop.f32.mrf.mxu0
        %v3215 = vadd.f32 %v3158, %v3214
        %v3216 = vpop.f32.mrf.mxu0
        %v3217 = vpop.f32.mrf.mxu0
        %v3218 = vadd.f32 %v3161, %v3217
        %v3219 = vpop.f32.mrf.mxu0
        %3220 = vmatprep.mubr.bf16.mxu0 %v2853
        %3221 = vmatmul.mubr.bf16.gmra.mxu0 %v2852
        %v3222 = vpop.f32.mrf.mxu0
        %v3223 = vadd.f32 %v3166, %v3222
        %v3224 = vpop.f32.mrf.mxu0
        %v3225 = vpop.f32.mrf.mxu0
        %v3226 = vadd.f32 %v3169, %v3225
        %v3227 = vpop.f32.mrf.mxu0
        %3228 = vdwg.mxu0
        %v3229 = vadd.f32 %v2213, %v3207
        %v3230 = vadd.f32 %v2214, %v3210
        %v3231 = vadd.f32 %v2215, %v3215
        %v3232 = vadd.f32 %v2216, %v3218
        %v3233 = vadd.f32 %v2217, %v3223
        %v3234 = vadd.f32 %v2218, %v3226
        %3235 = vst [vmem:[#allocation2] sm:$0xff] %v3229
        %3236 = vst [vmem:[#allocation2 + $0x8] sm:$0xff] %v3230
        %3237 = vst [vmem:[#allocation2 + $0x10] sm:$0xff] %v3231
        %3238 = vst [vmem:[#allocation2 + $0x18] sm:$0xff] %v3232
        %3239 = vst [vmem:[#allocation2 + $0x20] sm:$0xff] %v3233
        %3240 = vst [vmem:[#allocation2 + $0x28] sm:$0xff] %v3234
        %p3241 = scmp.eq.s32.totalorder %s35, 1
        // Predicated region
        $region117: #{tpu_custom_call.1} parent=75 // pred_check
          %p3242 = pneg %p3241
        $region118: #{tpu_custom_call.1} parent=75 // pred_check_branch
          %3244 = sbr.rel (%p3242) target = $region120
        $region119: #{tpu_custom_call.1} parent=75 // pred_region
          %v3245 = vld [vmem:[#allocation2] sm:$0xff]
          %v3246 = vld [vmem:[#allocation2 + $0x18] sm:$0xff]
          %v3247 = vld [vmem:[#allocation15 + $0x2] sm:$0x1]
          %v3248 = vld [vmem:[#allocation15 + $0x3] sm:$0x1]
          %v3251 = vrot.slane %v3246, 7
          %vm3252 = vcmask 1041409
          %v3253 = vsel %vm3252, %v3251, %v3245
          %vm3255 = vcmask 1041408
          %v3256 = vsel %vm3255, %v3253, 0.0
          %3257 = vadd.xlane.f32.xlu0 %v3256
          %v3258 = vpop.xlane.xlu0 %3257
          %v3259 = vmul.f32 %v3258, %v972
          %v3261 = vrot.slane %v3259, 1
          %v3264 = vsub.f32 %v3245, %v3259
          %v3265 = vsub.f32 %v3246, %v3261
          %v3266 = vmul.f32 %v3264, %v3264
          %v3267 = vmul.f32 %v3265, %v3265
          %v3270 = vrot.slane %v3267, 7
          %v3271 = vsel %vm3252, %v3270, %v3266
          %v3273 = vsel %vm3255, %v3271, 0.0
          %3274 = vadd.xlane.f32.xlu0 %v3273
          %v3275 = vpop.xlane.xlu0 %3274
          %v3276 = vmul.f32 %v3275, %v972
          %v3277 = vadd.f32 %v3276, 1e-05
          %v3278 = vrsqrt.pop %v3277
          %v3280 = vrot.slane %v3278, 1
          %v3283 = vmul.f32 %v3264, %v3278
          %v3284 = vmul.f32 %v3265, %v3280
          %v3285 = vlaneseq
          %v3286 = vshrl.u32 %v3285, 7
          %v3287 = vsub.s32 0, %v3286
          %v3288 = vrot.slane %v3247, %v3287
          %v3289 = vmul.f32 %v3283, %v3288
          %v3290 = vmul.f32 %v3284, %v3288
          %v3291 = vlaneseq
          %v3292 = vshrl.u32 %v3291, 7
          %v3293 = vsub.s32 0, %v3292
          %v3294 = vrot.slane %v3248, %v3293
          %v3295 = vadd.f32 %v3289, %v3294
          %v3296 = vadd.f32 %v3290, %v3294
          %v3297 = vpack.c.bf16 %v3295, %v3295
          %v3298 = vpack.c.bf16 %v3296, %v3296
          %v3299 = vld [vmem:[%s11] sm:$0xf]
          %v3300 = vld [vmem:[%s11 + $0x4] sm:$0xf]
          %v3301 = vld [vmem:[%s11 + $0x8] sm:$0xf]
          %v3302 = vld [vmem:[%s11 + $0xc] sm:$0xf]
          %v3303 = vld [vmem:[%s11 + $0x10] sm:$0xf]
          %v3304 = vld [vmem:[%s11 + $0x14] sm:$0xf]
          %v3305 = vld [vmem:[%s11 + $0x18] sm:$0xf]
          %v3306 = vld [vmem:[%s11 + $0x1c] sm:$0xf]
          %v3307 = vld [vmem:[%s11 + $0x20] sm:$0xf]
          %v3308 = vld [vmem:[%s11 + $0x24] sm:$0xf]
          %v3309 = vld [vmem:[%s11 + $0x28] sm:$0xf]
          %v3310 = vld [vmem:[%s11 + $0x2c] sm:$0xf]
          %v3311 = vld [vmem:[%s11 + $0x30] sm:$0xf]
          %v3312 = vld [vmem:[%s11 + $0x34] sm:$0xf]
          %v3313 = vld [vmem:[%s11 + $0x38] sm:$0xf]
          %v3314 = vld [vmem:[%s11 + $0x3c] sm:$0xf]
          %v3317 = vunpack.c.l.b16 %v3297
          %v3318 = vunpack.c.l.b16 %v3298
          %v3319 = vrot.slane %v3318, 7
          %v3320 = vsel %vm3252, %v3319, %v3317
          %v3321 = vpack.c.b16 %v3320, %v3320
          %v3339 = vunpack.c.l.b16 %v3299
          %v3340 = vunpack.c.l.b16 %v3300
          %v3341 = vunpack.c.l.b16 %v3301
          %v3342 = vunpack.c.l.b16 %v3302
          %v3343 = vunpack.c.l.b16 %v3303
          %v3344 = vunpack.c.l.b16 %v3304
          %v3345 = vunpack.c.l.b16 %v3305
          %v3346 = vunpack.c.l.b16 %v3306
          %v3347 = vunpack.c.l.b16 %v3307
          %v3348 = vunpack.c.l.b16 %v3308
          %v3349 = vunpack.c.l.b16 %v3309
          %v3350 = vunpack.c.l.b16 %v3310
          %v3351 = vunpack.c.l.b16 %v3311
          %v3352 = vunpack.c.l.b16 %v3312
          %v3353 = vunpack.c.l.b16 %v3313
          %v3354 = vunpack.c.l.b16 %v3314
          %v3355 = vpack.c.b16 %v3340, %v3339
          %v3356 = vpack.c.b16 %v3342, %v3341
          %v3357 = vpack.c.b16 %v3344, %v3343
          %v3358 = vpack.c.b16 %v3346, %v3345
          %v3359 = vpack.c.b16 %v3348, %v3347
          %v3360 = vpack.c.b16 %v3350, %v3349
          %v3361 = vpack.c.b16 %v3352, %v3351
          %v3362 = vpack.c.b16 %v3354, %v3353
          %3371 = vmatprep.subr.bf16.mxu0 0
          %3372 = vmatpush1.bf16.msra.mxu0 %v3362
          %3373 = vmatprep.subr.bf16.mxu0 0
          %3374 = vmatpush1.bf16.msra.mxu0 %v3361
          %3375 = vmatprep.subr.bf16.mxu0 0
          %3376 = vmatpush1.bf16.msra.mxu0 %v3360
          %3377 = vmatprep.subr.bf16.mxu0 0
          %3378 = vmatpush1.bf16.msra.mxu0 %v3359
          %3379 = vmatprep.subr.bf16.mxu0 0
          %3380 = vmatpush1.bf16.msra.mxu0 %v3358
          %3381 = vmatprep.subr.bf16.mxu0 0
          %3382 = vmatpush1.bf16.msra.mxu0 %v3357
          %3383 = vmatprep.subr.bf16.mxu0 0
          %3384 = vmatpush1.bf16.msra.mxu0 %v3356
          %3385 = vmatprep.subr.bf16.mxu0 0
          %3386 = vmatpush1.bf16.msra.mxu0 %v3355
          %3387 = vmatprep.subr.bf16.mxu0 0
          %3388 = vmatpush2.bf16.msra.mxu0 0
          %3389 = vmatprep.subr.bf16.mxu0 0
          %3390 = vmatpush2.bf16.msra.mxu0 0
          %3391 = vmatprep.subr.bf16.mxu0 0
          %3392 = vmatpush2.bf16.msra.mxu0 0
          %3393 = vmatprep.subr.bf16.mxu0 0
          %3394 = vmatpush2.bf16.msra.mxu0 0
          %3395 = vmatprep.subr.bf16.mxu0 0
          %3396 = vmatpush2.bf16.msra.mxu0 0
          %3397 = vmatprep.subr.bf16.mxu0 0
          %3398 = vmatpush2.bf16.msra.mxu0 0
          %3399 = vmatprep.subr.bf16.mxu0 0
          %3400 = vmatpush2.bf16.msra.mxu0 0
          %3401 = vmatprep.subr.bf16.mxu0 0
          %3402 = vmatpush2.bf16.msra.mxu0 0
          %3403 = vmatprep.mubr.bf16.mxu0 0
          %3404 = vmatmul.mubr.bf16.gmra.mxu0 %v3321
          %v3405 = vpop.f32.mrf.mxu0
          %v3406 = vadd.f32 0.0, %v3405
          %v3407 = vpop.f32.mrf.mxu0
          %v3408 = vpop.f32.mrf.mxu0
          %v3409 = vpop.f32.mrf.mxu0
          %3410 = vdwg.mxu0
          %v3411 = vmul.f32 %v3406, %v3406
          %v3412 = vsel %vm3255, %v3411, 0.0
          %3413 = vadd.xlane.f32.xlu0 %v3412
          %v3414 = vpop.xlane.xlu0 %3413
          %v3415 = vrsqrt.pop %v3414
          %v3416 = vmul.f32 %v3406, %v3415
          %v3417 = vld [vmem:[#allocation3] sm:$0x1]
          %v3418 = vpack.c.bf16 %v3416, %v3416
          %v3419 = vld [vmem:[%s12] sm:$0xf]
          %v3420 = vld [vmem:[%s12 + $0x4] sm:$0xf]
          %v3421 = vld [vmem:[%s12 + $0x8] sm:$0xf]
          %v3422 = vld [vmem:[%s12 + $0xc] sm:$0xf]
          %v3423 = vld [vmem:[%s12 + $0x10] sm:$0xf]
          %v3424 = vld [vmem:[%s12 + $0x14] sm:$0xf]
          %v3425 = vld [vmem:[%s12 + $0x18] sm:$0xf]
          %v3426 = vld [vmem:[%s12 + $0x1c] sm:$0xf]
          %v3427 = vld [vmem:[%s12 + $0x20] sm:$0xf]
          %v3428 = vld [vmem:[%s12 + $0x24] sm:$0xf]
          %v3429 = vld [vmem:[%s12 + $0x28] sm:$0xf]
          %v3430 = vld [vmem:[%s12 + $0x2c] sm:$0xf]
          %v3431 = vld [vmem:[%s12 + $0x30] sm:$0xf]
          %v3432 = vld [vmem:[%s12 + $0x34] sm:$0xf]
          %v3433 = vld [vmem:[%s12 + $0x38] sm:$0xf]
          %v3434 = vld [vmem:[%s12 + $0x3c] sm:$0xf]
          %v3451 = vunpack.c.l.b16 %v3419
          %v3452 = vunpack.c.l.b16 %v3420
          %v3453 = vunpack.c.l.b16 %v3421
          %v3454 = vunpack.c.l.b16 %v3422
          %v3455 = vunpack.c.l.b16 %v3423
          %v3456 = vunpack.c.l.b16 %v3424
          %v3457 = vunpack.c.l.b16 %v3425
          %v3458 = vunpack.c.l.b16 %v3426
          %v3459 = vunpack.c.l.b16 %v3427
          %v3460 = vunpack.c.l.b16 %v3428
          %v3461 = vunpack.c.l.b16 %v3429
          %v3462 = vunpack.c.l.b16 %v3430
          %v3463 = vunpack.c.l.b16 %v3431
          %v3464 = vunpack.c.l.b16 %v3432
          %v3465 = vunpack.c.l.b16 %v3433
          %v3466 = vunpack.c.l.b16 %v3434
          %v3467 = vpack.c.b16 %v3452, %v3451
          %v3468 = vpack.c.b16 %v3454, %v3453
          %v3469 = vpack.c.b16 %v3456, %v3455
          %v3470 = vpack.c.b16 %v3458, %v3457
          %v3471 = vpack.c.b16 %v3460, %v3459
          %v3472 = vpack.c.b16 %v3462, %v3461
          %v3473 = vpack.c.b16 %v3464, %v3463
          %v3474 = vpack.c.b16 %v3466, %v3465
          %3483 = vmatprep.subr.bf16.mxu0 0
          %3484 = vmatpush1.bf16.msra.mxu0 %v3474
          %3485 = vmatprep.subr.bf16.mxu0 0
          %3486 = vmatpush1.bf16.msra.mxu0 %v3473
          %3487 = vmatprep.subr.bf16.mxu0 0
          %3488 = vmatpush1.bf16.msra.mxu0 %v3472
          %3489 = vmatprep.subr.bf16.mxu0 0
          %3490 = vmatpush1.bf16.msra.mxu0 %v3471
          %3491 = vmatprep.subr.bf16.mxu0 0
          %3492 = vmatpush1.bf16.msra.mxu0 %v3470
          %3493 = vmatprep.subr.bf16.mxu0 0
          %3494 = vmatpush1.bf16.msra.mxu0 %v3469
          %3495 = vmatprep.subr.bf16.mxu0 0
          %3496 = vmatpush1.bf16.msra.mxu0 %v3468
          %3497 = vmatprep.subr.bf16.mxu0 0
          %3498 = vmatpush1.bf16.msra.mxu0 %v3467
          %3499 = vmatprep.subr.bf16.mxu0 0
          %3500 = vmatpush2.bf16.msra.mxu0 0
          %3501 = vmatprep.subr.bf16.mxu0 0
          %3502 = vmatpush2.bf16.msra.mxu0 0
          %3503 = vmatprep.subr.bf16.mxu0 0
          %3504 = vmatpush2.bf16.msra.mxu0 0
          %3505 = vmatprep.subr.bf16.mxu0 0
          %3506 = vmatpush2.bf16.msra.mxu0 0
          %3507 = vmatprep.subr.bf16.mxu0 0
          %3508 = vmatpush2.bf16.msra.mxu0 0
          %3509 = vmatprep.subr.bf16.mxu0 0
          %3510 = vmatpush2.bf16.msra.mxu0 0
          %3511 = vmatprep.subr.bf16.mxu0 0
          %3512 = vmatpush2.bf16.msra.mxu0 0
          %3513 = vmatprep.subr.bf16.mxu0 0
          %3514 = vmatpush2.bf16.msra.mxu0 0
          %3515 = vmatprep.mubr.bf16.mxu0 0
          %3516 = vmatmul.mubr.bf16.gmra.mxu0 %v3418
          %v3517 = vpop.f32.mrf.mxu0
          %v3518 = vadd.f32 0.0, %v3517
          %v3519 = vpop.f32.mrf.mxu0
          %v3520 = vpop.f32.mrf.mxu0
          %v3521 = vpop.f32.mrf.mxu0
          %3522 = vdwg.mxu0
          %v3524 = vlaneseq
          %v3525 = vshrl.u32 %v3524, 7
          %v3526 = vsub.s32 0, %v3525
          %v3527 = vrot.slane %v3417, %v3526
          %3528 = vset.pattern.permute.xlu0 0
          %3529 = vperm.xlu0 %3528, %v3527
          %v3530 = vpop.permute.xlu0 %3529
          %v3532 = vmul.f32 %v3530, %v3518
          %vm3533 = vcmask 123904
          %3534 = vst.msk [vmem:[#allocation16] sm:$0x3] %vm3533, %v3532
        $region120: #{tpu_custom_call.1} parent=75 // pred_fallthru
          _
        // Predicated region
        $region121: #{tpu_custom_call.1} parent=75 // pred_check
          %p3535 = pneg %p394
        $region122: #{tpu_custom_call.1} parent=75 // pred_check_branch
          %3537 = sbr.rel (%p3535) target = $region124
        $region123: #{tpu_custom_call.1} parent=75 // pred_region
          %s3539 = ssub.s32 32, 32
          %3540 = vsyncadd [#allocation6], %s3539
          %s3541 = smul.addr %s34, 32
          %s3542 = scalar_lea.hbm %s14, %s3541
          %s3544 = sshll.u32 [#allocation16], 4
          %s3545 = int_to_ptr.vmem [resolvable:$true] %s3544
          %3547 = dma.vmem_to_hbm [thread:$0]  %s3545, 32, %s3542, [#allocation6]
        $region124: #{tpu_custom_call.1} parent=75 // pred_fallthru
          _
        // Predicated region
        $region125: #{tpu_custom_call.1} parent=75 // pred_check
          %p3548 = pneg %p394
        $region126: #{tpu_custom_call.1} parent=75 // pred_check_branch
          %3550 = sbr.rel (%p3548) target = $region128
        $region127: #{tpu_custom_call.1} parent=75 // pred_region
          %3551 = dma.done [#allocation6], 32
        $region128: #{tpu_custom_call.1} parent=75 // pred_fallthru
          _
      $region76: #{tpu_custom_call.1} parent=5 // pred_fallthru
        _
      %p3552 = scmp.le.s32.totalorder 2, %s25
      // Predicated region
      $region129: #{tpu_custom_call.1} parent=5 // pred_check
        %p3553 = pneg %p3552
      $region130: #{tpu_custom_call.1} parent=5 // pred_check_branch
        %3555 = sbr.rel (%p3553) target = $region132
      $region131: #{tpu_custom_call.1} parent=5 // pred_region
        %s3556 = ssub.s32 %s25, 2
      $region132: #{tpu_custom_call.1} parent=5 // pred_fallthru
        _
    $region6: #{tpu_custom_call.1} parent=1 // loop_footer
      %s29 = sadd.s32 1, %s25
    $region7: #{tpu_custom_call.1} parent=1 // loop_footer_branch
      %24 = sbr.rel target = $region3
    $region8: #{tpu_custom_call.1} parent=1 // loop_exit
      _
    %3557 = vsyncpa [#allocation5], 1
    %s3558 = scalar_lea.sflag [#allocation5], 1
    %3559 = vsyncpa %s3558, 1
    %3560 = vsyncpa [#allocation8], 1
    %3561 = vsyncpa [#allocation6], 1
    %s3562 = scalar_lea.sflag [#allocation6], 1
    %3563 = vsyncpa %s3562, 1

</llo_original>
